<compile_context>
chip_gen: v6e
topology: v6e:2x2x1
jax: 0.10.0
libtpu: 0.0.40
codegen_flags: <defaults>
</compile_context>

<pallas_src>
import functools

import jax
import jax.numpy as jnp
from jax import lax
from jax.experimental import pallas as pl
from jax.experimental.pallas import tpu as pltpu


def _ggnn_rel_kernel(prior_ref, x_ref,
                     wbig_ref, bzr_ref, bh5_ref, u5b_ref,
                     wob_ref, bob_ref, wcls_ref, bcls_ref,
                     out_ref,
                     *, time_step_num, hidden_dim, node_num, num_rel_cls,
                     matmul_dtype):
    f32 = jnp.float32
    H, N, C = hidden_dim, node_num, num_rel_cls
    NH = N * H
    md = matmul_dtype

    # ---- hoisted constant loads (time-step loop below is unrolled) --------
    prior_ld = prior_ref[...]              # (Rt, C*H): column block c == p_c
    wbig = wbig_ref[...]                   # (2*NH, 3*NH) fused gate weight
    u5b = u5b_ref[...]                     # (NH, NH)  block-diag fc_eq5_u
    bzr = bzr_ref[...]                     # (1, 2*NH) fused z/r biases
    bh5 = bh5_ref[...]                     # (1, NH)   fused h-candidate bias

    # lane-dense state: row r = [h_0 | h_1 | ... | h_{N-1}]
    h = x_ref[...]                         # (Rt, N*H)

    for _ in range(time_step_num):
        # av structure (never materialised via VMEM copies):
        #   nodes 0,1 : top = sum_c p_c * h_{2+c}
        #   node 2+c  : p_c * (h_0 + h_1)
        s01 = h[:, :H] + h[:, H:2 * H]                     # (Rt, H)
        prod = prior_ld * h[:, 2 * H:]                     # (Rt, C*H)
        top = prod[:, :H]
        for c in range(1, C):
            top = top + prod[:, c * H:(c + 1) * H]
        s01rep = jnp.concatenate([s01] * C, axis=1)        # (Rt, C*H)

        # one fused gate matmul: [av | h] @ [[blk(w3e)|blk(w4e)|blk(w5e)],
        #                                    [blk(u3) |blk(u3) |   0    ]]
        gin = jnp.concatenate([top, top, prior_ld * s01rep, h], axis=1)
        g = jnp.dot(gin.astype(md), wbig, preferred_element_type=f32)

        # NOTE: the reference module reuses fc_eq3_u for rv (fc_eq4_u unused).
        zr = jax.nn.sigmoid(g[:, :2 * NH] + bzr)           # (Rt, 2*NH)
        zv, rv = zr[:, :NH], zr[:, NH:]
        hv = jnp.tanh(g[:, 2 * NH:] + bh5
                      + jnp.dot((rv * h).astype(md), u5b,
                                preferred_element_type=f32))
        h = (1.0 - zv) * h + zv * hv

    # epilogue: x read here only (not live across the loop)
    x = x_ref[...]
    o = jnp.maximum(
        jnp.dot(jnp.concatenate([h, x], axis=1).astype(md), wob_ref[...],
                preferred_element_type=f32) + bob_ref[...], 0.0)  # (Rt, N*Dout)

    # rel_dists: one K = N*Dout matmul into a lane-dense 128-padded block
    out_ref[...] = (jnp.dot(o.astype(md), wcls_ref[...],
                            preferred_element_type=f32) + bcls_ref[...])


def init_params(key, num_rel_cls, hidden_dim, output_dim):
    """Deterministic torch.nn.Linear-style init; weights stored as (in, out)."""
    N = num_rel_cls + 2

    def linear(k, fan_in, fan_out):
        kw, kb = jax.random.split(k)
        bound = fan_in ** -0.5
        w = jax.random.uniform(kw, (fan_in, fan_out), jnp.float32, -bound, bound)
        b = jax.random.uniform(kb, (1, fan_out), jnp.float32, -bound, bound)
        return w, b

    keys = jax.random.split(key, 8)
    w3, b3 = linear(keys[0], 2 * hidden_dim, hidden_dim)
    u3, bu3 = linear(keys[1], hidden_dim, hidden_dim)
    w4, b4 = linear(keys[2], 2 * hidden_dim, hidden_dim)
    u4, bu4 = linear(keys[3], hidden_dim, hidden_dim)  # unused in forward (matches torch)
    w5, b5 = linear(keys[4], 2 * hidden_dim, hidden_dim)
    u5, bu5 = linear(keys[5], hidden_dim, hidden_dim)
    wo, bo = linear(keys[6], 2 * hidden_dim, output_dim)
    wcls, bcls = linear(keys[7], N * output_dim, num_rel_cls)
    return dict(w3=w3, b3=b3, u3=u3, bu3=bu3, w4=w4, b4=b4, u4=u4, bu4=bu4,
                w5=w5, b5=b5, u5=u5, bu5=bu5, wo=wo, bo=bo, wcls=wcls, bcls=bcls)


def ggnn_rel_forward(sub_obj_preds, input_ggnn, params, prior_matrix,
                     *, num_rel_cls, time_step_num, use_knowledge=True,
                     rel_tile=16, matmul_dtype=jnp.bfloat16):
    """rel_tile: sweep 32-128 for large R (fills the 256-row MXU on v6e/v7x);
    keep the tile count >= 2 and even where possible for v7x's two cores."""
    R, N, H = input_ggnn.shape
    C = num_rel_cls
    assert N == C + 2
    Dout = params['wo'].shape[1]
    NH, NDo = N * H, N * Dout
    C_pad = ((C + 127) // 128) * 128
    Rt = rel_tile
    assert Rt % 8 == 0
    Rp = ((R + Rt - 1) // Rt) * Rt            # pad relations to a tile multiple
    md = matmul_dtype
    eyeN = jnp.eye(N, dtype=jnp.float32)

    # --- glue: knowledge gather (data-dependent indexing stays in XLA) ------
    if use_knowledge:
        rows = prior_matrix[sub_obj_preds[:, 0], sub_obj_preds[:, 1]]   # (R, C)
    else:
        rows = jnp.full((R, C), 1.0 / C, dtype=jnp.float32)
    # prior lane-broadcast hoisted out of the kernel: column block c == p_c
    prior_ld = jnp.pad(jnp.repeat(rows.astype(jnp.float32), H, axis=1),
                       ((0, Rp - R), (0, 0)))                    # (Rp, C*H)

    # lane-dense node-blocked input: row r = [x_r0 | x_r1 | ... | x_r,N-1]
    x_ld = jnp.pad(input_ggnn.reshape(R, NH).astype(jnp.float32),
                   ((0, Rp - R), (0, 0)))                        # (Rp, N*H)

    # --- fused / block-diagonal weights --------------------------------------
    def blk(w):                                   # (a, b) -> block-diag (N*a, N*b)
        return jnp.kron(eyeN, w.astype(jnp.float32))

    w3e = params['w3'][:H] + params['w3'][H:]     # av.repeat(1,1,2) @ W == av @ (W[:H]+W[H:])
    w4e = params['w4'][:H] + params['w4'][H:]
    w5e = params['w5'][:H] + params['w5'][H:]
    wbig = jnp.concatenate([
        jnp.concatenate([blk(w3e), blk(w4e), blk(w5e)], axis=1),
        jnp.concatenate([blk(params['u3']), blk(params['u3']),
                         jnp.zeros((NH, NH), jnp.float32)], axis=1),
    ], axis=0).astype(md)                                        # (2NH, 3NH)
    bzr = jnp.concatenate([jnp.tile(params['b3'] + params['bu3'], (1, N)),
                           jnp.tile(params['b4'] + params['bu3'], (1, N))],
                          axis=1)                                # (1, 2NH)
    bh5 = jnp.tile(params['b5'] + params['bu5'], (1, N))         # (1, NH)
    u5b = blk(params['u5']).astype(md)                           # (NH, NH)
    wob = jnp.concatenate([blk(params['wo'][:H]), blk(params['wo'][H:])],
                          axis=0).astype(md)                     # (2NH, N*Dout)
    bob = jnp.tile(params['bo'], (1, N))                         # (1, N*Dout)
    wcls = jnp.pad(params['wcls'],
                   ((0, 0), (0, C_pad - C))).astype(md)          # (N*Dout, C_pad)
    bcls = jnp.pad(params['bcls'], ((0, 0), (0, C_pad - C)))     # (1, C_pad)

    kernel = functools.partial(_ggnn_rel_kernel,
                               time_step_num=time_step_num, hidden_dim=H,
                               node_num=N, num_rel_cls=C, matmul_dtype=md)

    def const_spec(shape):
        nd = len(shape)
        return pl.BlockSpec(shape, lambda t, _nd=nd: (0,) * _nd)

    in_specs = [
        pl.BlockSpec((Rt, C * H), lambda t: (t, 0)),      # prior (lane-broadcast)
        pl.BlockSpec((Rt, NH), lambda t: (t, 0)),         # input (lane-dense)
        const_spec((2 * NH, 3 * NH)),                     # fused gate weight
        const_spec((1, 2 * NH)), const_spec((1, NH)),     # fused gate biases
        const_spec((NH, NH)),                             # fc_eq5_u (block-diag)
        const_spec((2 * NH, NDo)), const_spec((1, NDo)),  # fc_output (block-diag)
        const_spec((NDo, C_pad)), const_spec((1, C_pad)),  # fc_rel_cls (padded)
    ]

    out = pl.pallas_call(
        kernel,
        out_shape=jax.ShapeDtypeStruct((Rp, C_pad), jnp.float32),
        grid_spec=pltpu.PrefetchScalarGridSpec(
            num_scalar_prefetch=0,
            grid=(Rp // Rt,),
            in_specs=in_specs,
            out_specs=pl.BlockSpec((Rt, C_pad), lambda t: (t, 0)),
        ),
        compiler_params=pltpu.CompilerParams(
            dimension_semantics=("parallel",)),
    )(prior_ld, x_ld, wbig, bzr, bh5, u5b, wob, bob, wcls, bcls)
    return out[:R, :C]                                     # (R, num_rel_cls)


def ggnn_rel_reference(sub_obj_preds, input_ggnn, params, prior_matrix,
                       *, num_rel_cls, time_step_num, use_knowledge=True):
    """Pure-JAX transcription of the torch forward (for validation)."""
    R, N, H = input_ggnn.shape
    C = num_rel_cls
    p = params
    hp = lax.Precision.HIGHEST
    if use_knowledge:
        rows = prior_matrix[sub_obj_preds[:, 0], sub_obj_preds[:, 1]]
    else:
        rows = jnp.full((R, C), 1.0 / C, dtype=jnp.float32)
    A = jnp.stack([rows, rows], axis=1)                      # (R, 2, C)
    h = input_ggnn
    x_flat = input_ggnn.reshape(R * N, H)
    hf = x_flat
    for _ in range(time_step_num):
        top = jnp.einsum('rck,rkh->rch', A, h[:, 2:], precision=hp)
        bot = jnp.einsum('rck,rch->rkh', A, h[:, :2], precision=hp)
        av = jnp.concatenate([top, bot], axis=1)
        av = jnp.concatenate([av, av], axis=2).reshape(R * N, 2 * H)
        hf = h.reshape(R * N, H)
        uh = jnp.dot(hf, p['u3'], precision=hp) + p['bu3']
        zv = jax.nn.sigmoid(jnp.dot(av, p['w3'], precision=hp) + p['b3'] + uh)
        rv = jax.nn.sigmoid(jnp.dot(av, p['w4'], precision=hp) + p['b4'] + uh)
        hv = jnp.tanh(jnp.dot(av, p['w5'], precision=hp) + p['b5']
                      + jnp.dot(rv * hf, p['u5'], precision=hp) + p['bu5'])
        hf = (1.0 - zv) * hf + zv * hv
        h = hf.reshape(R, N, H)
    out = jnp.concatenate([hf, x_flat], axis=1)
    out = jax.nn.relu(jnp.dot(out, p['wo'], precision=hp) + p['bo'])
    return jnp.dot(out.reshape(R, -1), p['wcls'], precision=hp) + p['bcls']


if __name__ == "__main__":
    num_rel_cls = 6
    node_num = num_rel_cls + 2       # forward implies N == num_rel_cls + 2
    hidden_dim = 32
    output_dim = 32
    time_step_num = 3
    num_obj_cls = 10
    R = 20                           # Rt=16 -> Rp=32 -> 2 tiles (even, v7x-friendly)

    key = jax.random.PRNGKey(0)
    k_prior, k_params, k_x, k_so = jax.random.split(key, 4)

    prior_matrix = jax.random.uniform(
        k_prior, (num_obj_cls, num_obj_cls, num_rel_cls), jnp.float32)
    prior_matrix = prior_matrix / prior_matrix.sum(-1, keepdims=True)

    params = init_params(k_params, num_rel_cls, hidden_dim, output_dim)
    input_ggnn = jax.random.normal(k_x, (R, node_num, hidden_dim), jnp.float32) * 0.5
    sub_obj_preds = jax.random.randint(k_so, (R, 2), 0, num_obj_cls, dtype=jnp.int32)

    ref = ggnn_rel_reference(
        sub_obj_preds, input_ggnn, params, prior_matrix,
        num_rel_cls=num_rel_cls, time_step_num=time_step_num, use_knowledge=True)

    # f32 MXU-operand path, tight tolerance.
    rel_f32 = ggnn_rel_forward(
        sub_obj_preds, input_ggnn, params, prior_matrix,
        num_rel_cls=num_rel_cls, time_step_num=time_step_num, use_knowledge=True,
        rel_tile=16, matmul_dtype=jnp.float32)
    rel_f32 = jax.block_until_ready(rel_f32)
    assert rel_f32.shape == (R, num_rel_cls)
    if not bool(jnp.allclose(rel_f32, ref, rtol=5e-3, atol=5e-3)):
        raise AssertionError("f32 Pallas kernel mismatch vs pure-JAX reference")

    # bf16 MXU-operand path (default; bf16 is MXU-native on v5e/v6e/v7x),
    # f32 accumulation & gating, relaxed tolerance.
    rel_bf16 = ggnn_rel_forward(
        sub_obj_preds, input_ggnn, params, prior_matrix,
        num_rel_cls=num_rel_cls, time_step_num=time_step_num, use_knowledge=True,
        rel_tile=16, matmul_dtype=jnp.bfloat16)
    rel_bf16 = jax.block_until_ready(rel_bf16)
    if not bool(jnp.allclose(rel_bf16, ref, rtol=8e-2, atol=8e-2)):
        raise AssertionError("bf16 Pallas kernel mismatch vs pure-JAX reference")

    print("KERNEL_OK")
</pallas_src>

<mosaic_0001>
module attributes {stable_mosaic.version = 11 : i64} {
  func.func @_ggnn_rel_kernel(%arg0: i32, %arg1: memref<16x192xf32, #tpu.memory_space<vmem>>, %arg2: memref<16x256xf32, #tpu.memory_space<vmem>>, %arg3: memref<512x768xf32, #tpu.memory_space<vmem>>, %arg4: memref<1x512xf32, #tpu.memory_space<vmem>>, %arg5: memref<1x256xf32, #tpu.memory_space<vmem>>, %arg6: memref<256x256xf32, #tpu.memory_space<vmem>>, %arg7: memref<512x256xf32, #tpu.memory_space<vmem>>, %arg8: memref<1x256xf32, #tpu.memory_space<vmem>>, %arg9: memref<256x128xf32, #tpu.memory_space<vmem>>, %arg10: memref<1x128xf32, #tpu.memory_space<vmem>>, %arg11: memref<16x128xf32, #tpu.memory_space<vmem>>) attributes {dimension_semantics = [#tpu.dimension_semantics<parallel>], iteration_bounds = array<i64: 2>, scalar_prefetch = 0 : i64, scratch_operands = 0 : i64, tpu.core_type = #tpu.core_type<tc>, window_params = [{transform_indices = @transform_0, window_bounds = array<i64: 16, 192>}, {transform_indices = @transform_1, window_bounds = array<i64: 16, 256>}, {pipeline_mode = #tpu.pipeline_mode<synchronous>, transform_indices = @transform_2, window_bounds = array<i64: 512, 768>}, {pipeline_mode = #tpu.pipeline_mode<synchronous>, transform_indices = @transform_3, window_bounds = array<i64: 1, 512>}, {pipeline_mode = #tpu.pipeline_mode<synchronous>, transform_indices = @transform_4, window_bounds = array<i64: 1, 256>}, {pipeline_mode = #tpu.pipeline_mode<synchronous>, transform_indices = @transform_5, window_bounds = array<i64: 256, 256>}, {pipeline_mode = #tpu.pipeline_mode<synchronous>, transform_indices = @transform_6, window_bounds = array<i64: 512, 256>}, {pipeline_mode = #tpu.pipeline_mode<synchronous>, transform_indices = @transform_7, window_bounds = array<i64: 1, 256>}, {pipeline_mode = #tpu.pipeline_mode<synchronous>, transform_indices = @transform_8, window_bounds = array<i64: 256, 128>}, {pipeline_mode = #tpu.pipeline_mode<synchronous>, transform_indices = @transform_9, window_bounds = array<i64: 1, 128>}, {transform_indices = @transform_10, window_bounds = array<i64: 16, 128>}]} {
    %c0 = arith.constant 0 : index
    %c0_0 = arith.constant 0 : index
    %0 = vector.load %arg1[%c0, %c0_0] : memref<16x192xf32, #tpu.memory_space<vmem>>, vector<16x192xf32>
    %c0_1 = arith.constant 0 : index
    %c0_2 = arith.constant 0 : index
    %1 = vector.load %arg3[%c0_1, %c0_2] : memref<512x768xf32, #tpu.memory_space<vmem>>, vector<512x768xf32>
    %c0_3 = arith.constant 0 : index
    %c0_4 = arith.constant 0 : index
    %2 = vector.load %arg6[%c0_3, %c0_4] : memref<256x256xf32, #tpu.memory_space<vmem>>, vector<256x256xf32>
    %c0_5 = arith.constant 0 : index
    %c0_6 = arith.constant 0 : index
    %3 = vector.load %arg4[%c0_5, %c0_6] : memref<1x512xf32, #tpu.memory_space<vmem>>, vector<1x512xf32>
    %c0_7 = arith.constant 0 : index
    %c0_8 = arith.constant 0 : index
    %4 = vector.load %arg5[%c0_7, %c0_8] : memref<1x256xf32, #tpu.memory_space<vmem>>, vector<1x256xf32>
    %c0_9 = arith.constant 0 : index
    %c0_10 = arith.constant 0 : index
    %5 = vector.load %arg2[%c0_9, %c0_10] : memref<16x256xf32, #tpu.memory_space<vmem>>, vector<16x256xf32>
    %6 = vector.extract_strided_slice %5 {offsets = [0, 0], sizes = [16, 32], strides = [1, 1]} : vector<16x256xf32> to vector<16x32xf32>
    %7 = vector.extract_strided_slice %5 {offsets = [0, 32], sizes = [16, 32], strides = [1, 1]} : vector<16x256xf32> to vector<16x32xf32>
    %8 = arith.addf %6, %7 : vector<16x32xf32>
    %9 = vector.extract_strided_slice %5 {offsets = [0, 64], sizes = [16, 192], strides = [1, 1]} : vector<16x256xf32> to vector<16x192xf32>
    %10 = arith.mulf %0, %9 : vector<16x192xf32>
    %11 = vector.extract_strided_slice %10 {offsets = [0, 0], sizes = [16, 32], strides = [1, 1]} : vector<16x192xf32> to vector<16x32xf32>
    %12 = vector.extract_strided_slice %10 {offsets = [0, 32], sizes = [16, 32], strides = [1, 1]} : vector<16x192xf32> to vector<16x32xf32>
    %13 = arith.addf %11, %12 : vector<16x32xf32>
    %14 = vector.extract_strided_slice %10 {offsets = [0, 64], sizes = [16, 32], strides = [1, 1]} : vector<16x192xf32> to vector<16x32xf32>
    %15 = arith.addf %13, %14 : vector<16x32xf32>
    %16 = vector.extract_strided_slice %10 {offsets = [0, 96], sizes = [16, 32], strides = [1, 1]} : vector<16x192xf32> to vector<16x32xf32>
    %17 = arith.addf %15, %16 : vector<16x32xf32>
    %18 = vector.extract_strided_slice %10 {offsets = [0, 128], sizes = [16, 32], strides = [1, 1]} : vector<16x192xf32> to vector<16x32xf32>
    %19 = arith.addf %17, %18 : vector<16x32xf32>
    %20 = vector.extract_strided_slice %10 {offsets = [0, 160], sizes = [16, 32], strides = [1, 1]} : vector<16x192xf32> to vector<16x32xf32>
    %21 = arith.addf %19, %20 : vector<16x32xf32>
    %22 = tpu.concatenate %8, %8, %8, %8, %8, %8 in 1 : vector<16x32xf32>, vector<16x32xf32>, vector<16x32xf32>, vector<16x32xf32>, vector<16x32xf32>, vector<16x32xf32> -> vector<16x192xf32>
    %23 = arith.mulf %0, %22 : vector<16x192xf32>
    %24 = tpu.concatenate %21, %21, %23, %5 in 1 : vector<16x32xf32>, vector<16x32xf32>, vector<16x192xf32>, vector<16x256xf32> -> vector<16x512xf32>
    %cst = arith.constant dense<0.000000e+00> : vector<16x768xf32>
    %25 = tpu.matmul %24, %1, %cst {dimension_numbers = #tpu.dot_dimension_numbers<[1], [0], [0], [1], [0, 0, 1, 1], [], []>} : vector<16x512xf32>, vector<512x768xf32>, vector<16x768xf32> -> vector<16x768xf32>
    %26 = vector.extract_strided_slice %25 {offsets = [0, 0], sizes = [16, 512], strides = [1, 1]} : vector<16x768xf32> to vector<16x512xf32>
    %27 = vector.broadcast %3 : vector<1x512xf32> to vector<16x512xf32>
    %28 = arith.addf %26, %27 : vector<16x512xf32>
    %29 = arith.negf %28 : vector<16x512xf32>
    %30 = math.exp %29 : vector<16x512xf32>
    %cst_11 = arith.constant 1.000000e+00 : f32
    %31 = vector.broadcast %cst_11 : f32 to vector<16x512xf32>
    %32 = arith.addf %31, %30 : vector<16x512xf32>
    %33 = arith.divf %31, %32 : vector<16x512xf32>
    %34 = vector.extract_strided_slice %33 {offsets = [0, 0], sizes = [16, 256], strides = [1, 1]} : vector<16x512xf32> to vector<16x256xf32>
    %35 = vector.extract_strided_slice %33 {offsets = [0, 256], sizes = [16, 256], strides = [1, 1]} : vector<16x512xf32> to vector<16x256xf32>
    %36 = vector.extract_strided_slice %25 {offsets = [0, 512], sizes = [16, 256], strides = [1, 1]} : vector<16x768xf32> to vector<16x256xf32>
    %37 = vector.broadcast %4 : vector<1x256xf32> to vector<16x256xf32>
    %38 = arith.addf %36, %37 : vector<16x256xf32>
    %39 = arith.mulf %35, %5 : vector<16x256xf32>
    %cst_12 = arith.constant dense<0.000000e+00> : vector<16x256xf32>
    %40 = tpu.matmul %39, %2, %cst_12 {dimension_numbers = #tpu.dot_dimension_numbers<[1], [0], [0], [1], [0, 0, 1, 1], [], []>} : vector<16x256xf32>, vector<256x256xf32>, vector<16x256xf32> -> vector<16x256xf32>
    %41 = arith.addf %38, %40 : vector<16x256xf32>
    %42 = math.tanh %41 : vector<16x256xf32>
    %cst_13 = arith.constant 1.000000e+00 : f32
    %43 = vector.broadcast %cst_13 : f32 to vector<16x256xf32>
    %44 = arith.subf %43, %34 : vector<16x256xf32>
    %45 = arith.mulf %44, %5 : vector<16x256xf32>
    %46 = arith.mulf %34, %42 : vector<16x256xf32>
    %47 = arith.addf %45, %46 : vector<16x256xf32>
    %48 = vector.extract_strided_slice %47 {offsets = [0, 0], sizes = [16, 32], strides = [1, 1]} : vector<16x256xf32> to vector<16x32xf32>
    %49 = vector.extract_strided_slice %47 {offsets = [0, 32], sizes = [16, 32], strides = [1, 1]} : vector<16x256xf32> to vector<16x32xf32>
    %50 = arith.addf %48, %49 : vector<16x32xf32>
    %51 = vector.extract_strided_slice %47 {offsets = [0, 64], sizes = [16, 192], strides = [1, 1]} : vector<16x256xf32> to vector<16x192xf32>
    %52 = arith.mulf %0, %51 : vector<16x192xf32>
    %53 = vector.extract_strided_slice %52 {offsets = [0, 0], sizes = [16, 32], strides = [1, 1]} : vector<16x192xf32> to vector<16x32xf32>
    %54 = vector.extract_strided_slice %52 {offsets = [0, 32], sizes = [16, 32], strides = [1, 1]} : vector<16x192xf32> to vector<16x32xf32>
    %55 = arith.addf %53, %54 : vector<16x32xf32>
    %56 = vector.extract_strided_slice %52 {offsets = [0, 64], sizes = [16, 32], strides = [1, 1]} : vector<16x192xf32> to vector<16x32xf32>
    %57 = arith.addf %55, %56 : vector<16x32xf32>
    %58 = vector.extract_strided_slice %52 {offsets = [0, 96], sizes = [16, 32], strides = [1, 1]} : vector<16x192xf32> to vector<16x32xf32>
    %59 = arith.addf %57, %58 : vector<16x32xf32>
    %60 = vector.extract_strided_slice %52 {offsets = [0, 128], sizes = [16, 32], strides = [1, 1]} : vector<16x192xf32> to vector<16x32xf32>
    %61 = arith.addf %59, %60 : vector<16x32xf32>
    %62 = vector.extract_strided_slice %52 {offsets = [0, 160], sizes = [16, 32], strides = [1, 1]} : vector<16x192xf32> to vector<16x32xf32>
    %63 = arith.addf %61, %62 : vector<16x32xf32>
    %64 = tpu.concatenate %50, %50, %50, %50, %50, %50 in 1 : vector<16x32xf32>, vector<16x32xf32>, vector<16x32xf32>, vector<16x32xf32>, vector<16x32xf32>, vector<16x32xf32> -> vector<16x192xf32>
    %65 = arith.mulf %0, %64 : vector<16x192xf32>
    %66 = tpu.concatenate %63, %63, %65, %47 in 1 : vector<16x32xf32>, vector<16x32xf32>, vector<16x192xf32>, vector<16x256xf32> -> vector<16x512xf32>
    %cst_14 = arith.constant dense<0.000000e+00> : vector<16x768xf32>
    %67 = tpu.matmul %66, %1, %cst_14 {dimension_numbers = #tpu.dot_dimension_numbers<[1], [0], [0], [1], [0, 0, 1, 1], [], []>} : vector<16x512xf32>, vector<512x768xf32>, vector<16x768xf32> -> vector<16x768xf32>
    %68 = vector.extract_strided_slice %67 {offsets = [0, 0], sizes = [16, 512], strides = [1, 1]} : vector<16x768xf32> to vector<16x512xf32>
    %69 = vector.broadcast %3 : vector<1x512xf32> to vector<16x512xf32>
    %70 = arith.addf %68, %69 : vector<16x512xf32>
    %71 = arith.negf %70 : vector<16x512xf32>
    %72 = math.exp %71 : vector<16x512xf32>
    %cst_15 = arith.constant 1.000000e+00 : f32
    %73 = vector.broadcast %cst_15 : f32 to vector<16x512xf32>
    %74 = arith.addf %73, %72 : vector<16x512xf32>
    %75 = arith.divf %73, %74 : vector<16x512xf32>
    %76 = vector.extract_strided_slice %75 {offsets = [0, 0], sizes = [16, 256], strides = [1, 1]} : vector<16x512xf32> to vector<16x256xf32>
    %77 = vector.extract_strided_slice %75 {offsets = [0, 256], sizes = [16, 256], strides = [1, 1]} : vector<16x512xf32> to vector<16x256xf32>
    %78 = vector.extract_strided_slice %67 {offsets = [0, 512], sizes = [16, 256], strides = [1, 1]} : vector<16x768xf32> to vector<16x256xf32>
    %79 = vector.broadcast %4 : vector<1x256xf32> to vector<16x256xf32>
    %80 = arith.addf %78, %79 : vector<16x256xf32>
    %81 = arith.mulf %77, %47 : vector<16x256xf32>
    %cst_16 = arith.constant dense<0.000000e+00> : vector<16x256xf32>
    %82 = tpu.matmul %81, %2, %cst_16 {dimension_numbers = #tpu.dot_dimension_numbers<[1], [0], [0], [1], [0, 0, 1, 1], [], []>} : vector<16x256xf32>, vector<256x256xf32>, vector<16x256xf32> -> vector<16x256xf32>
    %83 = arith.addf %80, %82 : vector<16x256xf32>
    %84 = math.tanh %83 : vector<16x256xf32>
    %cst_17 = arith.constant 1.000000e+00 : f32
    %85 = vector.broadcast %cst_17 : f32 to vector<16x256xf32>
    %86 = arith.subf %85, %76 : vector<16x256xf32>
    %87 = arith.mulf %86, %47 : vector<16x256xf32>
    %88 = arith.mulf %76, %84 : vector<16x256xf32>
    %89 = arith.addf %87, %88 : vector<16x256xf32>
    %90 = vector.extract_strided_slice %89 {offsets = [0, 0], sizes = [16, 32], strides = [1, 1]} : vector<16x256xf32> to vector<16x32xf32>
    %91 = vector.extract_strided_slice %89 {offsets = [0, 32], sizes = [16, 32], strides = [1, 1]} : vector<16x256xf32> to vector<16x32xf32>
    %92 = arith.addf %90, %91 : vector<16x32xf32>
    %93 = vector.extract_strided_slice %89 {offsets = [0, 64], sizes = [16, 192], strides = [1, 1]} : vector<16x256xf32> to vector<16x192xf32>
    %94 = arith.mulf %0, %93 : vector<16x192xf32>
    %95 = vector.extract_strided_slice %94 {offsets = [0, 0], sizes = [16, 32], strides = [1, 1]} : vector<16x192xf32> to vector<16x32xf32>
    %96 = vector.extract_strided_slice %94 {offsets = [0, 32], sizes = [16, 32], strides = [1, 1]} : vector<16x192xf32> to vector<16x32xf32>
    %97 = arith.addf %95, %96 : vector<16x32xf32>
    %98 = vector.extract_strided_slice %94 {offsets = [0, 64], sizes = [16, 32], strides = [1, 1]} : vector<16x192xf32> to vector<16x32xf32>
    %99 = arith.addf %97, %98 : vector<16x32xf32>
    %100 = vector.extract_strided_slice %94 {offsets = [0, 96], sizes = [16, 32], strides = [1, 1]} : vector<16x192xf32> to vector<16x32xf32>
    %101 = arith.addf %99, %100 : vector<16x32xf32>
    %102 = vector.extract_strided_slice %94 {offsets = [0, 128], sizes = [16, 32], strides = [1, 1]} : vector<16x192xf32> to vector<16x32xf32>
    %103 = arith.addf %101, %102 : vector<16x32xf32>
    %104 = vector.extract_strided_slice %94 {offsets = [0, 160], sizes = [16, 32], strides = [1, 1]} : vector<16x192xf32> to vector<16x32xf32>
    %105 = arith.addf %103, %104 : vector<16x32xf32>
    %106 = tpu.concatenate %92, %92, %92, %92, %92, %92 in 1 : vector<16x32xf32>, vector<16x32xf32>, vector<16x32xf32>, vector<16x32xf32>, vector<16x32xf32>, vector<16x32xf32> -> vector<16x192xf32>
    %107 = arith.mulf %0, %106 : vector<16x192xf32>
    %108 = tpu.concatenate %105, %105, %107, %89 in 1 : vector<16x32xf32>, vector<16x32xf32>, vector<16x192xf32>, vector<16x256xf32> -> vector<16x512xf32>
    %cst_18 = arith.constant dense<0.000000e+00> : vector<16x768xf32>
    %109 = tpu.matmul %108, %1, %cst_18 {dimension_numbers = #tpu.dot_dimension_numbers<[1], [0], [0], [1], [0, 0, 1, 1], [], []>} : vector<16x512xf32>, vector<512x768xf32>, vector<16x768xf32> -> vector<16x768xf32>
    %110 = vector.extract_strided_slice %109 {offsets = [0, 0], sizes = [16, 512], strides = [1, 1]} : vector<16x768xf32> to vector<16x512xf32>
    %111 = vector.broadcast %3 : vector<1x512xf32> to vector<16x512xf32>
    %112 = arith.addf %110, %111 : vector<16x512xf32>
    %113 = arith.negf %112 : vector<16x512xf32>
    %114 = math.exp %113 : vector<16x512xf32>
    %cst_19 = arith.constant 1.000000e+00 : f32
    %115 = vector.broadcast %cst_19 : f32 to vector<16x512xf32>
    %116 = arith.addf %115, %114 : vector<16x512xf32>
    %117 = arith.divf %115, %116 : vector<16x512xf32>
    %118 = vector.extract_strided_slice %117 {offsets = [0, 0], sizes = [16, 256], strides = [1, 1]} : vector<16x512xf32> to vector<16x256xf32>
    %119 = vector.extract_strided_slice %117 {offsets = [0, 256], sizes = [16, 256], strides = [1, 1]} : vector<16x512xf32> to vector<16x256xf32>
    %120 = vector.extract_strided_slice %109 {offsets = [0, 512], sizes = [16, 256], strides = [1, 1]} : vector<16x768xf32> to vector<16x256xf32>
    %121 = vector.broadcast %4 : vector<1x256xf32> to vector<16x256xf32>
    %122 = arith.addf %120, %121 : vector<16x256xf32>
    %123 = arith.mulf %119, %89 : vector<16x256xf32>
    %cst_20 = arith.constant dense<0.000000e+00> : vector<16x256xf32>
    %124 = tpu.matmul %123, %2, %cst_20 {dimension_numbers = #tpu.dot_dimension_numbers<[1], [0], [0], [1], [0, 0, 1, 1], [], []>} : vector<16x256xf32>, vector<256x256xf32>, vector<16x256xf32> -> vector<16x256xf32>
    %125 = arith.addf %122, %124 : vector<16x256xf32>
    %126 = math.tanh %125 : vector<16x256xf32>
    %cst_21 = arith.constant 1.000000e+00 : f32
    %127 = vector.broadcast %cst_21 : f32 to vector<16x256xf32>
    %128 = arith.subf %127, %118 : vector<16x256xf32>
    %129 = arith.mulf %128, %89 : vector<16x256xf32>
    %130 = arith.mulf %118, %126 : vector<16x256xf32>
    %131 = arith.addf %129, %130 : vector<16x256xf32>
    %c0_22 = arith.constant 0 : index
    %c0_23 = arith.constant 0 : index
    %132 = vector.load %arg2[%c0_22, %c0_23] : memref<16x256xf32, #tpu.memory_space<vmem>>, vector<16x256xf32>
    %133 = tpu.concatenate %131, %132 in 1 : vector<16x256xf32>, vector<16x256xf32> -> vector<16x512xf32>
    %c0_24 = arith.constant 0 : index
    %c0_25 = arith.constant 0 : index
    %134 = vector.load %arg7[%c0_24, %c0_25] : memref<512x256xf32, #tpu.memory_space<vmem>>, vector<512x256xf32>
    %cst_26 = arith.constant dense<0.000000e+00> : vector<16x256xf32>
    %135 = tpu.matmul %133, %134, %cst_26 {dimension_numbers = #tpu.dot_dimension_numbers<[1], [0], [0], [1], [0, 0, 1, 1], [], []>} : vector<16x512xf32>, vector<512x256xf32>, vector<16x256xf32> -> vector<16x256xf32>
    %c0_27 = arith.constant 0 : index
    %c0_28 = arith.constant 0 : index
    %136 = vector.load %arg8[%c0_27, %c0_28] : memref<1x256xf32, #tpu.memory_space<vmem>>, vector<1x256xf32>
    %137 = vector.broadcast %136 : vector<1x256xf32> to vector<16x256xf32>
    %138 = arith.addf %135, %137 : vector<16x256xf32>
    %cst_29 = arith.constant 0.000000e+00 : f32
    %139 = vector.broadcast %cst_29 : f32 to vector<16x256xf32>
    %140 = arith.maximumf %138, %139 : vector<16x256xf32>
    %c0_30 = arith.constant 0 : index
    %c0_31 = arith.constant 0 : index
    %141 = vector.load %arg9[%c0_30, %c0_31] : memref<256x128xf32, #tpu.memory_space<vmem>>, vector<256x128xf32>
    %cst_32 = arith.constant dense<0.000000e+00> : vector<16x128xf32>
    %142 = tpu.matmul %140, %141, %cst_32 {dimension_numbers = #tpu.dot_dimension_numbers<[1], [0], [0], [1], [0, 0, 1, 1], [], []>} : vector<16x256xf32>, vector<256x128xf32>, vector<16x128xf32> -> vector<16x128xf32>
    %c0_33 = arith.constant 0 : index
    %c0_34 = arith.constant 0 : index
    %143 = vector.load %arg10[%c0_33, %c0_34] : memref<1x128xf32, #tpu.memory_space<vmem>>, vector<1x128xf32>
    %144 = vector.broadcast %143 : vector<1x128xf32> to vector<16x128xf32>
    %145 = arith.addf %142, %144 : vector<16x128xf32>
    %c0_35 = arith.constant 0 : index
    %c0_36 = arith.constant 0 : index
    %146 = vector.load %arg11[%c0_35, %c0_36] : memref<16x128xf32, #tpu.memory_space<vmem>>, vector<16x128xf32>
    tpu.vector_store %arg11[%c0_35, %c0_36], %145 {strides = array<i32>} : memref<16x128xf32, #tpu.memory_space<vmem>>, vector<16x128xf32>,
    return
  }
  func.func @transform_0(%arg0: i32) -> (i32, i32) {
    %c0_i32 = arith.constant 0 : i32
    %c0_i32_0 = arith.constant 0 : i32
    return %arg0, %c0_i32 : i32, i32
  }
  func.func @transform_1(%arg0: i32) -> (i32, i32) {
    %c0_i32 = arith.constant 0 : i32
    %c0_i32_0 = arith.constant 0 : i32
    return %arg0, %c0_i32 : i32, i32
  }
  func.func @transform_2(%arg0: i32) -> (i32, i32) {
    %c0_i32 = arith.constant 0 : i32
    %c0_i32_0 = arith.constant 0 : i32
    %c0_i32_1 = arith.constant 0 : i32
    return %c0_i32, %c0_i32_0 : i32, i32
  }
  func.func @transform_3(%arg0: i32) -> (i32, i32) {
    %c0_i32 = arith.constant 0 : i32
    %c0_i32_0 = arith.constant 0 : i32
    %c0_i32_1 = arith.constant 0 : i32
    return %c0_i32, %c0_i32_0 : i32, i32
  }
  func.func @transform_4(%arg0: i32) -> (i32, i32) {
    %c0_i32 = arith.constant 0 : i32
    %c0_i32_0 = arith.constant 0 : i32
    %c0_i32_1 = arith.constant 0 : i32
    return %c0_i32, %c0_i32_0 : i32, i32
  }
  func.func @transform_5(%arg0: i32) -> (i32, i32) {
    %c0_i32 = arith.constant 0 : i32
    %c0_i32_0 = arith.constant 0 : i32
    %c0_i32_1 = arith.constant 0 : i32
    return %c0_i32, %c0_i32_0 : i32, i32
  }
  func.func @transform_6(%arg0: i32) -> (i32, i32) {
    %c0_i32 = arith.constant 0 : i32
    %c0_i32_0 = arith.constant 0 : i32
    %c0_i32_1 = arith.constant 0 : i32
    return %c0_i32, %c0_i32_0 : i32, i32
  }
  func.func @transform_7(%arg0: i32) -> (i32, i32) {
    %c0_i32 = arith.constant 0 : i32
    %c0_i32_0 = arith.constant 0 : i32
    %c0_i32_1 = arith.constant 0 : i32
    return %c0_i32, %c0_i32_0 : i32, i32
  }
  func.func @transform_8(%arg0: i32) -> (i32, i32) {
    %c0_i32 = arith.constant 0 : i32
    %c0_i32_0 = arith.constant 0 : i32
    %c0_i32_1 = arith.constant 0 : i32
    return %c0_i32, %c0_i32_0 : i32, i32
  }
  func.func @transform_9(%arg0: i32) -> (i32, i32) {
    %c0_i32 = arith.constant 0 : i32
    %c0_i32_0 = arith.constant 0 : i32
    %c0_i32_1 = arith.constant 0 : i32
    return %c0_i32, %c0_i32_0 : i32, i32
  }
  func.func @transform_10(%arg0: i32) -> (i32, i32) {
    %c0_i32 = arith.constant 0 : i32
    %c0_i32_0 = arith.constant 0 : i32
    return %arg0, %c0_i32 : i32, i32
  }
}

</mosaic_0001>

<llo_original>
// kernel: tpu_custom_call.1
$region0: #{tpu_custom_call.1}
  #allocation0 [shape = 'u32[]', space=smem, size = 0x4, offset = 0x4, fixed_abs, tag = 'smem constant byte address 0x4 - core index']
  #allocation1 [shape = 'u32[144,128]{1,0:T(1,128)}', space=vmem, size = 0x12000, scoped, tag = 'internal scratch']
  %s0 = inlined_call_operand.hbm [shape: f32[32,192], index: 0, kind: input, shape index: {}]
  %s1 = inlined_call_operand.hbm [shape: f32[32,256], index: 1, kind: input, shape index: {}]
  %s2 = inlined_call_operand.hbm [shape: f32[512,768], index: 2, kind: input, shape index: {}]
  %s3 = inlined_call_operand.hbm [shape: f32[1,512], index: 3, kind: input, shape index: {}]
  %s4 = inlined_call_operand.hbm [shape: f32[1,256], index: 4, kind: input, shape index: {}]
  %s5 = inlined_call_operand.hbm [shape: f32[256,256], index: 5, kind: input, shape index: {}]
  %s6 = inlined_call_operand.hbm [shape: f32[512,256], index: 6, kind: input, shape index: {}]
  %s7 = inlined_call_operand.hbm [shape: f32[1,256], index: 7, kind: input, shape index: {}]
  %s8 = inlined_call_operand.hbm [shape: f32[256,128], index: 8, kind: input, shape index: {}]
  %s9 = inlined_call_operand.hbm [shape: f32[1,128], index: 9, kind: input, shape index: {}]
  %s10 = inlined_call_operand.hbm [shape: f32[32,128], index: 10, kind: output, shape index: {}]
  %s11 = sld [smem:[#allocation0]]
  $region113: #{tpu_custom_call.1} parent=0
    _
  %s13 = ssub.s32 1, %s11
  %s14 = scalar_select 0, %s13, %s11
  $region1: #{tpu_custom_call.1} parent=0
    #allocation2 [shape = 'u8[32768]{0}', space=vmem, size = 0x8000, scoped, tag = 'input window, operand 0']
    #allocation3 [shape = 's32[2]{0}', space=sflag, size = 0x8, scoped, tag = 'scoped memory for tpu_custom_call.1']
    #allocation4 [shape = 's32[2]{0}', space=sflag, size = 0x8, scoped, tag = 'scoped memory for tpu_custom_call.1']
    #allocation5 [shape = 'u8[32768]{0}', space=vmem, size = 0x8000, scoped, tag = 'input window, operand 1']
    #allocation6 [shape = 's32[2]{0}', space=sflag, size = 0x8, scoped, tag = 'scoped memory for tpu_custom_call.1']
    #allocation7 [shape = 'u8[1572864]{0}', space=vmem, size = 0x180000, scoped, tag = 'input window, operand 2, single buffered']
    #allocation8 [shape = 'u8[2048]{0}', space=vmem, size = 0x800, scoped, tag = 'input window, operand 3, single buffered']
    #allocation9 [shape = 's32[1]{0}', space=sflag, size = 0x4, scoped, tag = 'scoped memory for tpu_custom_call.1']
    #allocation10 [shape = 'u8[1024]{0}', space=vmem, size = 0x400, scoped, tag = 'input window, operand 4, single buffered']
    #allocation11 [shape = 'u8[262144]{0}', space=vmem, size = 0x40000, scoped, tag = 'input window, operand 5, single buffered']
    #allocation12 [shape = 's32[1]{0}', space=sflag, size = 0x4, scoped, tag = 'scoped memory for tpu_custom_call.1']
    #allocation13 [shape = 'u8[524288]{0}', space=vmem, size = 0x80000, scoped, tag = 'input window, operand 6, single buffered']
    #allocation14 [shape = 'u8[1024]{0}', space=vmem, size = 0x400, scoped, tag = 'input window, operand 7, single buffered']
    #allocation15 [shape = 's32[1]{0}', space=sflag, size = 0x4, scoped, tag = 'scoped memory for tpu_custom_call.1']
    #allocation16 [shape = 'u8[131072]{0}', space=vmem, size = 0x20000, scoped, tag = 'input window, operand 8, single buffered']
    #allocation17 [shape = 'u8[512]{0}', space=vmem, size = 0x400, scoped, tag = 'input window, operand 9, single buffered']
    #allocation18 [shape = 's32[1]{0}', space=sflag, size = 0x4, scoped, tag = 'scoped memory for tpu_custom_call.1']
    #allocation19 [shape = 'u8[16384]{0}', space=vmem, size = 0x4000, scoped, tag = 'output window, operand 0']
    %15 = vsyncpa [#allocation3], 0
    %s16 = scalar_lea.sflag [#allocation3], 1
    %17 = vsyncpa %s16, 0
    %18 = vsyncpa [#allocation6], 0
    %s19 = scalar_lea.sflag [#allocation6], 1
    %20 = vsyncpa %s19, 0
    %21 = vsyncpa [#allocation9], 0
    %22 = vsyncpa [#allocation12], 0
    %23 = vsyncpa [#allocation15], 0
    %24 = vsyncpa [#allocation18], 0
    %25 = vsyncpa [#allocation4], 0
    %s26 = scalar_lea.sflag [#allocation4], 1
    %27 = vsyncpa %s26, 0
    loop: start=0, step=1, limit=4
    $region2: #{tpu_custom_call.1} parent=1 // loop_pre_header
      _
    $region3: #{tpu_custom_call.1} parent=1 // loop_header
      %s29 = sphi 0, %s33
      %p30 = scmp.ge.s32.totalorder %s29, 4
      %s39 = sphi 0, %s41
      %s42 = sphi 0, %s39
      %s43 = sphi 0, %s42
      %s59 = sphi 0, %s43
      %s65 = sphi 0, %s67
      %s68 = sphi 0, %s65
      %s69 = sphi 0, %s68
      %s85 = sphi 0, %s69
      %s89 = sphi 0, %s89
      %s91 = sphi 0, %s89
      %s92 = sphi 0, %s91
      %s106 = sphi 0, %s92
      %s110 = sphi 0, %s110
      %s112 = sphi 0, %s110
      %s113 = sphi 0, %s112
      %s127 = sphi 0, %s113
      %s131 = sphi 0, %s131
      %s133 = sphi 0, %s131
      %s134 = sphi 0, %s133
      %s148 = sphi 0, %s134
      %s152 = sphi 0, %s152
      %s154 = sphi 0, %s152
      %s155 = sphi 0, %s154
      %s169 = sphi 0, %s155
      %s173 = sphi 0, %s173
      %s175 = sphi 0, %s173
      %s176 = sphi 0, %s175
      %s190 = sphi 0, %s176
      %s194 = sphi 0, %s194
      %s196 = sphi 0, %s194
      %s197 = sphi 0, %s196
      %s211 = sphi 0, %s197
      %s215 = sphi 0, %s215
      %s217 = sphi 0, %s215
      %s218 = sphi 0, %s217
      %s232 = sphi 0, %s218
      %s236 = sphi 0, %s236
      %s238 = sphi 0, %s236
      %s239 = sphi 0, %s238
      %s253 = sphi 0, %s239
      %s259 = sphi 0, %s261
      %s262 = sphi 0, %s259
      %s263 = sphi 0, %s262
      %s279 = sphi 0, %s263
    $region4: #{tpu_custom_call.1} parent=1 // loop_header_branch
      %32 = sbr.rel (%p30) target = $region8
    $region5: #{tpu_custom_call.1} parent=1 // loop_body
      %s34 = ssub.s32 %s29, 1
      %s35 = ssub.s32 %s29, 2
      %s36 = sadd.s32 %s29, 1
      %s37 = ssub.s32 %s29, %s36
      %p38 = scmp.eq.s32.totalorder %s37, 0
      %s40 = sadd.s32 %s39, 1
      %s41 = scalar_select %p38, %s39, %s40
      %p44 = pneg %p38
      %p45 = scmp.eq.s32.totalorder %s29, 1
      %p46 = por %p44, %p45
      %p47 = scmp.ne.s32.totalorder %s39, %s42
      %p48 = scmp.eq.s32.totalorder %s29, 0
      %p49 = por %p47, %p48
      %p50 = scmp.ne.s32.totalorder %s39, %s42
      %p51 = scmp.eq.s32.totalorder %s34, 1
      %p52 = por %p50, %p51
      %p53 = scmp.ne.s32.totalorder %s42, %s43
      %p54 = scmp.eq.s32.totalorder %s34, 0
      %p55 = por %p53, %p54
      %p56 = scmp.ne.s32.totalorder %s42, %s43
      %p57 = scmp.eq.s32.totalorder %s35, 1
      %p58 = por %p56, %p57
      %p60 = scmp.ne.s32.totalorder %s43, %s59
      %p61 = scmp.eq.s32.totalorder %s35, 0
      %p62 = por %p60, %p61
      %s63 = ssub.s32 %s29, %s36
      %p64 = scmp.eq.s32.totalorder %s63, 0
      %s66 = sadd.s32 %s65, 1
      %s67 = scalar_select %p64, %s65, %s66
      %p70 = pneg %p64
      %p71 = scmp.eq.s32.totalorder %s29, 1
      %p72 = por %p70, %p71
      %p73 = scmp.ne.s32.totalorder %s65, %s68
      %p74 = scmp.eq.s32.totalorder %s29, 0
      %p75 = por %p73, %p74
      %p76 = scmp.ne.s32.totalorder %s65, %s68
      %p77 = scmp.eq.s32.totalorder %s34, 1
      %p78 = por %p76, %p77
      %p79 = scmp.ne.s32.totalorder %s68, %s69
      %p80 = scmp.eq.s32.totalorder %s34, 0
      %p81 = por %p79, %p80
      %p82 = scmp.ne.s32.totalorder %s68, %s69
      %p83 = scmp.eq.s32.totalorder %s35, 1
      %p84 = por %p82, %p83
      %p86 = scmp.ne.s32.totalorder %s69, %s85
      %p87 = scmp.eq.s32.totalorder %s35, 0
      %p88 = por %p86, %p87
      %s90 = sadd.s32 %s89, 1
      %p93 = scmp.eq.s32.totalorder %s29, 1
      %p94 = scmp.ne.s32.totalorder %s89, %s91
      %p95 = scmp.eq.s32.totalorder %s29, 0
      %p96 = por %p94, %p95
      %p97 = scmp.ne.s32.totalorder %s89, %s91
      %p98 = scmp.eq.s32.totalorder %s34, 1
      %p99 = por %p97, %p98
      %p100 = scmp.ne.s32.totalorder %s91, %s92
      %p101 = scmp.eq.s32.totalorder %s34, 0
      %p102 = por %p100, %p101
      %p103 = scmp.ne.s32.totalorder %s91, %s92
      %p104 = scmp.eq.s32.totalorder %s35, 1
      %p105 = por %p103, %p104
      %p107 = scmp.ne.s32.totalorder %s92, %s106
      %p108 = scmp.eq.s32.totalorder %s35, 0
      %p109 = por %p107, %p108
      %s111 = sadd.s32 %s110, 1
      %p114 = scmp.eq.s32.totalorder %s29, 1
      %p115 = scmp.ne.s32.totalorder %s110, %s112
      %p116 = scmp.eq.s32.totalorder %s29, 0
      %p117 = por %p115, %p116
      %p118 = scmp.ne.s32.totalorder %s110, %s112
      %p119 = scmp.eq.s32.totalorder %s34, 1
      %p120 = por %p118, %p119
      %p121 = scmp.ne.s32.totalorder %s112, %s113
      %p122 = scmp.eq.s32.totalorder %s34, 0
      %p123 = por %p121, %p122
      %p124 = scmp.ne.s32.totalorder %s112, %s113
      %p125 = scmp.eq.s32.totalorder %s35, 1
      %p126 = por %p124, %p125
      %p128 = scmp.ne.s32.totalorder %s113, %s127
      %p129 = scmp.eq.s32.totalorder %s35, 0
      %p130 = por %p128, %p129
      %s132 = sadd.s32 %s131, 1
      %p135 = scmp.eq.s32.totalorder %s29, 1
      %p136 = scmp.ne.s32.totalorder %s131, %s133
      %p137 = scmp.eq.s32.totalorder %s29, 0
      %p138 = por %p136, %p137
      %p139 = scmp.ne.s32.totalorder %s131, %s133
      %p140 = scmp.eq.s32.totalorder %s34, 1
      %p141 = por %p139, %p140
      %p142 = scmp.ne.s32.totalorder %s133, %s134
      %p143 = scmp.eq.s32.totalorder %s34, 0
      %p144 = por %p142, %p143
      %p145 = scmp.ne.s32.totalorder %s133, %s134
      %p146 = scmp.eq.s32.totalorder %s35, 1
      %p147 = por %p145, %p146
      %p149 = scmp.ne.s32.totalorder %s134, %s148
      %p150 = scmp.eq.s32.totalorder %s35, 0
      %p151 = por %p149, %p150
      %s153 = sadd.s32 %s152, 1
      %p156 = scmp.eq.s32.totalorder %s29, 1
      %p157 = scmp.ne.s32.totalorder %s152, %s154
      %p158 = scmp.eq.s32.totalorder %s29, 0
      %p159 = por %p157, %p158
      %p160 = scmp.ne.s32.totalorder %s152, %s154
      %p161 = scmp.eq.s32.totalorder %s34, 1
      %p162 = por %p160, %p161
      %p163 = scmp.ne.s32.totalorder %s154, %s155
      %p164 = scmp.eq.s32.totalorder %s34, 0
      %p165 = por %p163, %p164
      %p166 = scmp.ne.s32.totalorder %s154, %s155
      %p167 = scmp.eq.s32.totalorder %s35, 1
      %p168 = por %p166, %p167
      %p170 = scmp.ne.s32.totalorder %s155, %s169
      %p171 = scmp.eq.s32.totalorder %s35, 0
      %p172 = por %p170, %p171
      %s174 = sadd.s32 %s173, 1
      %p177 = scmp.eq.s32.totalorder %s29, 1
      %p178 = scmp.ne.s32.totalorder %s173, %s175
      %p179 = scmp.eq.s32.totalorder %s29, 0
      %p180 = por %p178, %p179
      %p181 = scmp.ne.s32.totalorder %s173, %s175
      %p182 = scmp.eq.s32.totalorder %s34, 1
      %p183 = por %p181, %p182
      %p184 = scmp.ne.s32.totalorder %s175, %s176
      %p185 = scmp.eq.s32.totalorder %s34, 0
      %p186 = por %p184, %p185
      %p187 = scmp.ne.s32.totalorder %s175, %s176
      %p188 = scmp.eq.s32.totalorder %s35, 1
      %p189 = por %p187, %p188
      %p191 = scmp.ne.s32.totalorder %s176, %s190
      %p192 = scmp.eq.s32.totalorder %s35, 0
      %p193 = por %p191, %p192
      %s195 = sadd.s32 %s194, 1
      %p198 = scmp.eq.s32.totalorder %s29, 1
      %p199 = scmp.ne.s32.totalorder %s194, %s196
      %p200 = scmp.eq.s32.totalorder %s29, 0
      %p201 = por %p199, %p200
      %p202 = scmp.ne.s32.totalorder %s194, %s196
      %p203 = scmp.eq.s32.totalorder %s34, 1
      %p204 = por %p202, %p203
      %p205 = scmp.ne.s32.totalorder %s196, %s197
      %p206 = scmp.eq.s32.totalorder %s34, 0
      %p207 = por %p205, %p206
      %p208 = scmp.ne.s32.totalorder %s196, %s197
      %p209 = scmp.eq.s32.totalorder %s35, 1
      %p210 = por %p208, %p209
      %p212 = scmp.ne.s32.totalorder %s197, %s211
      %p213 = scmp.eq.s32.totalorder %s35, 0
      %p214 = por %p212, %p213
      %s216 = sadd.s32 %s215, 1
      %p219 = scmp.eq.s32.totalorder %s29, 1
      %p220 = scmp.ne.s32.totalorder %s215, %s217
      %p221 = scmp.eq.s32.totalorder %s29, 0
      %p222 = por %p220, %p221
      %p223 = scmp.ne.s32.totalorder %s215, %s217
      %p224 = scmp.eq.s32.totalorder %s34, 1
      %p225 = por %p223, %p224
      %p226 = scmp.ne.s32.totalorder %s217, %s218
      %p227 = scmp.eq.s32.totalorder %s34, 0
      %p228 = por %p226, %p227
      %p229 = scmp.ne.s32.totalorder %s217, %s218
      %p230 = scmp.eq.s32.totalorder %s35, 1
      %p231 = por %p229, %p230
      %p233 = scmp.ne.s32.totalorder %s218, %s232
      %p234 = scmp.eq.s32.totalorder %s35, 0
      %p235 = por %p233, %p234
      %s237 = sadd.s32 %s236, 1
      %p240 = scmp.eq.s32.totalorder %s29, 1
      %p241 = scmp.ne.s32.totalorder %s236, %s238
      %p242 = scmp.eq.s32.totalorder %s29, 0
      %p243 = por %p241, %p242
      %p244 = scmp.ne.s32.totalorder %s236, %s238
      %p245 = scmp.eq.s32.totalorder %s34, 1
      %p246 = por %p244, %p245
      %p247 = scmp.ne.s32.totalorder %s238, %s239
      %p248 = scmp.eq.s32.totalorder %s34, 0
      %p249 = por %p247, %p248
      %p250 = scmp.ne.s32.totalorder %s238, %s239
      %p251 = scmp.eq.s32.totalorder %s35, 1
      %p252 = por %p250, %p251
      %p254 = scmp.ne.s32.totalorder %s239, %s253
      %p255 = scmp.eq.s32.totalorder %s35, 0
      %p256 = por %p254, %p255
      %s257 = ssub.s32 %s29, %s36
      %p258 = scmp.eq.s32.totalorder %s257, 0
      %s260 = sadd.s32 %s259, 1
      %s261 = scalar_select %p258, %s259, %s260
      %p264 = pneg %p258
      %p265 = scmp.eq.s32.totalorder %s29, 1
      %p266 = por %p264, %p265
      %p267 = scmp.ne.s32.totalorder %s259, %s262
      %p268 = scmp.eq.s32.totalorder %s29, 0
      %p269 = por %p267, %p268
      %p270 = scmp.ne.s32.totalorder %s259, %s262
      %p271 = scmp.eq.s32.totalorder %s34, 1
      %p272 = por %p270, %p271
      %p273 = scmp.ne.s32.totalorder %s262, %s263
      %p274 = scmp.eq.s32.totalorder %s34, 0
      %p275 = por %p273, %p274
      %p276 = scmp.ne.s32.totalorder %s262, %s263
      %p277 = scmp.eq.s32.totalorder %s35, 1
      %p278 = por %p276, %p277
      %p280 = scmp.ne.s32.totalorder %s263, %s279
      %p281 = scmp.eq.s32.totalorder %s35, 0
      %p282 = por %p280, %p281
      %p283 = scmp.le.s32.totalorder 1, %s29
      %p284 = scmp.lt.s32.totalorder %s29, 3
      %p285 = pnand %p283, %p284
      %p286 = pneg %p285
      // Predicated region
      $region9: #{tpu_custom_call.1} parent=5 // pred_check
        _
      $region10: #{tpu_custom_call.1} parent=5 // pred_check_branch
        %288 = sbr.rel (%p285) target = $region12
      $region11: #{tpu_custom_call.1} parent=5 // pred_region
        %s289 = ssub.s32 %s29, 1
        // Predicated region
        $region13: #{tpu_custom_call.1} parent=11 // pred_check
          %p290 = pneg %p102
        $region14: #{tpu_custom_call.1} parent=11 // pred_check_branch
          %292 = sbr.rel (%p290) target = $region16
        $region15: #{tpu_custom_call.1} parent=11 // pred_region
          %s294 = ssub.s32 49152, 49152
          %295 = vsyncadd [#allocation6], %s294
          %s296 = sshll.u32 [#allocation7], 4
          %s297 = int_to_ptr.vmem [resolvable:$true] %s296
          %302 = dma.hbm_to_vmem [thread:$0]  %s2, 49152, %s297, [#allocation6], 768, 768, 48
        $region16: #{tpu_custom_call.1} parent=11 // pred_fallthru
          _
        // Predicated region
        $region17: #{tpu_custom_call.1} parent=11 // pred_check
          %p303 = pneg %p123
        $region18: #{tpu_custom_call.1} parent=11 // pred_check_branch
          %305 = sbr.rel (%p303) target = $region20
        $region19: #{tpu_custom_call.1} parent=11 // pred_region
          %s307 = ssub.s32 64, 64
          %308 = vsyncadd [#allocation9], %s307
          %s310 = sshll.u32 [#allocation8], 4
          %s311 = int_to_ptr.vmem [resolvable:$true] %s310
          %313 = dma.hbm_to_vmem [thread:$0]  %s3, 64, %s311, [#allocation9]
        $region20: #{tpu_custom_call.1} parent=11 // pred_fallthru
          _
        // Predicated region
        $region21: #{tpu_custom_call.1} parent=11 // pred_check
          %p314 = pneg %p144
        $region22: #{tpu_custom_call.1} parent=11 // pred_check_branch
          %316 = sbr.rel (%p314) target = $region24
        $region23: #{tpu_custom_call.1} parent=11 // pred_region
          %s318 = ssub.s32 32, 32
          %319 = vsyncadd [#allocation9], %s318
          %s321 = sshll.u32 [#allocation10], 4
          %s322 = int_to_ptr.vmem [resolvable:$true] %s321
          %324 = dma.hbm_to_vmem [thread:$0]  %s4, 32, %s322, [#allocation9]
        $region24: #{tpu_custom_call.1} parent=11 // pred_fallthru
          _
        // Predicated region
        $region25: #{tpu_custom_call.1} parent=11 // pred_check
          %p325 = pneg %p165
        $region26: #{tpu_custom_call.1} parent=11 // pred_check_branch
          %327 = sbr.rel (%p325) target = $region28
        $region27: #{tpu_custom_call.1} parent=11 // pred_region
          %s329 = ssub.s32 8192, 8192
          %330 = vsyncadd [#allocation12], %s329
          %s331 = sshll.u32 [#allocation11], 4
          %s332 = int_to_ptr.vmem [resolvable:$true] %s331
          %337 = dma.hbm_to_vmem [thread:$0]  %s5, 8192, %s332, [#allocation12], 256, 256, 16
        $region28: #{tpu_custom_call.1} parent=11 // pred_fallthru
          _
        // Predicated region
        $region29: #{tpu_custom_call.1} parent=11 // pred_check
          %p338 = pneg %p186
        $region30: #{tpu_custom_call.1} parent=11 // pred_check_branch
          %340 = sbr.rel (%p338) target = $region32
        $region31: #{tpu_custom_call.1} parent=11 // pred_region
          %s342 = ssub.s32 16384, 16384
          %343 = vsyncadd [#allocation12], %s342
          %s344 = sshll.u32 [#allocation13], 4
          %s345 = int_to_ptr.vmem [resolvable:$true] %s344
          %350 = dma.hbm_to_vmem [thread:$0]  %s6, 16384, %s345, [#allocation12], 256, 256, 16
        $region32: #{tpu_custom_call.1} parent=11 // pred_fallthru
          _
        // Predicated region
        $region33: #{tpu_custom_call.1} parent=11 // pred_check
          %p351 = pneg %p207
        $region34: #{tpu_custom_call.1} parent=11 // pred_check_branch
          %353 = sbr.rel (%p351) target = $region36
        $region35: #{tpu_custom_call.1} parent=11 // pred_region
          %s355 = ssub.s32 32, 32
          %356 = vsyncadd [#allocation15], %s355
          %s358 = sshll.u32 [#allocation14], 4
          %s359 = int_to_ptr.vmem [resolvable:$true] %s358
          %361 = dma.hbm_to_vmem [thread:$0]  %s7, 32, %s359, [#allocation15]
        $region36: #{tpu_custom_call.1} parent=11 // pred_fallthru
          _
        // Predicated region
        $region37: #{tpu_custom_call.1} parent=11 // pred_check
          %p362 = pneg %p228
        $region38: #{tpu_custom_call.1} parent=11 // pred_check_branch
          %364 = sbr.rel (%p362) target = $region40
        $region39: #{tpu_custom_call.1} parent=11 // pred_region
          %s366 = ssub.s32 4096, 4096
          %367 = vsyncadd [#allocation15], %s366
          %s368 = sshll.u32 [#allocation16], 4
          %s369 = int_to_ptr.vmem [resolvable:$true] %s368
          %374 = dma.hbm_to_vmem [thread:$0]  %s8, 4096, %s369, [#allocation15], 128, 128, 8
        $region40: #{tpu_custom_call.1} parent=11 // pred_fallthru
          _
        // Predicated region
        $region41: #{tpu_custom_call.1} parent=11 // pred_check
          %p375 = pneg %p249
        $region42: #{tpu_custom_call.1} parent=11 // pred_check_branch
          %377 = sbr.rel (%p375) target = $region44
        $region43: #{tpu_custom_call.1} parent=11 // pred_region
          %s379 = ssub.s32 16, 16
          %380 = vsyncadd [#allocation18], %s379
          %s382 = sshll.u32 [#allocation17], 4
          %s383 = int_to_ptr.vmem [resolvable:$true] %s382
          %385 = dma.hbm_to_vmem [thread:$0]  %s9, 16, %s383, [#allocation18]
        $region44: #{tpu_custom_call.1} parent=11 // pred_fallthru
          _
      $region12: #{tpu_custom_call.1} parent=5 // pred_fallthru
        _
      %p386 = scmp.lt.s32.totalorder %s29, 2
      // Predicated region
      $region45: #{tpu_custom_call.1} parent=5 // pred_check
        %p387 = pneg %p386
      $region46: #{tpu_custom_call.1} parent=5 // pred_check_branch
        %389 = sbr.rel (%p387) target = $region48
      $region47: #{tpu_custom_call.1} parent=5 // pred_region
        // Predicated region
        $region49: #{tpu_custom_call.1} parent=47 // pred_check
          %p390 = pneg %p49
        $region50: #{tpu_custom_call.1} parent=47 // pred_check_branch
          %392 = sbr.rel (%p390) target = $region52
        $region51: #{tpu_custom_call.1} parent=47 // pred_region
          %s393 = sand.u32 %s39, 1
          %s394 = scalar_lea.sflag [#allocation3], %s393
          %s395 = sand.u32 %s39, 1
          %s396 = smul.addr %s395, 32
          %s397 = scalar_lea.vmem [#allocation2], %s396
          %s398 = smul.u32 2, %s29
          %s400 = ssub.s32 512, 512
          %401 = vsyncadd %s394, %s400
          %s402 = smul.addr %s398, 2
          %s403 = smul.addr %s402, 128
          %s404 = scalar_lea.hbm %s0, %s403
          %s405 = sshll.u32 %s397, 4
          %s406 = int_to_ptr.vmem [resolvable:$true] %s405
          %411 = dma.hbm_to_vmem [thread:$0]  %s404, 512, %s406, %s394, 256, 256, 16
        $region52: #{tpu_custom_call.1} parent=47 // pred_fallthru
          _
        // Predicated region
        $region53: #{tpu_custom_call.1} parent=47 // pred_check
          %p412 = pneg %p75
        $region54: #{tpu_custom_call.1} parent=47 // pred_check_branch
          %414 = sbr.rel (%p412) target = $region56
        $region55: #{tpu_custom_call.1} parent=47 // pred_region
          %s415 = sand.u32 %s29, 1
          %s416 = scalar_lea.sflag [#allocation6], %s415
          %s417 = sand.u32 %s65, 1
          %s418 = smul.addr %s417, 32
          %s419 = scalar_lea.vmem [#allocation5], %s418
          %s420 = smul.u32 2, %s29
          %s422 = ssub.s32 512, 512
          %423 = vsyncadd %s416, %s422
          %s424 = smul.addr %s420, 2
          %s425 = smul.addr %s424, 128
          %s426 = scalar_lea.hbm %s1, %s425
          %s427 = sshll.u32 %s419, 4
          %s428 = int_to_ptr.vmem [resolvable:$true] %s427
          %433 = dma.hbm_to_vmem [thread:$0]  %s426, 512, %s428, %s416, 256, 256, 16
        $region56: #{tpu_custom_call.1} parent=47 // pred_fallthru
          _
      $region48: #{tpu_custom_call.1} parent=5 // pred_fallthru
        _
      %p434 = scmp.le.s32.totalorder 1, %s29
      %p435 = scmp.lt.s32.totalorder %s29, 3
      %p436 = pnand %p434, %p435
      %p437 = pneg %p436
      // Predicated region
      $region57: #{tpu_custom_call.1} parent=5 // pred_check
        _
      $region58: #{tpu_custom_call.1} parent=5 // pred_check_branch
        %439 = sbr.rel (%p436) target = $region60
      $region59: #{tpu_custom_call.1} parent=5 // pred_region
        %s440 = ssub.s32 %s29, 1
        %s441 = sand.u32 %s42, 1
        %s442 = scalar_lea.sflag [#allocation3], %s441
        %s443 = sand.u32 %s42, 1
        %s444 = smul.addr %s443, 32
        %s445 = scalar_lea.vmem [#allocation2], %s444
        // Predicated region
        $region61: #{tpu_custom_call.1} parent=59 // pred_check
          %p446 = pneg %p55
        $region62: #{tpu_custom_call.1} parent=59 // pred_check_branch
          %448 = sbr.rel (%p446) target = $region64
        $region63: #{tpu_custom_call.1} parent=59 // pred_region
          %449 = dma.done %s442, 512
        $region64: #{tpu_custom_call.1} parent=59 // pred_fallthru
          _
        %s450 = sand.u32 %s34, 1
        %s451 = scalar_lea.sflag [#allocation6], %s450
        %s452 = sand.u32 %s68, 1
        %s453 = smul.addr %s452, 32
        %s454 = scalar_lea.vmem [#allocation5], %s453
        // Predicated region
        $region65: #{tpu_custom_call.1} parent=59 // pred_check
          %p455 = pneg %p81
        $region66: #{tpu_custom_call.1} parent=59 // pred_check_branch
          %457 = sbr.rel (%p455) target = $region68
        $region67: #{tpu_custom_call.1} parent=59 // pred_region
          %458 = dma.done %s451, 512
        $region68: #{tpu_custom_call.1} parent=59 // pred_fallthru
          _
        // Predicated region
        $region69: #{tpu_custom_call.1} parent=59 // pred_check
          %p459 = pneg %p102
        $region70: #{tpu_custom_call.1} parent=59 // pred_check_branch
          %461 = sbr.rel (%p459) target = $region72
        $region71: #{tpu_custom_call.1} parent=59 // pred_region
          %462 = dma.done [#allocation6], 49152
        $region72: #{tpu_custom_call.1} parent=59 // pred_fallthru
          _
        // Predicated region
        $region73: #{tpu_custom_call.1} parent=59 // pred_check
          %p463 = pneg %p123
        $region74: #{tpu_custom_call.1} parent=59 // pred_check_branch
          %465 = sbr.rel (%p463) target = $region76
        $region75: #{tpu_custom_call.1} parent=59 // pred_region
          %466 = dma.done [#allocation9], 64
        $region76: #{tpu_custom_call.1} parent=59 // pred_fallthru
          _
        // Predicated region
        $region77: #{tpu_custom_call.1} parent=59 // pred_check
          %p467 = pneg %p144
        $region78: #{tpu_custom_call.1} parent=59 // pred_check_branch
          %469 = sbr.rel (%p467) target = $region80
        $region79: #{tpu_custom_call.1} parent=59 // pred_region
          %470 = dma.done [#allocation9], 32
        $region80: #{tpu_custom_call.1} parent=59 // pred_fallthru
          _
        // Predicated region
        $region81: #{tpu_custom_call.1} parent=59 // pred_check
          %p471 = pneg %p165
        $region82: #{tpu_custom_call.1} parent=59 // pred_check_branch
          %473 = sbr.rel (%p471) target = $region84
        $region83: #{tpu_custom_call.1} parent=59 // pred_region
          %474 = dma.done [#allocation12], 8192
        $region84: #{tpu_custom_call.1} parent=59 // pred_fallthru
          _
        // Predicated region
        $region85: #{tpu_custom_call.1} parent=59 // pred_check
          %p475 = pneg %p186
        $region86: #{tpu_custom_call.1} parent=59 // pred_check_branch
          %477 = sbr.rel (%p475) target = $region88
        $region87: #{tpu_custom_call.1} parent=59 // pred_region
          %478 = dma.done [#allocation12], 16384
        $region88: #{tpu_custom_call.1} parent=59 // pred_fallthru
          _
        // Predicated region
        $region89: #{tpu_custom_call.1} parent=59 // pred_check
          %p479 = pneg %p207
        $region90: #{tpu_custom_call.1} parent=59 // pred_check_branch
          %481 = sbr.rel (%p479) target = $region92
        $region91: #{tpu_custom_call.1} parent=59 // pred_region
          %482 = dma.done [#allocation15], 32
        $region92: #{tpu_custom_call.1} parent=59 // pred_fallthru
          _
        // Predicated region
        $region93: #{tpu_custom_call.1} parent=59 // pred_check
          %p483 = pneg %p228
        $region94: #{tpu_custom_call.1} parent=59 // pred_check_branch
          %485 = sbr.rel (%p483) target = $region96
        $region95: #{tpu_custom_call.1} parent=59 // pred_region
          %486 = dma.done [#allocation15], 4096
        $region96: #{tpu_custom_call.1} parent=59 // pred_fallthru
          _
        // Predicated region
        $region97: #{tpu_custom_call.1} parent=59 // pred_check
          %p487 = pneg %p249
        $region98: #{tpu_custom_call.1} parent=59 // pred_check_branch
          %489 = sbr.rel (%p487) target = $region100
        $region99: #{tpu_custom_call.1} parent=59 // pred_region
          %490 = dma.done [#allocation18], 16
        $region100: #{tpu_custom_call.1} parent=59 // pred_fallthru
          _
        %s491 = sand.u32 %s42, 1
        %s492 = scalar_lea.sflag [#allocation3], %s491
        %s493 = sand.u32 %s42, 1
        %s494 = smul.addr %s493, 32
        %s495 = scalar_lea.vmem [#allocation2], %s494
        %p496 = pneg %p55
        %p497 = pneg %p52
        %s498 = sand.u32 %s34, 1
        %s499 = scalar_lea.sflag [#allocation6], %s498
        %s500 = sand.u32 %s68, 1
        %s501 = smul.addr %s500, 32
        %s502 = scalar_lea.vmem [#allocation5], %s501
        %p503 = pneg %p81
        %p504 = pneg %p78
        %p505 = pneg %p102
        %p506 = pneg %p99
        %p507 = pneg %p123
        %p508 = pneg %p120
        %p509 = pneg %p144
        %p510 = pneg %p141
        %p511 = pneg %p165
        %p512 = pneg %p162
        %p513 = pneg %p186
        %p514 = pneg %p183
        %p515 = pneg %p207
        %p516 = pneg %p204
        %p517 = pneg %p228
        %p518 = pneg %p225
        %p519 = pneg %p249
        %p520 = pneg %p246
        %p521 = pneg %p275
        %p522 = pneg %p272
        %s523 = sand.u32 %s262, 1
        %s524 = scalar_lea.sflag [#allocation4], %s523
        %s525 = sand.u32 %s262, 1
        %s526 = smul.addr %s525, 16
        %s527 = scalar_lea.vmem [#allocation19], %s526
        %s528 = smul.u32 2, %s34
        %s529 = smul.u32 2, %s34
        %s530 = smul.u32 2, %s34
        %v531 = vld [vmem:[%s445] sm:$0xff]
        %v532 = vld [vmem:[%s445 + $0x8] sm:$0xff]
        %v533 = vld [vmem:[%s445 + $0x10] sm:$0xff]
        %v534 = vld [vmem:[%s445 + $0x18] sm:$0xff]
        %v535 = vld [vmem:[#allocation7] sm:$0xff]
        %v536 = vld [vmem:[#allocation7 + $0x8] sm:$0xff]
        %v537 = vld [vmem:[#allocation7 + $0x10] sm:$0xff]
        %v538 = vld [vmem:[#allocation7 + $0x18] sm:$0xff]
        %v539 = vld [vmem:[#allocation7 + $0x20] sm:$0xff]
        %v540 = vld [vmem:[#allocation7 + $0x28] sm:$0xff]
        %v541 = vld [vmem:[#allocation7 + $0x30] sm:$0xff]
        %v542 = vld [vmem:[#allocation7 + $0x38] sm:$0xff]
        %v543 = vld [vmem:[#allocation7 + $0x40] sm:$0xff]
        %v544 = vld [vmem:[#allocation7 + $0x48] sm:$0xff]
        %v545 = vld [vmem:[#allocation7 + $0x50] sm:$0xff]
        %v546 = vld [vmem:[#allocation7 + $0x58] sm:$0xff]
        %v547 = vld [vmem:[#allocation7 + $0x60] sm:$0xff]
        %v548 = vld [vmem:[#allocation7 + $0x68] sm:$0xff]
        %v549 = vld [vmem:[#allocation7 + $0x70] sm:$0xff]
        %v550 = vld [vmem:[#allocation7 + $0x78] sm:$0xff]
        %v551 = vld [vmem:[#allocation7 + $0x80] sm:$0xff]
        %v552 = vld [vmem:[#allocation7 + $0x88] sm:$0xff]
        %v553 = vld [vmem:[#allocation7 + $0x90] sm:$0xff]
        %v554 = vld [vmem:[#allocation7 + $0x98] sm:$0xff]
        %v555 = vld [vmem:[#allocation7 + $0xa0] sm:$0xff]
        %v556 = vld [vmem:[#allocation7 + $0xa8] sm:$0xff]
        %v557 = vld [vmem:[#allocation7 + $0xb0] sm:$0xff]
        %v558 = vld [vmem:[#allocation7 + $0xb8] sm:$0xff]
        %v559 = vld [vmem:[#allocation7 + $0xc0] sm:$0xff]
        %v560 = vld [vmem:[#allocation7 + $0xc8] sm:$0xff]
        %v561 = vld [vmem:[#allocation7 + $0xd0] sm:$0xff]
        %v562 = vld [vmem:[#allocation7 + $0xd8] sm:$0xff]
        %v563 = vld [vmem:[#allocation7 + $0xe0] sm:$0xff]
        %v564 = vld [vmem:[#allocation7 + $0xe8] sm:$0xff]
        %v565 = vld [vmem:[#allocation7 + $0xf0] sm:$0xff]
        %v566 = vld [vmem:[#allocation7 + $0xf8] sm:$0xff]
        %v567 = vld [vmem:[#allocation7 + $0x100] sm:$0xff]
        %v568 = vld [vmem:[#allocation7 + $0x108] sm:$0xff]
        %v569 = vld [vmem:[#allocation7 + $0x110] sm:$0xff]
        %v570 = vld [vmem:[#allocation7 + $0x118] sm:$0xff]
        %v571 = vld [vmem:[#allocation7 + $0x120] sm:$0xff]
        %v572 = vld [vmem:[#allocation7 + $0x128] sm:$0xff]
        %v573 = vld [vmem:[#allocation7 + $0x130] sm:$0xff]
        %v574 = vld [vmem:[#allocation7 + $0x138] sm:$0xff]
        %v575 = vld [vmem:[#allocation7 + $0x140] sm:$0xff]
        %v576 = vld [vmem:[#allocation7 + $0x148] sm:$0xff]
        %v577 = vld [vmem:[#allocation7 + $0x150] sm:$0xff]
        %v578 = vld [vmem:[#allocation7 + $0x158] sm:$0xff]
        %v579 = vld [vmem:[#allocation7 + $0x160] sm:$0xff]
        %v580 = vld [vmem:[#allocation7 + $0x168] sm:$0xff]
        %v581 = vld [vmem:[#allocation7 + $0x170] sm:$0xff]
        %v582 = vld [vmem:[#allocation7 + $0x178] sm:$0xff]
        %v583 = vld [vmem:[#allocation7 + $0x180] sm:$0xff]
        %v584 = vld [vmem:[#allocation7 + $0x188] sm:$0xff]
        %v585 = vld [vmem:[#allocation7 + $0x190] sm:$0xff]
        %v586 = vld [vmem:[#allocation7 + $0x198] sm:$0xff]
        %v587 = vld [vmem:[#allocation7 + $0x1a0] sm:$0xff]
        %v588 = vld [vmem:[#allocation7 + $0x1a8] sm:$0xff]
        %v589 = vld [vmem:[#allocation7 + $0x1b0] sm:$0xff]
        %v590 = vld [vmem:[#allocation7 + $0x1b8] sm:$0xff]
        %v591 = vld [vmem:[#allocation7 + $0x1c0] sm:$0xff]
        %v592 = vld [vmem:[#allocation7 + $0x1c8] sm:$0xff]
        %v593 = vld [vmem:[#allocation7 + $0x1d0] sm:$0xff]
        %v594 = vld [vmem:[#allocation7 + $0x1d8] sm:$0xff]
        %v595 = vld [vmem:[#allocation7 + $0x1e0] sm:$0xff]
        %v596 = vld [vmem:[#allocation7 + $0x1e8] sm:$0xff]
        %v597 = vld [vmem:[#allocation7 + $0x1f0] sm:$0xff]
        %v598 = vld [vmem:[#allocation7 + $0x1f8] sm:$0xff]
        %v599 = vld [vmem:[#allocation7 + $0x200] sm:$0xff]
        %v600 = vld [vmem:[#allocation7 + $0x208] sm:$0xff]
        %v601 = vld [vmem:[#allocation7 + $0x210] sm:$0xff]
        %v602 = vld [vmem:[#allocation7 + $0x218] sm:$0xff]
        %v603 = vld [vmem:[#allocation7 + $0x220] sm:$0xff]
        %v604 = vld [vmem:[#allocation7 + $0x228] sm:$0xff]
        %v605 = vld [vmem:[#allocation7 + $0x230] sm:$0xff]
        %v606 = vld [vmem:[#allocation7 + $0x238] sm:$0xff]
        %v607 = vld [vmem:[#allocation7 + $0x240] sm:$0xff]
        %v608 = vld [vmem:[#allocation7 + $0x248] sm:$0xff]
        %v609 = vld [vmem:[#allocation7 + $0x250] sm:$0xff]
        %v610 = vld [vmem:[#allocation7 + $0x258] sm:$0xff]
        %v611 = vld [vmem:[#allocation7 + $0x260] sm:$0xff]
        %v612 = vld [vmem:[#allocation7 + $0x268] sm:$0xff]
        %v613 = vld [vmem:[#allocation7 + $0x270] sm:$0xff]
        %v614 = vld [vmem:[#allocation7 + $0x278] sm:$0xff]
        %v615 = vld [vmem:[#allocation7 + $0x280] sm:$0xff]
        %v616 = vld [vmem:[#allocation7 + $0x288] sm:$0xff]
        %v617 = vld [vmem:[#allocation7 + $0x290] sm:$0xff]
        %v618 = vld [vmem:[#allocation7 + $0x298] sm:$0xff]
        %v619 = vld [vmem:[#allocation7 + $0x2a0] sm:$0xff]
        %v620 = vld [vmem:[#allocation7 + $0x2a8] sm:$0xff]
        %v621 = vld [vmem:[#allocation7 + $0x2b0] sm:$0xff]
        %v622 = vld [vmem:[#allocation7 + $0x2b8] sm:$0xff]
        %v623 = vld [vmem:[#allocation7 + $0x2c0] sm:$0xff]
        %v624 = vld [vmem:[#allocation7 + $0x2c8] sm:$0xff]
        %v625 = vld [vmem:[#allocation7 + $0x2d0] sm:$0xff]
        %v626 = vld [vmem:[#allocation7 + $0x2d8] sm:$0xff]
        %v627 = vld [vmem:[#allocation7 + $0x2e0] sm:$0xff]
        %v628 = vld [vmem:[#allocation7 + $0x2e8] sm:$0xff]
        %v629 = vld [vmem:[#allocation7 + $0x2f0] sm:$0xff]
        %v630 = vld [vmem:[#allocation7 + $0x2f8] sm:$0xff]
        %v631 = vld [vmem:[#allocation7 + $0x300] sm:$0xff]
        %v632 = vld [vmem:[#allocation7 + $0x308] sm:$0xff]
        %v633 = vld [vmem:[#allocation7 + $0x310] sm:$0xff]
        %v634 = vld [vmem:[#allocation7 + $0x318] sm:$0xff]
        %v635 = vld [vmem:[#allocation7 + $0x320] sm:$0xff]
        %v636 = vld [vmem:[#allocation7 + $0x328] sm:$0xff]
        %v637 = vld [vmem:[#allocation7 + $0x330] sm:$0xff]
        %v638 = vld [vmem:[#allocation7 + $0x338] sm:$0xff]
        %v639 = vld [vmem:[#allocation7 + $0x340] sm:$0xff]
        %v640 = vld [vmem:[#allocation7 + $0x348] sm:$0xff]
        %v641 = vld [vmem:[#allocation7 + $0x350] sm:$0xff]
        %v642 = vld [vmem:[#allocation7 + $0x358] sm:$0xff]
        %v643 = vld [vmem:[#allocation7 + $0x360] sm:$0xff]
        %v644 = vld [vmem:[#allocation7 + $0x368] sm:$0xff]
        %v645 = vld [vmem:[#allocation7 + $0x370] sm:$0xff]
        %v646 = vld [vmem:[#allocation7 + $0x378] sm:$0xff]
        %v647 = vld [vmem:[#allocation7 + $0x380] sm:$0xff]
        %v648 = vld [vmem:[#allocation7 + $0x388] sm:$0xff]
        %v649 = vld [vmem:[#allocation7 + $0x390] sm:$0xff]
        %v650 = vld [vmem:[#allocation7 + $0x398] sm:$0xff]
        %v651 = vld [vmem:[#allocation7 + $0x3a0] sm:$0xff]
        %v652 = vld [vmem:[#allocation7 + $0x3a8] sm:$0xff]
        %v653 = vld [vmem:[#allocation7 + $0x3b0] sm:$0xff]
        %v654 = vld [vmem:[#allocation7 + $0x3b8] sm:$0xff]
        %v655 = vld [vmem:[#allocation7 + $0x3c0] sm:$0xff]
        %v656 = vld [vmem:[#allocation7 + $0x3c8] sm:$0xff]
        %v657 = vld [vmem:[#allocation7 + $0x3d0] sm:$0xff]
        %v658 = vld [vmem:[#allocation7 + $0x3d8] sm:$0xff]
        %v659 = vld [vmem:[#allocation7 + $0x3e0] sm:$0xff]
        %v660 = vld [vmem:[#allocation7 + $0x3e8] sm:$0xff]
        %v661 = vld [vmem:[#allocation7 + $0x3f0] sm:$0xff]
        %v662 = vld [vmem:[#allocation7 + $0x3f8] sm:$0xff]
        %v663 = vld [vmem:[#allocation7 + $0x400] sm:$0xff]
        %v664 = vld [vmem:[#allocation7 + $0x408] sm:$0xff]
        %v665 = vld [vmem:[#allocation7 + $0x410] sm:$0xff]
        %v666 = vld [vmem:[#allocation7 + $0x418] sm:$0xff]
        %v667 = vld [vmem:[#allocation7 + $0x420] sm:$0xff]
        %v668 = vld [vmem:[#allocation7 + $0x428] sm:$0xff]
        %v669 = vld [vmem:[#allocation7 + $0x430] sm:$0xff]
        %v670 = vld [vmem:[#allocation7 + $0x438] sm:$0xff]
        %v671 = vld [vmem:[#allocation7 + $0x440] sm:$0xff]
        %v672 = vld [vmem:[#allocation7 + $0x448] sm:$0xff]
        %v673 = vld [vmem:[#allocation7 + $0x450] sm:$0xff]
        %v674 = vld [vmem:[#allocation7 + $0x458] sm:$0xff]
        %v675 = vld [vmem:[#allocation7 + $0x460] sm:$0xff]
        %v676 = vld [vmem:[#allocation7 + $0x468] sm:$0xff]
        %v677 = vld [vmem:[#allocation7 + $0x470] sm:$0xff]
        %v678 = vld [vmem:[#allocation7 + $0x478] sm:$0xff]
        %v679 = vld [vmem:[#allocation7 + $0x480] sm:$0xff]
        %v680 = vld [vmem:[#allocation7 + $0x488] sm:$0xff]
        %v681 = vld [vmem:[#allocation7 + $0x490] sm:$0xff]
        %v682 = vld [vmem:[#allocation7 + $0x498] sm:$0xff]
        %v683 = vld [vmem:[#allocation7 + $0x4a0] sm:$0xff]
        %v684 = vld [vmem:[#allocation7 + $0x4a8] sm:$0xff]
        %v685 = vld [vmem:[#allocation7 + $0x4b0] sm:$0xff]
        %v686 = vld [vmem:[#allocation7 + $0x4b8] sm:$0xff]
        %v687 = vld [vmem:[#allocation7 + $0x4c0] sm:$0xff]
        %v688 = vld [vmem:[#allocation7 + $0x4c8] sm:$0xff]
        %v689 = vld [vmem:[#allocation7 + $0x4d0] sm:$0xff]
        %v690 = vld [vmem:[#allocation7 + $0x4d8] sm:$0xff]
        %v691 = vld [vmem:[#allocation7 + $0x4e0] sm:$0xff]
        %v692 = vld [vmem:[#allocation7 + $0x4e8] sm:$0xff]
        %v693 = vld [vmem:[#allocation7 + $0x4f0] sm:$0xff]
        %v694 = vld [vmem:[#allocation7 + $0x4f8] sm:$0xff]
        %v695 = vld [vmem:[#allocation7 + $0x500] sm:$0xff]
        %v696 = vld [vmem:[#allocation7 + $0x508] sm:$0xff]
        %v697 = vld [vmem:[#allocation7 + $0x510] sm:$0xff]
        %v698 = vld [vmem:[#allocation7 + $0x518] sm:$0xff]
        %v699 = vld [vmem:[#allocation7 + $0x520] sm:$0xff]
        %v700 = vld [vmem:[#allocation7 + $0x528] sm:$0xff]
        %v701 = vld [vmem:[#allocation7 + $0x530] sm:$0xff]
        %v702 = vld [vmem:[#allocation7 + $0x538] sm:$0xff]
        %v703 = vld [vmem:[#allocation7 + $0x540] sm:$0xff]
        %v704 = vld [vmem:[#allocation7 + $0x548] sm:$0xff]
        %v705 = vld [vmem:[#allocation7 + $0x550] sm:$0xff]
        %v706 = vld [vmem:[#allocation7 + $0x558] sm:$0xff]
        %v707 = vld [vmem:[#allocation7 + $0x560] sm:$0xff]
        %v708 = vld [vmem:[#allocation7 + $0x568] sm:$0xff]
        %v709 = vld [vmem:[#allocation7 + $0x570] sm:$0xff]
        %v710 = vld [vmem:[#allocation7 + $0x578] sm:$0xff]
        %v711 = vld [vmem:[#allocation7 + $0x580] sm:$0xff]
        %v712 = vld [vmem:[#allocation7 + $0x588] sm:$0xff]
        %v713 = vld [vmem:[#allocation7 + $0x590] sm:$0xff]
        %v714 = vld [vmem:[#allocation7 + $0x598] sm:$0xff]
        %v715 = vld [vmem:[#allocation7 + $0x5a0] sm:$0xff]
        %v716 = vld [vmem:[#allocation7 + $0x5a8] sm:$0xff]
        %v717 = vld [vmem:[#allocation7 + $0x5b0] sm:$0xff]
        %v718 = vld [vmem:[#allocation7 + $0x5b8] sm:$0xff]
        %v719 = vld [vmem:[#allocation7 + $0x5c0] sm:$0xff]
        %v720 = vld [vmem:[#allocation7 + $0x5c8] sm:$0xff]
        %v721 = vld [vmem:[#allocation7 + $0x5d0] sm:$0xff]
        %v722 = vld [vmem:[#allocation7 + $0x5d8] sm:$0xff]
        %v723 = vld [vmem:[#allocation7 + $0x5e0] sm:$0xff]
        %v724 = vld [vmem:[#allocation7 + $0x5e8] sm:$0xff]
        %v725 = vld [vmem:[#allocation7 + $0x5f0] sm:$0xff]
        %v726 = vld [vmem:[#allocation7 + $0x5f8] sm:$0xff]
        %v727 = vld [vmem:[#allocation7 + $0x600] sm:$0xff]
        %v728 = vld [vmem:[#allocation7 + $0x608] sm:$0xff]
        %v729 = vld [vmem:[#allocation7 + $0x610] sm:$0xff]
        %v730 = vld [vmem:[#allocation7 + $0x618] sm:$0xff]
        %v731 = vld [vmem:[#allocation7 + $0x620] sm:$0xff]
        %v732 = vld [vmem:[#allocation7 + $0x628] sm:$0xff]
        %v733 = vld [vmem:[#allocation7 + $0x630] sm:$0xff]
        %v734 = vld [vmem:[#allocation7 + $0x638] sm:$0xff]
        %v735 = vld [vmem:[#allocation7 + $0x640] sm:$0xff]
        %v736 = vld [vmem:[#allocation7 + $0x648] sm:$0xff]
        %v737 = vld [vmem:[#allocation7 + $0x650] sm:$0xff]
        %v738 = vld [vmem:[#allocation7 + $0x658] sm:$0xff]
        %v739 = vld [vmem:[#allocation7 + $0x660] sm:$0xff]
        %v740 = vld [vmem:[#allocation7 + $0x668] sm:$0xff]
        %v741 = vld [vmem:[#allocation7 + $0x670] sm:$0xff]
        %v742 = vld [vmem:[#allocation7 + $0x678] sm:$0xff]
        %v743 = vld [vmem:[#allocation7 + $0x680] sm:$0xff]
        %v744 = vld [vmem:[#allocation7 + $0x688] sm:$0xff]
        %v745 = vld [vmem:[#allocation7 + $0x690] sm:$0xff]
        %v746 = vld [vmem:[#allocation7 + $0x698] sm:$0xff]
        %v747 = vld [vmem:[#allocation7 + $0x6a0] sm:$0xff]
        %v748 = vld [vmem:[#allocation7 + $0x6a8] sm:$0xff]
        %v749 = vld [vmem:[#allocation7 + $0x6b0] sm:$0xff]
        %v750 = vld [vmem:[#allocation7 + $0x6b8] sm:$0xff]
        %v751 = vld [vmem:[#allocation7 + $0x6c0] sm:$0xff]
        %v752 = vld [vmem:[#allocation7 + $0x6c8] sm:$0xff]
        %v753 = vld [vmem:[#allocation7 + $0x6d0] sm:$0xff]
        %v754 = vld [vmem:[#allocation7 + $0x6d8] sm:$0xff]
        %v755 = vld [vmem:[#allocation7 + $0x6e0] sm:$0xff]
        %v756 = vld [vmem:[#allocation7 + $0x6e8] sm:$0xff]
        %v757 = vld [vmem:[#allocation7 + $0x6f0] sm:$0xff]
        %v758 = vld [vmem:[#allocation7 + $0x6f8] sm:$0xff]
        %v759 = vld [vmem:[#allocation7 + $0x700] sm:$0xff]
        %v760 = vld [vmem:[#allocation7 + $0x708] sm:$0xff]
        %v761 = vld [vmem:[#allocation7 + $0x710] sm:$0xff]
        %v762 = vld [vmem:[#allocation7 + $0x718] sm:$0xff]
        %v763 = vld [vmem:[#allocation7 + $0x720] sm:$0xff]
        %v764 = vld [vmem:[#allocation7 + $0x728] sm:$0xff]
        %v765 = vld [vmem:[#allocation7 + $0x730] sm:$0xff]
        %v766 = vld [vmem:[#allocation7 + $0x738] sm:$0xff]
        %v767 = vld [vmem:[#allocation7 + $0x740] sm:$0xff]
        %v768 = vld [vmem:[#allocation7 + $0x748] sm:$0xff]
        %v769 = vld [vmem:[#allocation7 + $0x750] sm:$0xff]
        %v770 = vld [vmem:[#allocation7 + $0x758] sm:$0xff]
        %v771 = vld [vmem:[#allocation7 + $0x760] sm:$0xff]
        %v772 = vld [vmem:[#allocation7 + $0x768] sm:$0xff]
        %v773 = vld [vmem:[#allocation7 + $0x770] sm:$0xff]
        %v774 = vld [vmem:[#allocation7 + $0x778] sm:$0xff]
        %v775 = vld [vmem:[#allocation7 + $0x780] sm:$0xff]
        %v776 = vld [vmem:[#allocation7 + $0x788] sm:$0xff]
        %v777 = vld [vmem:[#allocation7 + $0x790] sm:$0xff]
        %v778 = vld [vmem:[#allocation7 + $0x798] sm:$0xff]
        %v779 = vld [vmem:[#allocation7 + $0x7a0] sm:$0xff]
        %v780 = vld [vmem:[#allocation7 + $0x7a8] sm:$0xff]
        %v781 = vld [vmem:[#allocation7 + $0x7b0] sm:$0xff]
        %v782 = vld [vmem:[#allocation7 + $0x7b8] sm:$0xff]
        %v783 = vld [vmem:[#allocation7 + $0x7c0] sm:$0xff]
        %v784 = vld [vmem:[#allocation7 + $0x7c8] sm:$0xff]
        %v785 = vld [vmem:[#allocation7 + $0x7d0] sm:$0xff]
        %v786 = vld [vmem:[#allocation7 + $0x7d8] sm:$0xff]
        %v787 = vld [vmem:[#allocation7 + $0x7e0] sm:$0xff]
        %v788 = vld [vmem:[#allocation7 + $0x7e8] sm:$0xff]
        %v789 = vld [vmem:[#allocation7 + $0x7f0] sm:$0xff]
        %v790 = vld [vmem:[#allocation7 + $0x7f8] sm:$0xff]
        %v791 = vld [vmem:[#allocation7 + $0x800] sm:$0xff]
        %v792 = vld [vmem:[#allocation7 + $0x808] sm:$0xff]
        %v793 = vld [vmem:[#allocation7 + $0x810] sm:$0xff]
        %v794 = vld [vmem:[#allocation7 + $0x818] sm:$0xff]
        %v795 = vld [vmem:[#allocation7 + $0x820] sm:$0xff]
        %v796 = vld [vmem:[#allocation7 + $0x828] sm:$0xff]
        %v797 = vld [vmem:[#allocation7 + $0x830] sm:$0xff]
        %v798 = vld [vmem:[#allocation7 + $0x838] sm:$0xff]
        %v799 = vld [vmem:[#allocation7 + $0x840] sm:$0xff]
        %v800 = vld [vmem:[#allocation7 + $0x848] sm:$0xff]
        %v801 = vld [vmem:[#allocation7 + $0x850] sm:$0xff]
        %v802 = vld [vmem:[#allocation7 + $0x858] sm:$0xff]
        %v803 = vld [vmem:[#allocation7 + $0x860] sm:$0xff]
        %v804 = vld [vmem:[#allocation7 + $0x868] sm:$0xff]
        %v805 = vld [vmem:[#allocation7 + $0x870] sm:$0xff]
        %v806 = vld [vmem:[#allocation7 + $0x878] sm:$0xff]
        %v807 = vld [vmem:[#allocation7 + $0x880] sm:$0xff]
        %v808 = vld [vmem:[#allocation7 + $0x888] sm:$0xff]
        %v809 = vld [vmem:[#allocation7 + $0x890] sm:$0xff]
        %v810 = vld [vmem:[#allocation7 + $0x898] sm:$0xff]
        %v811 = vld [vmem:[#allocation7 + $0x8a0] sm:$0xff]
        %v812 = vld [vmem:[#allocation7 + $0x8a8] sm:$0xff]
        %v813 = vld [vmem:[#allocation7 + $0x8b0] sm:$0xff]
        %v814 = vld [vmem:[#allocation7 + $0x8b8] sm:$0xff]
        %v815 = vld [vmem:[#allocation7 + $0x8c0] sm:$0xff]
        %v816 = vld [vmem:[#allocation7 + $0x8c8] sm:$0xff]
        %v817 = vld [vmem:[#allocation7 + $0x8d0] sm:$0xff]
        %v818 = vld [vmem:[#allocation7 + $0x8d8] sm:$0xff]
        %v819 = vld [vmem:[#allocation7 + $0x8e0] sm:$0xff]
        %v820 = vld [vmem:[#allocation7 + $0x8e8] sm:$0xff]
        %v821 = vld [vmem:[#allocation7 + $0x8f0] sm:$0xff]
        %v822 = vld [vmem:[#allocation7 + $0x8f8] sm:$0xff]
        %v823 = vld [vmem:[#allocation7 + $0x900] sm:$0xff]
        %v824 = vld [vmem:[#allocation7 + $0x908] sm:$0xff]
        %v825 = vld [vmem:[#allocation7 + $0x910] sm:$0xff]
        %v826 = vld [vmem:[#allocation7 + $0x918] sm:$0xff]
        %v827 = vld [vmem:[#allocation7 + $0x920] sm:$0xff]
        %v828 = vld [vmem:[#allocation7 + $0x928] sm:$0xff]
        %v829 = vld [vmem:[#allocation7 + $0x930] sm:$0xff]
        %v830 = vld [vmem:[#allocation7 + $0x938] sm:$0xff]
        %v831 = vld [vmem:[#allocation7 + $0x940] sm:$0xff]
        %v832 = vld [vmem:[#allocation7 + $0x948] sm:$0xff]
        %v833 = vld [vmem:[#allocation7 + $0x950] sm:$0xff]
        %v834 = vld [vmem:[#allocation7 + $0x958] sm:$0xff]
        %v835 = vld [vmem:[#allocation7 + $0x960] sm:$0xff]
        %v836 = vld [vmem:[#allocation7 + $0x968] sm:$0xff]
        %v837 = vld [vmem:[#allocation7 + $0x970] sm:$0xff]
        %v838 = vld [vmem:[#allocation7 + $0x978] sm:$0xff]
        %v839 = vld [vmem:[#allocation7 + $0x980] sm:$0xff]
        %v840 = vld [vmem:[#allocation7 + $0x988] sm:$0xff]
        %v841 = vld [vmem:[#allocation7 + $0x990] sm:$0xff]
        %v842 = vld [vmem:[#allocation7 + $0x998] sm:$0xff]
        %v843 = vld [vmem:[#allocation7 + $0x9a0] sm:$0xff]
        %v844 = vld [vmem:[#allocation7 + $0x9a8] sm:$0xff]
        %v845 = vld [vmem:[#allocation7 + $0x9b0] sm:$0xff]
        %v846 = vld [vmem:[#allocation7 + $0x9b8] sm:$0xff]
        %v847 = vld [vmem:[#allocation7 + $0x9c0] sm:$0xff]
        %v848 = vld [vmem:[#allocation7 + $0x9c8] sm:$0xff]
        %v849 = vld [vmem:[#allocation7 + $0x9d0] sm:$0xff]
        %v850 = vld [vmem:[#allocation7 + $0x9d8] sm:$0xff]
        %v851 = vld [vmem:[#allocation7 + $0x9e0] sm:$0xff]
        %v852 = vld [vmem:[#allocation7 + $0x9e8] sm:$0xff]
        %v853 = vld [vmem:[#allocation7 + $0x9f0] sm:$0xff]
        %v854 = vld [vmem:[#allocation7 + $0x9f8] sm:$0xff]
        %v855 = vld [vmem:[#allocation7 + $0xa00] sm:$0xff]
        %v856 = vld [vmem:[#allocation7 + $0xa08] sm:$0xff]
        %v857 = vld [vmem:[#allocation7 + $0xa10] sm:$0xff]
        %v858 = vld [vmem:[#allocation7 + $0xa18] sm:$0xff]
        %v859 = vld [vmem:[#allocation7 + $0xa20] sm:$0xff]
        %v860 = vld [vmem:[#allocation7 + $0xa28] sm:$0xff]
        %v861 = vld [vmem:[#allocation7 + $0xa30] sm:$0xff]
        %v862 = vld [vmem:[#allocation7 + $0xa38] sm:$0xff]
        %v863 = vld [vmem:[#allocation7 + $0xa40] sm:$0xff]
        %v864 = vld [vmem:[#allocation7 + $0xa48] sm:$0xff]
        %v865 = vld [vmem:[#allocation7 + $0xa50] sm:$0xff]
        %v866 = vld [vmem:[#allocation7 + $0xa58] sm:$0xff]
        %v867 = vld [vmem:[#allocation7 + $0xa60] sm:$0xff]
        %v868 = vld [vmem:[#allocation7 + $0xa68] sm:$0xff]
        %v869 = vld [vmem:[#allocation7 + $0xa70] sm:$0xff]
        %v870 = vld [vmem:[#allocation7 + $0xa78] sm:$0xff]
        %v871 = vld [vmem:[#allocation7 + $0xa80] sm:$0xff]
        %v872 = vld [vmem:[#allocation7 + $0xa88] sm:$0xff]
        %v873 = vld [vmem:[#allocation7 + $0xa90] sm:$0xff]
        %v874 = vld [vmem:[#allocation7 + $0xa98] sm:$0xff]
        %v875 = vld [vmem:[#allocation7 + $0xaa0] sm:$0xff]
        %v876 = vld [vmem:[#allocation7 + $0xaa8] sm:$0xff]
        %v877 = vld [vmem:[#allocation7 + $0xab0] sm:$0xff]
        %v878 = vld [vmem:[#allocation7 + $0xab8] sm:$0xff]
        %v879 = vld [vmem:[#allocation7 + $0xac0] sm:$0xff]
        %v880 = vld [vmem:[#allocation7 + $0xac8] sm:$0xff]
        %v881 = vld [vmem:[#allocation7 + $0xad0] sm:$0xff]
        %v882 = vld [vmem:[#allocation7 + $0xad8] sm:$0xff]
        %v883 = vld [vmem:[#allocation7 + $0xae0] sm:$0xff]
        %v884 = vld [vmem:[#allocation7 + $0xae8] sm:$0xff]
        %v885 = vld [vmem:[#allocation7 + $0xaf0] sm:$0xff]
        %v886 = vld [vmem:[#allocation7 + $0xaf8] sm:$0xff]
        %v887 = vld [vmem:[#allocation7 + $0xb00] sm:$0xff]
        %v888 = vld [vmem:[#allocation7 + $0xb08] sm:$0xff]
        %v889 = vld [vmem:[#allocation7 + $0xb10] sm:$0xff]
        %v890 = vld [vmem:[#allocation7 + $0xb18] sm:$0xff]
        %v891 = vld [vmem:[#allocation7 + $0xb20] sm:$0xff]
        %v892 = vld [vmem:[#allocation7 + $0xb28] sm:$0xff]
        %v893 = vld [vmem:[#allocation7 + $0xb30] sm:$0xff]
        %v894 = vld [vmem:[#allocation7 + $0xb38] sm:$0xff]
        %v895 = vld [vmem:[#allocation7 + $0xb40] sm:$0xff]
        %v896 = vld [vmem:[#allocation7 + $0xb48] sm:$0xff]
        %v897 = vld [vmem:[#allocation7 + $0xb50] sm:$0xff]
        %v898 = vld [vmem:[#allocation7 + $0xb58] sm:$0xff]
        %v899 = vld [vmem:[#allocation7 + $0xb60] sm:$0xff]
        %v900 = vld [vmem:[#allocation7 + $0xb68] sm:$0xff]
        %v901 = vld [vmem:[#allocation7 + $0xb70] sm:$0xff]
        %v902 = vld [vmem:[#allocation7 + $0xb78] sm:$0xff]
        %v903 = vld [vmem:[#allocation7 + $0xb80] sm:$0xff]
        %v904 = vld [vmem:[#allocation7 + $0xb88] sm:$0xff]
        %v905 = vld [vmem:[#allocation7 + $0xb90] sm:$0xff]
        %v906 = vld [vmem:[#allocation7 + $0xb98] sm:$0xff]
        %v907 = vld [vmem:[#allocation7 + $0xba0] sm:$0xff]
        %v908 = vld [vmem:[#allocation7 + $0xba8] sm:$0xff]
        %v909 = vld [vmem:[#allocation7 + $0xbb0] sm:$0xff]
        %v910 = vld [vmem:[#allocation7 + $0xbb8] sm:$0xff]
        %v911 = vld [vmem:[#allocation7 + $0xbc0] sm:$0xff]
        %v912 = vld [vmem:[#allocation7 + $0xbc8] sm:$0xff]
        %v913 = vld [vmem:[#allocation7 + $0xbd0] sm:$0xff]
        %v914 = vld [vmem:[#allocation7 + $0xbd8] sm:$0xff]
        %v915 = vld [vmem:[#allocation7 + $0xbe0] sm:$0xff]
        %v916 = vld [vmem:[#allocation7 + $0xbe8] sm:$0xff]
        %v917 = vld [vmem:[#allocation7 + $0xbf0] sm:$0xff]
        %v918 = vld [vmem:[#allocation7 + $0xbf8] sm:$0xff]
        %v919 = vld [vmem:[#allocation11] sm:$0xff]
        %v920 = vld [vmem:[#allocation11 + $0x8] sm:$0xff]
        %v921 = vld [vmem:[#allocation11 + $0x10] sm:$0xff]
        %v922 = vld [vmem:[#allocation11 + $0x18] sm:$0xff]
        %v923 = vld [vmem:[#allocation11 + $0x20] sm:$0xff]
        %v924 = vld [vmem:[#allocation11 + $0x28] sm:$0xff]
        %v925 = vld [vmem:[#allocation11 + $0x30] sm:$0xff]
        %v926 = vld [vmem:[#allocation11 + $0x38] sm:$0xff]
        %v927 = vld [vmem:[#allocation11 + $0x40] sm:$0xff]
        %v928 = vld [vmem:[#allocation11 + $0x48] sm:$0xff]
        %v929 = vld [vmem:[#allocation11 + $0x50] sm:$0xff]
        %v930 = vld [vmem:[#allocation11 + $0x58] sm:$0xff]
        %v931 = vld [vmem:[#allocation11 + $0x60] sm:$0xff]
        %v932 = vld [vmem:[#allocation11 + $0x68] sm:$0xff]
        %v933 = vld [vmem:[#allocation11 + $0x70] sm:$0xff]
        %v934 = vld [vmem:[#allocation11 + $0x78] sm:$0xff]
        %v935 = vld [vmem:[#allocation11 + $0x80] sm:$0xff]
        %v936 = vld [vmem:[#allocation11 + $0x88] sm:$0xff]
        %v937 = vld [vmem:[#allocation11 + $0x90] sm:$0xff]
        %v938 = vld [vmem:[#allocation11 + $0x98] sm:$0xff]
        %v939 = vld [vmem:[#allocation11 + $0xa0] sm:$0xff]
        %v940 = vld [vmem:[#allocation11 + $0xa8] sm:$0xff]
        %v941 = vld [vmem:[#allocation11 + $0xb0] sm:$0xff]
        %v942 = vld [vmem:[#allocation11 + $0xb8] sm:$0xff]
        %v943 = vld [vmem:[#allocation11 + $0xc0] sm:$0xff]
        %v944 = vld [vmem:[#allocation11 + $0xc8] sm:$0xff]
        %v945 = vld [vmem:[#allocation11 + $0xd0] sm:$0xff]
        %v946 = vld [vmem:[#allocation11 + $0xd8] sm:$0xff]
        %v947 = vld [vmem:[#allocation11 + $0xe0] sm:$0xff]
        %v948 = vld [vmem:[#allocation11 + $0xe8] sm:$0xff]
        %v949 = vld [vmem:[#allocation11 + $0xf0] sm:$0xff]
        %v950 = vld [vmem:[#allocation11 + $0xf8] sm:$0xff]
        %v951 = vld [vmem:[#allocation11 + $0x100] sm:$0xff]
        %v952 = vld [vmem:[#allocation11 + $0x108] sm:$0xff]
        %v953 = vld [vmem:[#allocation11 + $0x110] sm:$0xff]
        %v954 = vld [vmem:[#allocation11 + $0x118] sm:$0xff]
        %v955 = vld [vmem:[#allocation11 + $0x120] sm:$0xff]
        %v956 = vld [vmem:[#allocation11 + $0x128] sm:$0xff]
        %v957 = vld [vmem:[#allocation11 + $0x130] sm:$0xff]
        %v958 = vld [vmem:[#allocation11 + $0x138] sm:$0xff]
        %v959 = vld [vmem:[#allocation11 + $0x140] sm:$0xff]
        %v960 = vld [vmem:[#allocation11 + $0x148] sm:$0xff]
        %v961 = vld [vmem:[#allocation11 + $0x150] sm:$0xff]
        %v962 = vld [vmem:[#allocation11 + $0x158] sm:$0xff]
        %v963 = vld [vmem:[#allocation11 + $0x160] sm:$0xff]
        %v964 = vld [vmem:[#allocation11 + $0x168] sm:$0xff]
        %v965 = vld [vmem:[#allocation11 + $0x170] sm:$0xff]
        %v966 = vld [vmem:[#allocation11 + $0x178] sm:$0xff]
        %v967 = vld [vmem:[#allocation11 + $0x180] sm:$0xff]
        %v968 = vld [vmem:[#allocation11 + $0x188] sm:$0xff]
        %v969 = vld [vmem:[#allocation11 + $0x190] sm:$0xff]
        %v970 = vld [vmem:[#allocation11 + $0x198] sm:$0xff]
        %v971 = vld [vmem:[#allocation11 + $0x1a0] sm:$0xff]
        %v972 = vld [vmem:[#allocation11 + $0x1a8] sm:$0xff]
        %v973 = vld [vmem:[#allocation11 + $0x1b0] sm:$0xff]
        %v974 = vld [vmem:[#allocation11 + $0x1b8] sm:$0xff]
        %v975 = vld [vmem:[#allocation11 + $0x1c0] sm:$0xff]
        %v976 = vld [vmem:[#allocation11 + $0x1c8] sm:$0xff]
        %v977 = vld [vmem:[#allocation11 + $0x1d0] sm:$0xff]
        %v978 = vld [vmem:[#allocation11 + $0x1d8] sm:$0xff]
        %v979 = vld [vmem:[#allocation11 + $0x1e0] sm:$0xff]
        %v980 = vld [vmem:[#allocation11 + $0x1e8] sm:$0xff]
        %v981 = vld [vmem:[#allocation11 + $0x1f0] sm:$0xff]
        %v982 = vld [vmem:[#allocation11 + $0x1f8] sm:$0xff]
        %v983 = vld [vmem:[#allocation8] sm:$0xf]
        %v984 = vld [vmem:[#allocation10] sm:$0x3]
        %v985 = vld [vmem:[%s454] sm:$0xff]
        %v986 = vld [vmem:[%s454 + $0x8] sm:$0xff]
        %v987 = vld [vmem:[%s454 + $0x10] sm:$0xff]
        %v988 = vld [vmem:[%s454 + $0x18] sm:$0xff]
        %991 = vrot.lane.b32.xlu0 %v985, 96
        %v992 = vpop.permute.xlu0 %991
        %993 = vrot.lane.b32.xlu0 %v987, 96
        %v994 = vpop.permute.xlu0 %993
        %v997 = vadd.f32 %v985, %v992
        %v998 = vadd.f32 %v987, %v994
        %1001 = vrot.lane.b32.xlu0 %v985, 64
        %v1002 = vpop.permute.xlu0 %1001
        %1003 = vrot.lane.b32.xlu0 %v986, 64
        %v1004 = vpop.permute.xlu0 %1003
        %1005 = vrot.lane.b32.xlu0 %v987, 64
        %v1006 = vpop.permute.xlu0 %1005
        %1007 = vrot.lane.b32.xlu0 %v988, 64
        %v1008 = vpop.permute.xlu0 %1007
        %vm1009 = vcmask 523264
        %v1010 = vsel %vm1009, %v1002, %v1004
        %v1011 = vsel %vm1009, %v1006, %v1008
        %v1016 = vmul.f32 %v531, %v1010
        %v1017 = vmul.f32 %v532, %v1004
        %v1018 = vmul.f32 %v533, %v1011
        %v1019 = vmul.f32 %v534, %v1008
        %1022 = vrot.lane.b32.xlu0 %v1016, 96
        %v1023 = vpop.permute.xlu0 %1022
        %1024 = vrot.lane.b32.xlu0 %v1018, 96
        %v1025 = vpop.permute.xlu0 %1024
        %v1028 = vadd.f32 %v1016, %v1023
        %v1029 = vadd.f32 %v1018, %v1025
        %1030 = vrot.lane.b32.xlu0 %v1016, 64
        %v1031 = vpop.permute.xlu0 %1030
        %1032 = vrot.lane.b32.xlu0 %v1018, 64
        %v1033 = vpop.permute.xlu0 %1032
        %v1036 = vadd.f32 %v1028, %v1031
        %v1037 = vadd.f32 %v1029, %v1033
        %1038 = vrot.lane.b32.xlu0 %v1016, 32
        %v1039 = vpop.permute.xlu0 %1038
        %1040 = vrot.lane.b32.xlu0 %v1018, 32
        %v1041 = vpop.permute.xlu0 %1040
        %v1044 = vadd.f32 %v1036, %v1039
        %v1045 = vadd.f32 %v1037, %v1041
        %v1046 = vadd.f32 %v1044, %v1017
        %v1047 = vadd.f32 %v1045, %v1019
        %1050 = vrot.lane.b32.xlu0 %v1017, 96
        %v1051 = vpop.permute.xlu0 %1050
        %1052 = vrot.lane.b32.xlu0 %v1019, 96
        %v1053 = vpop.permute.xlu0 %1052
        %v1056 = vadd.f32 %v1046, %v1051
        %v1057 = vadd.f32 %v1047, %v1053
        %1060 = vrot.lane.b32.xlu0 %v997, 32
        %v1061 = vpop.permute.xlu0 %1060
        %1062 = vrot.lane.b32.xlu0 %v998, 32
        %v1063 = vpop.permute.xlu0 %1062
        %1066 = vrot.lane.b32.xlu0 %v997, 64
        %v1067 = vpop.permute.xlu0 %1066
        %1068 = vrot.lane.b32.xlu0 %v998, 64
        %v1069 = vpop.permute.xlu0 %1068
        %1072 = vrot.lane.b32.xlu0 %v997, 96
        %v1073 = vpop.permute.xlu0 %1072
        %1074 = vrot.lane.b32.xlu0 %v998, 96
        %v1075 = vpop.permute.xlu0 %1074
        %vm1078 = vcmask 261120
        %v1079 = vsel %vm1078, %v997, %v1061
        %v1080 = vsel %vm1078, %v998, %v1063
        %v1081 = vsel %vm1009, %v1079, %v1067
        %v1082 = vsel %vm1009, %v1080, %v1069
        %vm1083 = vcmask 785408
        %v1084 = vsel %vm1083, %v1081, %v1073
        %v1085 = vsel %vm1083, %v1082, %v1075
        %v1086 = vmul.f32 %v531, %v1084
        %v1087 = vmul.f32 %v532, %v1079
        %v1088 = vmul.f32 %v533, %v1085
        %v1089 = vmul.f32 %v534, %v1080
        %1092 = vrot.lane.b32.xlu0 %v1056, 32
        %v1093 = vpop.permute.xlu0 %1092
        %1094 = vrot.lane.b32.xlu0 %v1057, 32
        %v1095 = vpop.permute.xlu0 %1094
        %1102 = vrot.lane.b32.xlu0 %v1086, 64
        %v1103 = vpop.permute.xlu0 %1102
        %1104 = vrot.lane.b32.xlu0 %v1087, 64
        %v1105 = vpop.permute.xlu0 %1104
        %1106 = vrot.lane.b32.xlu0 %v1088, 64
        %v1107 = vpop.permute.xlu0 %1106
        %1108 = vrot.lane.b32.xlu0 %v1089, 64
        %v1109 = vpop.permute.xlu0 %1108
        %v1110 = vsel %vm1009, %v1103, %v1105
        %v1111 = vsel %vm1009, %v1107, %v1109
        %v1116 = vsel %vm1078, %v1056, %v1093
        %v1117 = vsel %vm1078, %v1057, %v1095
        %v1118 = vsel %vm1009, %v1116, %v1103
        %v1119 = vsel %vm1009, %v1117, %v1107
        %1120 = vmatprep.subr.mxu0 %v626
        %1121 = vmatpush1.msra.mxu0 %v625
        %1122 = vmatprep.subr.mxu0 %v620
        %1123 = vmatpush1.msra.mxu0 %v619
        %1124 = vmatprep.subr.mxu0 %v614
        %1125 = vmatpush1.msra.mxu0 %v613
        %1126 = vmatprep.subr.mxu0 %v608
        %1127 = vmatpush1.msra.mxu0 %v607
        %1128 = vmatprep.subr.mxu0 %v602
        %1129 = vmatpush1.msra.mxu0 %v601
        %1130 = vmatprep.subr.mxu0 %v596
        %1131 = vmatpush1.msra.mxu0 %v595
        %1132 = vmatprep.subr.mxu0 %v590
        %1133 = vmatpush1.msra.mxu0 %v589
        %1134 = vmatprep.subr.mxu0 %v584
        %1135 = vmatpush1.msra.mxu0 %v583
        %1136 = vmatprep.subr.mxu0 %v578
        %1137 = vmatpush1.msra.mxu0 %v577
        %1138 = vmatprep.subr.mxu0 %v572
        %1139 = vmatpush1.msra.mxu0 %v571
        %1140 = vmatprep.subr.mxu0 %v566
        %1141 = vmatpush1.msra.mxu0 %v565
        %1142 = vmatprep.subr.mxu0 %v560
        %1143 = vmatpush1.msra.mxu0 %v559
        %1144 = vmatprep.subr.mxu0 %v554
        %1145 = vmatpush1.msra.mxu0 %v553
        %1146 = vmatprep.subr.mxu0 %v548
        %1147 = vmatpush1.msra.mxu0 %v547
        %1148 = vmatprep.subr.mxu0 %v542
        %1149 = vmatpush1.msra.mxu0 %v541
        %1150 = vmatprep.subr.mxu0 %v536
        %1151 = vmatpush1.msra.mxu0 %v535
        %1152 = vmatprep.subr.mxu0 %v722
        %1153 = vmatpush2.msra.mxu0 %v721
        %1154 = vmatprep.subr.mxu0 %v716
        %1155 = vmatpush2.msra.mxu0 %v715
        %1156 = vmatprep.subr.mxu0 %v710
        %1157 = vmatpush2.msra.mxu0 %v709
        %1158 = vmatprep.subr.mxu0 %v704
        %1159 = vmatpush2.msra.mxu0 %v703
        %1160 = vmatprep.subr.mxu0 %v698
        %1161 = vmatpush2.msra.mxu0 %v697
        %1162 = vmatprep.subr.mxu0 %v692
        %1163 = vmatpush2.msra.mxu0 %v691
        %1164 = vmatprep.subr.mxu0 %v686
        %1165 = vmatpush2.msra.mxu0 %v685
        %1166 = vmatprep.subr.mxu0 %v680
        %1167 = vmatpush2.msra.mxu0 %v679
        %1168 = vmatprep.subr.mxu0 %v674
        %1169 = vmatpush2.msra.mxu0 %v673
        %1170 = vmatprep.subr.mxu0 %v668
        %1171 = vmatpush2.msra.mxu0 %v667
        %1172 = vmatprep.subr.mxu0 %v662
        %1173 = vmatpush2.msra.mxu0 %v661
        %1174 = vmatprep.subr.mxu0 %v656
        %1175 = vmatpush2.msra.mxu0 %v655
        %1176 = vmatprep.subr.mxu0 %v650
        %1177 = vmatpush2.msra.mxu0 %v649
        %1178 = vmatprep.subr.mxu0 %v644
        %1179 = vmatpush2.msra.mxu0 %v643
        %1180 = vmatprep.subr.mxu0 %v638
        %1181 = vmatpush2.msra.mxu0 %v637
        %1182 = vmatprep.subr.mxu0 %v632
        %1183 = vmatpush2.msra.mxu0 %v631
        %1184 = vmatprep.mubr.f32.mxu0 %v1110
        %1185 = vmatmul.mubr.f32.gmra.mxu0 %v1118
        %v1186 = vpop.f32.mrf.mxu0
        %v1187 = vadd.f32 0.0, %v1186
        %v1188 = vpop.f32.mrf.mxu0
        %v1189 = vadd.f32 0.0, %v1188
        %1190 = vmatprep.mubr.f32.mxu0 %v1111
        %1191 = vmatmul.mubr.f32.gmra.mxu0 %v1119
        %v1192 = vpop.f32.mrf.mxu0
        %v1193 = vadd.f32 0.0, %v1192
        %v1194 = vpop.f32.mrf.mxu0
        %v1195 = vadd.f32 0.0, %v1194
        %1196 = vdwg.mxu0
        %1197 = vmatprep.subr.mxu0 %v818
        %1198 = vmatpush1.msra.mxu0 %v817
        %1199 = vmatprep.subr.mxu0 %v812
        %1200 = vmatpush1.msra.mxu0 %v811
        %1201 = vmatprep.subr.mxu0 %v806
        %1202 = vmatpush1.msra.mxu0 %v805
        %1203 = vmatprep.subr.mxu0 %v800
        %1204 = vmatpush1.msra.mxu0 %v799
        %1205 = vmatprep.subr.mxu0 %v794
        %1206 = vmatpush1.msra.mxu0 %v793
        %1207 = vmatprep.subr.mxu0 %v788
        %1208 = vmatpush1.msra.mxu0 %v787
        %1209 = vmatprep.subr.mxu0 %v782
        %1210 = vmatpush1.msra.mxu0 %v781
        %1211 = vmatprep.subr.mxu0 %v776
        %1212 = vmatpush1.msra.mxu0 %v775
        %1213 = vmatprep.subr.mxu0 %v770
        %1214 = vmatpush1.msra.mxu0 %v769
        %1215 = vmatprep.subr.mxu0 %v764
        %1216 = vmatpush1.msra.mxu0 %v763
        %1217 = vmatprep.subr.mxu0 %v758
        %1218 = vmatpush1.msra.mxu0 %v757
        %1219 = vmatprep.subr.mxu0 %v752
        %1220 = vmatpush1.msra.mxu0 %v751
        %1221 = vmatprep.subr.mxu0 %v746
        %1222 = vmatpush1.msra.mxu0 %v745
        %1223 = vmatprep.subr.mxu0 %v740
        %1224 = vmatpush1.msra.mxu0 %v739
        %1225 = vmatprep.subr.mxu0 %v734
        %1226 = vmatpush1.msra.mxu0 %v733
        %1227 = vmatprep.subr.mxu0 %v728
        %1228 = vmatpush1.msra.mxu0 %v727
        %1229 = vmatprep.subr.mxu0 %v914
        %1230 = vmatpush2.msra.mxu0 %v913
        %1231 = vmatprep.subr.mxu0 %v908
        %1232 = vmatpush2.msra.mxu0 %v907
        %1233 = vmatprep.subr.mxu0 %v902
        %1234 = vmatpush2.msra.mxu0 %v901
        %1235 = vmatprep.subr.mxu0 %v896
        %1236 = vmatpush2.msra.mxu0 %v895
        %1237 = vmatprep.subr.mxu0 %v890
        %1238 = vmatpush2.msra.mxu0 %v889
        %1239 = vmatprep.subr.mxu0 %v884
        %1240 = vmatpush2.msra.mxu0 %v883
        %1241 = vmatprep.subr.mxu0 %v878
        %1242 = vmatpush2.msra.mxu0 %v877
        %1243 = vmatprep.subr.mxu0 %v872
        %1244 = vmatpush2.msra.mxu0 %v871
        %1245 = vmatprep.subr.mxu0 %v866
        %1246 = vmatpush2.msra.mxu0 %v865
        %1247 = vmatprep.subr.mxu0 %v860
        %1248 = vmatpush2.msra.mxu0 %v859
        %1249 = vmatprep.subr.mxu0 %v854
        %1250 = vmatpush2.msra.mxu0 %v853
        %1251 = vmatprep.subr.mxu0 %v848
        %1252 = vmatpush2.msra.mxu0 %v847
        %1253 = vmatprep.subr.mxu0 %v842
        %1254 = vmatpush2.msra.mxu0 %v841
        %1255 = vmatprep.subr.mxu0 %v836
        %1256 = vmatpush2.msra.mxu0 %v835
        %1257 = vmatprep.subr.mxu0 %v830
        %1258 = vmatpush2.msra.mxu0 %v829
        %1259 = vmatprep.subr.mxu0 %v824
        %1260 = vmatpush2.msra.mxu0 %v823
        %1261 = vmatprep.mubr.f32.mxu0 %v986
        %1262 = vmatmul.mubr.f32.gmra.mxu0 %v985
        %v1263 = vpop.f32.mrf.mxu0
        %v1264 = vadd.f32 %v1187, %v1263
        %v1265 = vpop.f32.mrf.mxu0
        %v1266 = vadd.f32 %v1189, %v1265
        %1267 = vmatprep.mubr.f32.mxu0 %v988
        %1268 = vmatmul.mubr.f32.gmra.mxu0 %v987
        %v1269 = vpop.f32.mrf.mxu0
        %v1270 = vadd.f32 %v1193, %v1269
        %v1271 = vpop.f32.mrf.mxu0
        %v1272 = vadd.f32 %v1195, %v1271
        %1273 = vdwg.mxu0
        %1274 = vmatprep.subr.mxu0 %v628
        %1275 = vmatpush1.msra.mxu0 %v627
        %1276 = vmatprep.subr.mxu0 %v622
        %1277 = vmatpush1.msra.mxu0 %v621
        %1278 = vmatprep.subr.mxu0 %v616
        %1279 = vmatpush1.msra.mxu0 %v615
        %1280 = vmatprep.subr.mxu0 %v610
        %1281 = vmatpush1.msra.mxu0 %v609
        %1282 = vmatprep.subr.mxu0 %v604
        %1283 = vmatpush1.msra.mxu0 %v603
        %1284 = vmatprep.subr.mxu0 %v598
        %1285 = vmatpush1.msra.mxu0 %v597
        %1286 = vmatprep.subr.mxu0 %v592
        %1287 = vmatpush1.msra.mxu0 %v591
        %1288 = vmatprep.subr.mxu0 %v586
        %1289 = vmatpush1.msra.mxu0 %v585
        %1290 = vmatprep.subr.mxu0 %v580
        %1291 = vmatpush1.msra.mxu0 %v579
        %1292 = vmatprep.subr.mxu0 %v574
        %1293 = vmatpush1.msra.mxu0 %v573
        %1294 = vmatprep.subr.mxu0 %v568
        %1295 = vmatpush1.msra.mxu0 %v567
        %1296 = vmatprep.subr.mxu0 %v562
        %1297 = vmatpush1.msra.mxu0 %v561
        %1298 = vmatprep.subr.mxu0 %v556
        %1299 = vmatpush1.msra.mxu0 %v555
        %1300 = vmatprep.subr.mxu0 %v550
        %1301 = vmatpush1.msra.mxu0 %v549
        %1302 = vmatprep.subr.mxu0 %v544
        %1303 = vmatpush1.msra.mxu0 %v543
        %1304 = vmatprep.subr.mxu0 %v538
        %1305 = vmatpush1.msra.mxu0 %v537
        %1306 = vmatprep.subr.mxu0 %v724
        %1307 = vmatpush2.msra.mxu0 %v723
        %1308 = vmatprep.subr.mxu0 %v718
        %1309 = vmatpush2.msra.mxu0 %v717
        %1310 = vmatprep.subr.mxu0 %v712
        %1311 = vmatpush2.msra.mxu0 %v711
        %1312 = vmatprep.subr.mxu0 %v706
        %1313 = vmatpush2.msra.mxu0 %v705
        %1314 = vmatprep.subr.mxu0 %v700
        %1315 = vmatpush2.msra.mxu0 %v699
        %1316 = vmatprep.subr.mxu0 %v694
        %1317 = vmatpush2.msra.mxu0 %v693
        %1318 = vmatprep.subr.mxu0 %v688
        %1319 = vmatpush2.msra.mxu0 %v687
        %1320 = vmatprep.subr.mxu0 %v682
        %1321 = vmatpush2.msra.mxu0 %v681
        %1322 = vmatprep.subr.mxu0 %v676
        %1323 = vmatpush2.msra.mxu0 %v675
        %1324 = vmatprep.subr.mxu0 %v670
        %1325 = vmatpush2.msra.mxu0 %v669
        %1326 = vmatprep.subr.mxu0 %v664
        %1327 = vmatpush2.msra.mxu0 %v663
        %1328 = vmatprep.subr.mxu0 %v658
        %1329 = vmatpush2.msra.mxu0 %v657
        %1330 = vmatprep.subr.mxu0 %v652
        %1331 = vmatpush2.msra.mxu0 %v651
        %1332 = vmatprep.subr.mxu0 %v646
        %1333 = vmatpush2.msra.mxu0 %v645
        %1334 = vmatprep.subr.mxu0 %v640
        %1335 = vmatpush2.msra.mxu0 %v639
        %1336 = vmatprep.subr.mxu0 %v634
        %1337 = vmatpush2.msra.mxu0 %v633
        %1338 = vmatprep.mubr.f32.mxu0 %v1110
        %1339 = vmatmul.mubr.f32.gmra.mxu0 %v1118
        %v1340 = vpop.f32.mrf.mxu0
        %v1341 = vadd.f32 0.0, %v1340
        %v1342 = vpop.f32.mrf.mxu0
        %v1343 = vadd.f32 0.0, %v1342
        %1344 = vmatprep.mubr.f32.mxu0 %v1111
        %1345 = vmatmul.mubr.f32.gmra.mxu0 %v1119
        %v1346 = vpop.f32.mrf.mxu0
        %v1347 = vadd.f32 0.0, %v1346
        %v1348 = vpop.f32.mrf.mxu0
        %v1349 = vadd.f32 0.0, %v1348
        %1350 = vdwg.mxu0
        %1351 = vmatprep.subr.mxu0 %v820
        %1352 = vmatpush1.msra.mxu0 %v819
        %1353 = vmatprep.subr.mxu0 %v814
        %1354 = vmatpush1.msra.mxu0 %v813
        %1355 = vmatprep.subr.mxu0 %v808
        %1356 = vmatpush1.msra.mxu0 %v807
        %1357 = vmatprep.subr.mxu0 %v802
        %1358 = vmatpush1.msra.mxu0 %v801
        %1359 = vmatprep.subr.mxu0 %v796
        %1360 = vmatpush1.msra.mxu0 %v795
        %1361 = vmatprep.subr.mxu0 %v790
        %1362 = vmatpush1.msra.mxu0 %v789
        %1363 = vmatprep.subr.mxu0 %v784
        %1364 = vmatpush1.msra.mxu0 %v783
        %1365 = vmatprep.subr.mxu0 %v778
        %1366 = vmatpush1.msra.mxu0 %v777
        %1367 = vmatprep.subr.mxu0 %v772
        %1368 = vmatpush1.msra.mxu0 %v771
        %1369 = vmatprep.subr.mxu0 %v766
        %1370 = vmatpush1.msra.mxu0 %v765
        %1371 = vmatprep.subr.mxu0 %v760
        %1372 = vmatpush1.msra.mxu0 %v759
        %1373 = vmatprep.subr.mxu0 %v754
        %1374 = vmatpush1.msra.mxu0 %v753
        %1375 = vmatprep.subr.mxu0 %v748
        %1376 = vmatpush1.msra.mxu0 %v747
        %1377 = vmatprep.subr.mxu0 %v742
        %1378 = vmatpush1.msra.mxu0 %v741
        %1379 = vmatprep.subr.mxu0 %v736
        %1380 = vmatpush1.msra.mxu0 %v735
        %1381 = vmatprep.subr.mxu0 %v730
        %1382 = vmatpush1.msra.mxu0 %v729
        %1383 = vmatprep.subr.mxu0 %v916
        %1384 = vmatpush2.msra.mxu0 %v915
        %1385 = vmatprep.subr.mxu0 %v910
        %1386 = vmatpush2.msra.mxu0 %v909
        %1387 = vmatprep.subr.mxu0 %v904
        %1388 = vmatpush2.msra.mxu0 %v903
        %1389 = vmatprep.subr.mxu0 %v898
        %1390 = vmatpush2.msra.mxu0 %v897
        %1391 = vmatprep.subr.mxu0 %v892
        %1392 = vmatpush2.msra.mxu0 %v891
        %1393 = vmatprep.subr.mxu0 %v886
        %1394 = vmatpush2.msra.mxu0 %v885
        %1395 = vmatprep.subr.mxu0 %v880
        %1396 = vmatpush2.msra.mxu0 %v879
        %1397 = vmatprep.subr.mxu0 %v874
        %1398 = vmatpush2.msra.mxu0 %v873
        %1399 = vmatprep.subr.mxu0 %v868
        %1400 = vmatpush2.msra.mxu0 %v867
        %1401 = vmatprep.subr.mxu0 %v862
        %1402 = vmatpush2.msra.mxu0 %v861
        %1403 = vmatprep.subr.mxu0 %v856
        %1404 = vmatpush2.msra.mxu0 %v855
        %1405 = vmatprep.subr.mxu0 %v850
        %1406 = vmatpush2.msra.mxu0 %v849
        %1407 = vmatprep.subr.mxu0 %v844
        %1408 = vmatpush2.msra.mxu0 %v843
        %1409 = vmatprep.subr.mxu0 %v838
        %1410 = vmatpush2.msra.mxu0 %v837
        %1411 = vmatprep.subr.mxu0 %v832
        %1412 = vmatpush2.msra.mxu0 %v831
        %1413 = vmatprep.subr.mxu0 %v826
        %1414 = vmatpush2.msra.mxu0 %v825
        %1415 = vmatprep.mubr.f32.mxu0 %v986
        %1416 = vmatmul.mubr.f32.gmra.mxu0 %v985
        %v1417 = vpop.f32.mrf.mxu0
        %v1418 = vadd.f32 %v1341, %v1417
        %v1419 = vpop.f32.mrf.mxu0
        %v1420 = vadd.f32 %v1343, %v1419
        %1421 = vmatprep.mubr.f32.mxu0 %v988
        %1422 = vmatmul.mubr.f32.gmra.mxu0 %v987
        %v1423 = vpop.f32.mrf.mxu0
        %v1424 = vadd.f32 %v1347, %v1423
        %v1425 = vpop.f32.mrf.mxu0
        %v1426 = vadd.f32 %v1349, %v1425
        %1427 = vdwg.mxu0
        %1428 = vmatprep.subr.mxu0 %v630
        %1429 = vmatpush1.msra.mxu0 %v629
        %1430 = vmatprep.subr.mxu0 %v624
        %1431 = vmatpush1.msra.mxu0 %v623
        %1432 = vmatprep.subr.mxu0 %v618
        %1433 = vmatpush1.msra.mxu0 %v617
        %1434 = vmatprep.subr.mxu0 %v612
        %1435 = vmatpush1.msra.mxu0 %v611
        %1436 = vmatprep.subr.mxu0 %v606
        %1437 = vmatpush1.msra.mxu0 %v605
        %1438 = vmatprep.subr.mxu0 %v600
        %1439 = vmatpush1.msra.mxu0 %v599
        %1440 = vmatprep.subr.mxu0 %v594
        %1441 = vmatpush1.msra.mxu0 %v593
        %1442 = vmatprep.subr.mxu0 %v588
        %1443 = vmatpush1.msra.mxu0 %v587
        %1444 = vmatprep.subr.mxu0 %v582
        %1445 = vmatpush1.msra.mxu0 %v581
        %1446 = vmatprep.subr.mxu0 %v576
        %1447 = vmatpush1.msra.mxu0 %v575
        %1448 = vmatprep.subr.mxu0 %v570
        %1449 = vmatpush1.msra.mxu0 %v569
        %1450 = vmatprep.subr.mxu0 %v564
        %1451 = vmatpush1.msra.mxu0 %v563
        %1452 = vmatprep.subr.mxu0 %v558
        %1453 = vmatpush1.msra.mxu0 %v557
        %1454 = vmatprep.subr.mxu0 %v552
        %1455 = vmatpush1.msra.mxu0 %v551
        %1456 = vmatprep.subr.mxu0 %v546
        %1457 = vmatpush1.msra.mxu0 %v545
        %1458 = vmatprep.subr.mxu0 %v540
        %1459 = vmatpush1.msra.mxu0 %v539
        %1460 = vmatprep.subr.mxu0 %v726
        %1461 = vmatpush2.msra.mxu0 %v725
        %1462 = vmatprep.subr.mxu0 %v720
        %1463 = vmatpush2.msra.mxu0 %v719
        %1464 = vmatprep.subr.mxu0 %v714
        %1465 = vmatpush2.msra.mxu0 %v713
        %1466 = vmatprep.subr.mxu0 %v708
        %1467 = vmatpush2.msra.mxu0 %v707
        %1468 = vmatprep.subr.mxu0 %v702
        %1469 = vmatpush2.msra.mxu0 %v701
        %1470 = vmatprep.subr.mxu0 %v696
        %1471 = vmatpush2.msra.mxu0 %v695
        %1472 = vmatprep.subr.mxu0 %v690
        %1473 = vmatpush2.msra.mxu0 %v689
        %1474 = vmatprep.subr.mxu0 %v684
        %1475 = vmatpush2.msra.mxu0 %v683
        %1476 = vmatprep.subr.mxu0 %v678
        %1477 = vmatpush2.msra.mxu0 %v677
        %1478 = vmatprep.subr.mxu0 %v672
        %1479 = vmatpush2.msra.mxu0 %v671
        %1480 = vmatprep.subr.mxu0 %v666
        %1481 = vmatpush2.msra.mxu0 %v665
        %1482 = vmatprep.subr.mxu0 %v660
        %1483 = vmatpush2.msra.mxu0 %v659
        %1484 = vmatprep.subr.mxu0 %v654
        %1485 = vmatpush2.msra.mxu0 %v653
        %1486 = vmatprep.subr.mxu0 %v648
        %1487 = vmatpush2.msra.mxu0 %v647
        %1488 = vmatprep.subr.mxu0 %v642
        %1489 = vmatpush2.msra.mxu0 %v641
        %1490 = vmatprep.subr.mxu0 %v636
        %1491 = vmatpush2.msra.mxu0 %v635
        %1492 = vmatprep.mubr.f32.mxu0 %v1110
        %1493 = vmatmul.mubr.f32.gmra.mxu0 %v1118
        %v1494 = vpop.f32.mrf.mxu0
        %v1495 = vadd.f32 0.0, %v1494
        %v1496 = vpop.f32.mrf.mxu0
        %v1497 = vadd.f32 0.0, %v1496
        %1498 = vmatprep.mubr.f32.mxu0 %v1111
        %1499 = vmatmul.mubr.f32.gmra.mxu0 %v1119
        %v1500 = vpop.f32.mrf.mxu0
        %v1501 = vadd.f32 0.0, %v1500
        %v1502 = vpop.f32.mrf.mxu0
        %v1503 = vadd.f32 0.0, %v1502
        %1504 = vdwg.mxu0
        %1505 = vmatprep.subr.mxu0 %v822
        %1506 = vmatpush1.msra.mxu0 %v821
        %1507 = vmatprep.subr.mxu0 %v816
        %1508 = vmatpush1.msra.mxu0 %v815
        %1509 = vmatprep.subr.mxu0 %v810
        %1510 = vmatpush1.msra.mxu0 %v809
        %1511 = vmatprep.subr.mxu0 %v804
        %1512 = vmatpush1.msra.mxu0 %v803
        %1513 = vmatprep.subr.mxu0 %v798
        %1514 = vmatpush1.msra.mxu0 %v797
        %1515 = vmatprep.subr.mxu0 %v792
        %1516 = vmatpush1.msra.mxu0 %v791
        %1517 = vmatprep.subr.mxu0 %v786
        %1518 = vmatpush1.msra.mxu0 %v785
        %1519 = vmatprep.subr.mxu0 %v780
        %1520 = vmatpush1.msra.mxu0 %v779
        %1521 = vmatprep.subr.mxu0 %v774
        %1522 = vmatpush1.msra.mxu0 %v773
        %1523 = vmatprep.subr.mxu0 %v768
        %1524 = vmatpush1.msra.mxu0 %v767
        %1525 = vmatprep.subr.mxu0 %v762
        %1526 = vmatpush1.msra.mxu0 %v761
        %1527 = vmatprep.subr.mxu0 %v756
        %1528 = vmatpush1.msra.mxu0 %v755
        %1529 = vmatprep.subr.mxu0 %v750
        %1530 = vmatpush1.msra.mxu0 %v749
        %1531 = vmatprep.subr.mxu0 %v744
        %1532 = vmatpush1.msra.mxu0 %v743
        %1533 = vmatprep.subr.mxu0 %v738
        %1534 = vmatpush1.msra.mxu0 %v737
        %1535 = vmatprep.subr.mxu0 %v732
        %1536 = vmatpush1.msra.mxu0 %v731
        %1537 = vmatprep.subr.mxu0 %v918
        %1538 = vmatpush2.msra.mxu0 %v917
        %1539 = vmatprep.subr.mxu0 %v912
        %1540 = vmatpush2.msra.mxu0 %v911
        %1541 = vmatprep.subr.mxu0 %v906
        %1542 = vmatpush2.msra.mxu0 %v905
        %1543 = vmatprep.subr.mxu0 %v900
        %1544 = vmatpush2.msra.mxu0 %v899
        %1545 = vmatprep.subr.mxu0 %v894
        %1546 = vmatpush2.msra.mxu0 %v893
        %1547 = vmatprep.subr.mxu0 %v888
        %1548 = vmatpush2.msra.mxu0 %v887
        %1549 = vmatprep.subr.mxu0 %v882
        %1550 = vmatpush2.msra.mxu0 %v881
        %1551 = vmatprep.subr.mxu0 %v876
        %1552 = vmatpush2.msra.mxu0 %v875
        %1553 = vmatprep.subr.mxu0 %v870
        %1554 = vmatpush2.msra.mxu0 %v869
        %1555 = vmatprep.subr.mxu0 %v864
        %1556 = vmatpush2.msra.mxu0 %v863
        %1557 = vmatprep.subr.mxu0 %v858
        %1558 = vmatpush2.msra.mxu0 %v857
        %1559 = vmatprep.subr.mxu0 %v852
        %1560 = vmatpush2.msra.mxu0 %v851
        %1561 = vmatprep.subr.mxu0 %v846
        %1562 = vmatpush2.msra.mxu0 %v845
        %1563 = vmatprep.subr.mxu0 %v840
        %1564 = vmatpush2.msra.mxu0 %v839
        %1565 = vmatprep.subr.mxu0 %v834
        %1566 = vmatpush2.msra.mxu0 %v833
        %1567 = vmatprep.subr.mxu0 %v828
        %1568 = vmatpush2.msra.mxu0 %v827
        %1569 = vmatprep.mubr.f32.mxu0 %v986
        %1570 = vmatmul.mubr.f32.gmra.mxu0 %v985
        %v1571 = vpop.f32.mrf.mxu0
        %v1572 = vadd.f32 %v1495, %v1571
        %v1573 = vpop.f32.mrf.mxu0
        %v1574 = vadd.f32 %v1497, %v1573
        %1575 = vmatprep.mubr.f32.mxu0 %v988
        %1576 = vmatmul.mubr.f32.gmra.mxu0 %v987
        %v1577 = vpop.f32.mrf.mxu0
        %v1578 = vadd.f32 %v1501, %v1577
        %v1579 = vpop.f32.mrf.mxu0
        %v1580 = vadd.f32 %v1503, %v1579
        %1581 = vdwg.mxu0
        %v1583 = vlaneseq
        %v1584 = vshrl.u32 %v1583, 7
        %v1585 = vsub.s32 0, %v1584
        %v1586 = vrot.slane %v983, %v1585
        %v1587 = vlaneseq
        %v1588 = vshrl.u32 %v1587, 7
        %v1589 = vsub.s32 1, %v1588
        %v1590 = vrot.slane %v983, %v1589
        %v1591 = vlaneseq
        %v1592 = vshrl.u32 %v1591, 7
        %v1593 = vsub.s32 2, %v1592
        %v1594 = vrot.slane %v983, %v1593
        %v1595 = vlaneseq
        %v1596 = vshrl.u32 %v1595, 7
        %v1597 = vsub.s32 3, %v1596
        %v1598 = vrot.slane %v983, %v1597
        %v1603 = vadd.f32 %v1264, %v1586
        %v1604 = vadd.f32 %v1266, %v1590
        %v1605 = vadd.f32 %v1418, %v1594
        %v1606 = vadd.f32 %v1420, %v1598
        %v1607 = vadd.f32 %v1270, %v1586
        %v1608 = vadd.f32 %v1272, %v1590
        %v1609 = vadd.f32 %v1424, %v1594
        %v1610 = vadd.f32 %v1426, %v1598
        %v1611 = vxor.u32 %v1603, 2147483648
        %v1612 = vxor.u32 %v1604, 2147483648
        %v1613 = vxor.u32 %v1605, 2147483648
        %v1614 = vxor.u32 %v1606, 2147483648
        %v1615 = vxor.u32 %v1607, 2147483648
        %v1616 = vxor.u32 %v1608, 2147483648
        %v1617 = vxor.u32 %v1609, 2147483648
        %v1618 = vxor.u32 %v1610, 2147483648
        %v1619 = vmul.f32 %v1611, 1.442695
        %v1620 = vpow.pop %v1619
        %v1621 = vmul.f32 %v1612, 1.442695
        %v1622 = vpow.pop %v1621
        %v1623 = vmul.f32 %v1613, 1.442695
        %v1624 = vpow.pop %v1623
        %v1625 = vmul.f32 %v1614, 1.442695
        %v1626 = vpow.pop %v1625
        %v1627 = vmul.f32 %v1615, 1.442695
        %v1628 = vpow.pop %v1627
        %v1629 = vmul.f32 %v1616, 1.442695
        %v1630 = vpow.pop %v1629
        %v1631 = vmul.f32 %v1617, 1.442695
        %v1632 = vpow.pop %v1631
        %v1633 = vmul.f32 %v1618, 1.442695
        %v1634 = vpow.pop %v1633
        %v1635 = vadd.f32 %v1620, 1.0
        %v1636 = vadd.f32 %v1622, 1.0
        %v1637 = vadd.f32 %v1624, 1.0
        %v1638 = vadd.f32 %v1626, 1.0
        %v1639 = vadd.f32 %v1628, 1.0
        %v1640 = vadd.f32 %v1630, 1.0
        %v1641 = vadd.f32 %v1632, 1.0
        %v1642 = vadd.f32 %v1634, 1.0
        %v1643 = vrcp.pop %v1635
        %v1644 = vmul.f32 1.0, %v1643
        %v1645 = vrcp.pop %v1636
        %v1646 = vmul.f32 1.0, %v1645
        %v1647 = vrcp.pop %v1637
        %v1648 = vmul.f32 1.0, %v1647
        %v1649 = vrcp.pop %v1638
        %v1650 = vmul.f32 1.0, %v1649
        %v1651 = vrcp.pop %v1639
        %v1652 = vmul.f32 1.0, %v1651
        %v1653 = vrcp.pop %v1640
        %v1654 = vmul.f32 1.0, %v1653
        %v1655 = vrcp.pop %v1641
        %v1656 = vmul.f32 1.0, %v1655
        %v1657 = vrcp.pop %v1642
        %v1658 = vmul.f32 1.0, %v1657
        %v1660 = vlaneseq
        %v1661 = vshrl.u32 %v1660, 7
        %v1662 = vsub.s32 0, %v1661
        %v1663 = vrot.slane %v984, %v1662
        %v1664 = vlaneseq
        %v1665 = vshrl.u32 %v1664, 7
        %v1666 = vsub.s32 1, %v1665
        %v1667 = vrot.slane %v984, %v1666
        %v1670 = vadd.f32 %v1572, %v1663
        %v1671 = vadd.f32 %v1574, %v1667
        %v1672 = vadd.f32 %v1578, %v1663
        %v1673 = vadd.f32 %v1580, %v1667
        %v1674 = vmul.f32 %v1648, %v985
        %v1675 = vmul.f32 %v1650, %v986
        %v1676 = vmul.f32 %v1656, %v987
        %v1677 = vmul.f32 %v1658, %v988
        %1678 = vmatprep.subr.mxu0 %v950
        %1679 = vmatpush1.msra.mxu0 %v949
        %1680 = vmatprep.subr.mxu0 %v948
        %1681 = vmatpush1.msra.mxu0 %v947
        %1682 = vmatprep.subr.mxu0 %v946
        %1683 = vmatpush1.msra.mxu0 %v945
        %1684 = vmatprep.subr.mxu0 %v944
        %1685 = vmatpush1.msra.mxu0 %v943
        %1686 = vmatprep.subr.mxu0 %v942
        %1687 = vmatpush1.msra.mxu0 %v941
        %1688 = vmatprep.subr.mxu0 %v940
        %1689 = vmatpush1.msra.mxu0 %v939
        %1690 = vmatprep.subr.mxu0 %v938
        %1691 = vmatpush1.msra.mxu0 %v937
        %1692 = vmatprep.subr.mxu0 %v936
        %1693 = vmatpush1.msra.mxu0 %v935
        %1694 = vmatprep.subr.mxu0 %v934
        %1695 = vmatpush1.msra.mxu0 %v933
        %1696 = vmatprep.subr.mxu0 %v932
        %1697 = vmatpush1.msra.mxu0 %v931
        %1698 = vmatprep.subr.mxu0 %v930
        %1699 = vmatpush1.msra.mxu0 %v929
        %1700 = vmatprep.subr.mxu0 %v928
        %1701 = vmatpush1.msra.mxu0 %v927
        %1702 = vmatprep.subr.mxu0 %v926
        %1703 = vmatpush1.msra.mxu0 %v925
        %1704 = vmatprep.subr.mxu0 %v924
        %1705 = vmatpush1.msra.mxu0 %v923
        %1706 = vmatprep.subr.mxu0 %v922
        %1707 = vmatpush1.msra.mxu0 %v921
        %1708 = vmatprep.subr.mxu0 %v920
        %1709 = vmatpush1.msra.mxu0 %v919
        %1710 = vmatprep.subr.mxu0 %v982
        %1711 = vmatpush2.msra.mxu0 %v981
        %1712 = vmatprep.subr.mxu0 %v980
        %1713 = vmatpush2.msra.mxu0 %v979
        %1714 = vmatprep.subr.mxu0 %v978
        %1715 = vmatpush2.msra.mxu0 %v977
        %1716 = vmatprep.subr.mxu0 %v976
        %1717 = vmatpush2.msra.mxu0 %v975
        %1718 = vmatprep.subr.mxu0 %v974
        %1719 = vmatpush2.msra.mxu0 %v973
        %1720 = vmatprep.subr.mxu0 %v972
        %1721 = vmatpush2.msra.mxu0 %v971
        %1722 = vmatprep.subr.mxu0 %v970
        %1723 = vmatpush2.msra.mxu0 %v969
        %1724 = vmatprep.subr.mxu0 %v968
        %1725 = vmatpush2.msra.mxu0 %v967
        %1726 = vmatprep.subr.mxu0 %v966
        %1727 = vmatpush2.msra.mxu0 %v965
        %1728 = vmatprep.subr.mxu0 %v964
        %1729 = vmatpush2.msra.mxu0 %v963
        %1730 = vmatprep.subr.mxu0 %v962
        %1731 = vmatpush2.msra.mxu0 %v961
        %1732 = vmatprep.subr.mxu0 %v960
        %1733 = vmatpush2.msra.mxu0 %v959
        %1734 = vmatprep.subr.mxu0 %v958
        %1735 = vmatpush2.msra.mxu0 %v957
        %1736 = vmatprep.subr.mxu0 %v956
        %1737 = vmatpush2.msra.mxu0 %v955
        %1738 = vmatprep.subr.mxu0 %v954
        %1739 = vmatpush2.msra.mxu0 %v953
        %1740 = vmatprep.subr.mxu0 %v952
        %1741 = vmatpush2.msra.mxu0 %v951
        %1742 = vmatprep.mubr.f32.mxu0 %v1675
        %1743 = vmatmul.mubr.f32.gmra.mxu0 %v1674
        %v1744 = vpop.f32.mrf.mxu0
        %v1745 = vadd.f32 0.0, %v1744
        %v1746 = vpop.f32.mrf.mxu0
        %v1747 = vadd.f32 0.0, %v1746
        %1748 = vmatprep.mubr.f32.mxu0 %v1677
        %1749 = vmatmul.mubr.f32.gmra.mxu0 %v1676
        %v1750 = vpop.f32.mrf.mxu0
        %v1751 = vadd.f32 0.0, %v1750
        %v1752 = vpop.f32.mrf.mxu0
        %v1753 = vadd.f32 0.0, %v1752
        %1754 = vdwg.mxu0
        %v1755 = vadd.f32 %v1670, %v1745
        %v1756 = vadd.f32 %v1671, %v1747
        %v1757 = vadd.f32 %v1672, %v1751
        %v1758 = vadd.f32 %v1673, %v1753
        %v1759 = vtanh.pop %v1755
        %v1760 = vtanh.pop %v1756
        %v1761 = vtanh.pop %v1757
        %v1762 = vtanh.pop %v1758
        %v1763 = vsub.f32 1.0, %v1644
        %v1764 = vsub.f32 1.0, %v1646
        %v1765 = vsub.f32 1.0, %v1652
        %v1766 = vsub.f32 1.0, %v1654
        %v1767 = vmul.f32 %v1763, %v985
        %v1768 = vmul.f32 %v1764, %v986
        %v1769 = vmul.f32 %v1765, %v987
        %v1770 = vmul.f32 %v1766, %v988
        %v1771 = vmul.f32 %v1644, %v1759
        %v1772 = vmul.f32 %v1646, %v1760
        %v1773 = vmul.f32 %v1652, %v1761
        %v1774 = vmul.f32 %v1654, %v1762
        %v1775 = vadd.f32 %v1767, %v1771
        %v1776 = vadd.f32 %v1768, %v1772
        %v1777 = vadd.f32 %v1769, %v1773
        %v1778 = vadd.f32 %v1770, %v1774
        %1781 = vrot.lane.b32.xlu0 %v1775, 96
        %v1782 = vpop.permute.xlu0 %1781
        %1783 = vrot.lane.b32.xlu0 %v1777, 96
        %v1784 = vpop.permute.xlu0 %1783
        %v1787 = vadd.f32 %v1775, %v1782
        %v1788 = vadd.f32 %v1777, %v1784
        %1791 = vrot.lane.b32.xlu0 %v1775, 64
        %v1792 = vpop.permute.xlu0 %1791
        %1793 = vrot.lane.b32.xlu0 %v1776, 64
        %v1794 = vpop.permute.xlu0 %1793
        %1795 = vrot.lane.b32.xlu0 %v1777, 64
        %v1796 = vpop.permute.xlu0 %1795
        %1797 = vrot.lane.b32.xlu0 %v1778, 64
        %v1798 = vpop.permute.xlu0 %1797
        %v1799 = vsel %vm1009, %v1792, %v1794
        %v1800 = vsel %vm1009, %v1796, %v1798
        %v1805 = vmul.f32 %v531, %v1799
        %v1806 = vmul.f32 %v532, %v1794
        %v1807 = vmul.f32 %v533, %v1800
        %v1808 = vmul.f32 %v534, %v1798
        %1811 = vrot.lane.b32.xlu0 %v1805, 96
        %v1812 = vpop.permute.xlu0 %1811
        %1813 = vrot.lane.b32.xlu0 %v1807, 96
        %v1814 = vpop.permute.xlu0 %1813
        %v1817 = vadd.f32 %v1805, %v1812
        %v1818 = vadd.f32 %v1807, %v1814
        %1819 = vrot.lane.b32.xlu0 %v1805, 64
        %v1820 = vpop.permute.xlu0 %1819
        %1821 = vrot.lane.b32.xlu0 %v1807, 64
        %v1822 = vpop.permute.xlu0 %1821
        %v1825 = vadd.f32 %v1817, %v1820
        %v1826 = vadd.f32 %v1818, %v1822
        %1827 = vrot.lane.b32.xlu0 %v1805, 32
        %v1828 = vpop.permute.xlu0 %1827
        %1829 = vrot.lane.b32.xlu0 %v1807, 32
        %v1830 = vpop.permute.xlu0 %1829
        %v1833 = vadd.f32 %v1825, %v1828
        %v1834 = vadd.f32 %v1826, %v1830
        %v1835 = vadd.f32 %v1833, %v1806
        %v1836 = vadd.f32 %v1834, %v1808
        %1839 = vrot.lane.b32.xlu0 %v1806, 96
        %v1840 = vpop.permute.xlu0 %1839
        %1841 = vrot.lane.b32.xlu0 %v1808, 96
        %v1842 = vpop.permute.xlu0 %1841
        %v1845 = vadd.f32 %v1835, %v1840
        %v1846 = vadd.f32 %v1836, %v1842
        %1849 = vrot.lane.b32.xlu0 %v1787, 32
        %v1850 = vpop.permute.xlu0 %1849
        %1851 = vrot.lane.b32.xlu0 %v1788, 32
        %v1852 = vpop.permute.xlu0 %1851
        %1855 = vrot.lane.b32.xlu0 %v1787, 64
        %v1856 = vpop.permute.xlu0 %1855
        %1857 = vrot.lane.b32.xlu0 %v1788, 64
        %v1858 = vpop.permute.xlu0 %1857
        %1861 = vrot.lane.b32.xlu0 %v1787, 96
        %v1862 = vpop.permute.xlu0 %1861
        %1863 = vrot.lane.b32.xlu0 %v1788, 96
        %v1864 = vpop.permute.xlu0 %1863
        %v1867 = vsel %vm1078, %v1787, %v1850
        %v1868 = vsel %vm1078, %v1788, %v1852
        %v1869 = vsel %vm1009, %v1867, %v1856
        %v1870 = vsel %vm1009, %v1868, %v1858
        %v1871 = vsel %vm1083, %v1869, %v1862
        %v1872 = vsel %vm1083, %v1870, %v1864
        %v1873 = vmul.f32 %v531, %v1871
        %v1874 = vmul.f32 %v532, %v1867
        %v1875 = vmul.f32 %v533, %v1872
        %v1876 = vmul.f32 %v534, %v1868
        %1879 = vrot.lane.b32.xlu0 %v1845, 32
        %v1880 = vpop.permute.xlu0 %1879
        %1881 = vrot.lane.b32.xlu0 %v1846, 32
        %v1882 = vpop.permute.xlu0 %1881
        %1889 = vrot.lane.b32.xlu0 %v1873, 64
        %v1890 = vpop.permute.xlu0 %1889
        %1891 = vrot.lane.b32.xlu0 %v1874, 64
        %v1892 = vpop.permute.xlu0 %1891
        %1893 = vrot.lane.b32.xlu0 %v1875, 64
        %v1894 = vpop.permute.xlu0 %1893
        %1895 = vrot.lane.b32.xlu0 %v1876, 64
        %v1896 = vpop.permute.xlu0 %1895
        %v1897 = vsel %vm1009, %v1890, %v1892
        %v1898 = vsel %vm1009, %v1894, %v1896
        %v1903 = vsel %vm1078, %v1845, %v1880
        %v1904 = vsel %vm1078, %v1846, %v1882
        %v1905 = vsel %vm1009, %v1903, %v1890
        %v1906 = vsel %vm1009, %v1904, %v1894
        %1907 = vmatprep.subr.mxu0 %v626
        %1908 = vmatpush1.msra.mxu0 %v625
        %1909 = vmatprep.subr.mxu0 %v620
        %1910 = vmatpush1.msra.mxu0 %v619
        %1911 = vmatprep.subr.mxu0 %v614
        %1912 = vmatpush1.msra.mxu0 %v613
        %1913 = vmatprep.subr.mxu0 %v608
        %1914 = vmatpush1.msra.mxu0 %v607
        %1915 = vmatprep.subr.mxu0 %v602
        %1916 = vmatpush1.msra.mxu0 %v601
        %1917 = vmatprep.subr.mxu0 %v596
        %1918 = vmatpush1.msra.mxu0 %v595
        %1919 = vmatprep.subr.mxu0 %v590
        %1920 = vmatpush1.msra.mxu0 %v589
        %1921 = vmatprep.subr.mxu0 %v584
        %1922 = vmatpush1.msra.mxu0 %v583
        %1923 = vmatprep.subr.mxu0 %v578
        %1924 = vmatpush1.msra.mxu0 %v577
        %1925 = vmatprep.subr.mxu0 %v572
        %1926 = vmatpush1.msra.mxu0 %v571
        %1927 = vmatprep.subr.mxu0 %v566
        %1928 = vmatpush1.msra.mxu0 %v565
        %1929 = vmatprep.subr.mxu0 %v560
        %1930 = vmatpush1.msra.mxu0 %v559
        %1931 = vmatprep.subr.mxu0 %v554
        %1932 = vmatpush1.msra.mxu0 %v553
        %1933 = vmatprep.subr.mxu0 %v548
        %1934 = vmatpush1.msra.mxu0 %v547
        %1935 = vmatprep.subr.mxu0 %v542
        %1936 = vmatpush1.msra.mxu0 %v541
        %1937 = vmatprep.subr.mxu0 %v536
        %1938 = vmatpush1.msra.mxu0 %v535
        %1939 = vmatprep.subr.mxu0 %v722
        %1940 = vmatpush2.msra.mxu0 %v721
        %1941 = vmatprep.subr.mxu0 %v716
        %1942 = vmatpush2.msra.mxu0 %v715
        %1943 = vmatprep.subr.mxu0 %v710
        %1944 = vmatpush2.msra.mxu0 %v709
        %1945 = vmatprep.subr.mxu0 %v704
        %1946 = vmatpush2.msra.mxu0 %v703
        %1947 = vmatprep.subr.mxu0 %v698
        %1948 = vmatpush2.msra.mxu0 %v697
        %1949 = vmatprep.subr.mxu0 %v692
        %1950 = vmatpush2.msra.mxu0 %v691
        %1951 = vmatprep.subr.mxu0 %v686
        %1952 = vmatpush2.msra.mxu0 %v685
        %1953 = vmatprep.subr.mxu0 %v680
        %1954 = vmatpush2.msra.mxu0 %v679
        %1955 = vmatprep.subr.mxu0 %v674
        %1956 = vmatpush2.msra.mxu0 %v673
        %1957 = vmatprep.subr.mxu0 %v668
        %1958 = vmatpush2.msra.mxu0 %v667
        %1959 = vmatprep.subr.mxu0 %v662
        %1960 = vmatpush2.msra.mxu0 %v661
        %1961 = vmatprep.subr.mxu0 %v656
        %1962 = vmatpush2.msra.mxu0 %v655
        %1963 = vmatprep.subr.mxu0 %v650
        %1964 = vmatpush2.msra.mxu0 %v649
        %1965 = vmatprep.subr.mxu0 %v644
        %1966 = vmatpush2.msra.mxu0 %v643
        %1967 = vmatprep.subr.mxu0 %v638
        %1968 = vmatpush2.msra.mxu0 %v637
        %1969 = vmatprep.subr.mxu0 %v632
        %1970 = vmatpush2.msra.mxu0 %v631
        %1971 = vmatprep.mubr.f32.mxu0 %v1897
        %1972 = vmatmul.mubr.f32.gmra.mxu0 %v1905
        %v1973 = vpop.f32.mrf.mxu0
        %v1974 = vadd.f32 0.0, %v1973
        %v1975 = vpop.f32.mrf.mxu0
        %v1976 = vadd.f32 0.0, %v1975
        %1977 = vmatprep.mubr.f32.mxu0 %v1898
        %1978 = vmatmul.mubr.f32.gmra.mxu0 %v1906
        %v1979 = vpop.f32.mrf.mxu0
        %v1980 = vadd.f32 0.0, %v1979
        %v1981 = vpop.f32.mrf.mxu0
        %v1982 = vadd.f32 0.0, %v1981
        %1983 = vdwg.mxu0
        %1984 = vmatprep.subr.mxu0 %v818
        %1985 = vmatpush1.msra.mxu0 %v817
        %1986 = vmatprep.subr.mxu0 %v812
        %1987 = vmatpush1.msra.mxu0 %v811
        %1988 = vmatprep.subr.mxu0 %v806
        %1989 = vmatpush1.msra.mxu0 %v805
        %1990 = vmatprep.subr.mxu0 %v800
        %1991 = vmatpush1.msra.mxu0 %v799
        %1992 = vmatprep.subr.mxu0 %v794
        %1993 = vmatpush1.msra.mxu0 %v793
        %1994 = vmatprep.subr.mxu0 %v788
        %1995 = vmatpush1.msra.mxu0 %v787
        %1996 = vmatprep.subr.mxu0 %v782
        %1997 = vmatpush1.msra.mxu0 %v781
        %1998 = vmatprep.subr.mxu0 %v776
        %1999 = vmatpush1.msra.mxu0 %v775
        %2000 = vmatprep.subr.mxu0 %v770
        %2001 = vmatpush1.msra.mxu0 %v769
        %2002 = vmatprep.subr.mxu0 %v764
        %2003 = vmatpush1.msra.mxu0 %v763
        %2004 = vmatprep.subr.mxu0 %v758
        %2005 = vmatpush1.msra.mxu0 %v757
        %2006 = vmatprep.subr.mxu0 %v752
        %2007 = vmatpush1.msra.mxu0 %v751
        %2008 = vmatprep.subr.mxu0 %v746
        %2009 = vmatpush1.msra.mxu0 %v745
        %2010 = vmatprep.subr.mxu0 %v740
        %2011 = vmatpush1.msra.mxu0 %v739
        %2012 = vmatprep.subr.mxu0 %v734
        %2013 = vmatpush1.msra.mxu0 %v733
        %2014 = vmatprep.subr.mxu0 %v728
        %2015 = vmatpush1.msra.mxu0 %v727
        %2016 = vmatprep.subr.mxu0 %v914
        %2017 = vmatpush2.msra.mxu0 %v913
        %2018 = vmatprep.subr.mxu0 %v908
        %2019 = vmatpush2.msra.mxu0 %v907
        %2020 = vmatprep.subr.mxu0 %v902
        %2021 = vmatpush2.msra.mxu0 %v901
        %2022 = vmatprep.subr.mxu0 %v896
        %2023 = vmatpush2.msra.mxu0 %v895
        %2024 = vmatprep.subr.mxu0 %v890
        %2025 = vmatpush2.msra.mxu0 %v889
        %2026 = vmatprep.subr.mxu0 %v884
        %2027 = vmatpush2.msra.mxu0 %v883
        %2028 = vmatprep.subr.mxu0 %v878
        %2029 = vmatpush2.msra.mxu0 %v877
        %2030 = vmatprep.subr.mxu0 %v872
        %2031 = vmatpush2.msra.mxu0 %v871
        %2032 = vmatprep.subr.mxu0 %v866
        %2033 = vmatpush2.msra.mxu0 %v865
        %2034 = vmatprep.subr.mxu0 %v860
        %2035 = vmatpush2.msra.mxu0 %v859
        %2036 = vmatprep.subr.mxu0 %v854
        %2037 = vmatpush2.msra.mxu0 %v853
        %2038 = vmatprep.subr.mxu0 %v848
        %2039 = vmatpush2.msra.mxu0 %v847
        %2040 = vmatprep.subr.mxu0 %v842
        %2041 = vmatpush2.msra.mxu0 %v841
        %2042 = vmatprep.subr.mxu0 %v836
        %2043 = vmatpush2.msra.mxu0 %v835
        %2044 = vmatprep.subr.mxu0 %v830
        %2045 = vmatpush2.msra.mxu0 %v829
        %2046 = vmatprep.subr.mxu0 %v824
        %2047 = vmatpush2.msra.mxu0 %v823
        %2048 = vmatprep.mubr.f32.mxu0 %v1776
        %2049 = vmatmul.mubr.f32.gmra.mxu0 %v1775
        %v2050 = vpop.f32.mrf.mxu0
        %v2051 = vadd.f32 %v1974, %v2050
        %v2052 = vpop.f32.mrf.mxu0
        %v2053 = vadd.f32 %v1976, %v2052
        %2054 = vmatprep.mubr.f32.mxu0 %v1778
        %2055 = vmatmul.mubr.f32.gmra.mxu0 %v1777
        %v2056 = vpop.f32.mrf.mxu0
        %v2057 = vadd.f32 %v1980, %v2056
        %v2058 = vpop.f32.mrf.mxu0
        %v2059 = vadd.f32 %v1982, %v2058
        %2060 = vdwg.mxu0
        %2061 = vmatprep.subr.mxu0 %v628
        %2062 = vmatpush1.msra.mxu0 %v627
        %2063 = vmatprep.subr.mxu0 %v622
        %2064 = vmatpush1.msra.mxu0 %v621
        %2065 = vmatprep.subr.mxu0 %v616
        %2066 = vmatpush1.msra.mxu0 %v615
        %2067 = vmatprep.subr.mxu0 %v610
        %2068 = vmatpush1.msra.mxu0 %v609
        %2069 = vmatprep.subr.mxu0 %v604
        %2070 = vmatpush1.msra.mxu0 %v603
        %2071 = vmatprep.subr.mxu0 %v598
        %2072 = vmatpush1.msra.mxu0 %v597
        %2073 = vmatprep.subr.mxu0 %v592
        %2074 = vmatpush1.msra.mxu0 %v591
        %2075 = vmatprep.subr.mxu0 %v586
        %2076 = vmatpush1.msra.mxu0 %v585
        %2077 = vmatprep.subr.mxu0 %v580
        %2078 = vmatpush1.msra.mxu0 %v579
        %2079 = vmatprep.subr.mxu0 %v574
        %2080 = vmatpush1.msra.mxu0 %v573
        %2081 = vmatprep.subr.mxu0 %v568
        %2082 = vmatpush1.msra.mxu0 %v567
        %2083 = vmatprep.subr.mxu0 %v562
        %2084 = vmatpush1.msra.mxu0 %v561
        %2085 = vmatprep.subr.mxu0 %v556
        %2086 = vmatpush1.msra.mxu0 %v555
        %2087 = vmatprep.subr.mxu0 %v550
        %2088 = vmatpush1.msra.mxu0 %v549
        %2089 = vmatprep.subr.mxu0 %v544
        %2090 = vmatpush1.msra.mxu0 %v543
        %2091 = vmatprep.subr.mxu0 %v538
        %2092 = vmatpush1.msra.mxu0 %v537
        %2093 = vmatprep.subr.mxu0 %v724
        %2094 = vmatpush2.msra.mxu0 %v723
        %2095 = vmatprep.subr.mxu0 %v718
        %2096 = vmatpush2.msra.mxu0 %v717
        %2097 = vmatprep.subr.mxu0 %v712
        %2098 = vmatpush2.msra.mxu0 %v711
        %2099 = vmatprep.subr.mxu0 %v706
        %2100 = vmatpush2.msra.mxu0 %v705
        %2101 = vmatprep.subr.mxu0 %v700
        %2102 = vmatpush2.msra.mxu0 %v699
        %2103 = vmatprep.subr.mxu0 %v694
        %2104 = vmatpush2.msra.mxu0 %v693
        %2105 = vmatprep.subr.mxu0 %v688
        %2106 = vmatpush2.msra.mxu0 %v687
        %2107 = vmatprep.subr.mxu0 %v682
        %2108 = vmatpush2.msra.mxu0 %v681
        %2109 = vmatprep.subr.mxu0 %v676
        %2110 = vmatpush2.msra.mxu0 %v675
        %2111 = vmatprep.subr.mxu0 %v670
        %2112 = vmatpush2.msra.mxu0 %v669
        %2113 = vmatprep.subr.mxu0 %v664
        %2114 = vmatpush2.msra.mxu0 %v663
        %2115 = vmatprep.subr.mxu0 %v658
        %2116 = vmatpush2.msra.mxu0 %v657
        %2117 = vmatprep.subr.mxu0 %v652
        %2118 = vmatpush2.msra.mxu0 %v651
        %2119 = vmatprep.subr.mxu0 %v646
        %2120 = vmatpush2.msra.mxu0 %v645
        %2121 = vmatprep.subr.mxu0 %v640
        %2122 = vmatpush2.msra.mxu0 %v639
        %2123 = vmatprep.subr.mxu0 %v634
        %2124 = vmatpush2.msra.mxu0 %v633
        %2125 = vmatprep.mubr.f32.mxu0 %v1897
        %2126 = vmatmul.mubr.f32.gmra.mxu0 %v1905
        %v2127 = vpop.f32.mrf.mxu0
        %v2128 = vadd.f32 0.0, %v2127
        %v2129 = vpop.f32.mrf.mxu0
        %v2130 = vadd.f32 0.0, %v2129
        %2131 = vmatprep.mubr.f32.mxu0 %v1898
        %2132 = vmatmul.mubr.f32.gmra.mxu0 %v1906
        %v2133 = vpop.f32.mrf.mxu0
        %v2134 = vadd.f32 0.0, %v2133
        %v2135 = vpop.f32.mrf.mxu0
        %v2136 = vadd.f32 0.0, %v2135
        %2137 = vdwg.mxu0
        %2138 = vmatprep.subr.mxu0 %v820
        %2139 = vmatpush1.msra.mxu0 %v819
        %2140 = vmatprep.subr.mxu0 %v814
        %2141 = vmatpush1.msra.mxu0 %v813
        %2142 = vmatprep.subr.mxu0 %v808
        %2143 = vmatpush1.msra.mxu0 %v807
        %2144 = vmatprep.subr.mxu0 %v802
        %2145 = vmatpush1.msra.mxu0 %v801
        %2146 = vmatprep.subr.mxu0 %v796
        %2147 = vmatpush1.msra.mxu0 %v795
        %2148 = vmatprep.subr.mxu0 %v790
        %2149 = vmatpush1.msra.mxu0 %v789
        %2150 = vmatprep.subr.mxu0 %v784
        %2151 = vmatpush1.msra.mxu0 %v783
        %2152 = vmatprep.subr.mxu0 %v778
        %2153 = vmatpush1.msra.mxu0 %v777
        %2154 = vmatprep.subr.mxu0 %v772
        %2155 = vmatpush1.msra.mxu0 %v771
        %2156 = vmatprep.subr.mxu0 %v766
        %2157 = vmatpush1.msra.mxu0 %v765
        %2158 = vmatprep.subr.mxu0 %v760
        %2159 = vmatpush1.msra.mxu0 %v759
        %2160 = vmatprep.subr.mxu0 %v754
        %2161 = vmatpush1.msra.mxu0 %v753
        %2162 = vmatprep.subr.mxu0 %v748
        %2163 = vmatpush1.msra.mxu0 %v747
        %2164 = vmatprep.subr.mxu0 %v742
        %2165 = vmatpush1.msra.mxu0 %v741
        %2166 = vmatprep.subr.mxu0 %v736
        %2167 = vmatpush1.msra.mxu0 %v735
        %2168 = vmatprep.subr.mxu0 %v730
        %2169 = vmatpush1.msra.mxu0 %v729
        %2170 = vmatprep.subr.mxu0 %v916
        %2171 = vmatpush2.msra.mxu0 %v915
        %2172 = vmatprep.subr.mxu0 %v910
        %2173 = vmatpush2.msra.mxu0 %v909
        %2174 = vmatprep.subr.mxu0 %v904
        %2175 = vmatpush2.msra.mxu0 %v903
        %2176 = vmatprep.subr.mxu0 %v898
        %2177 = vmatpush2.msra.mxu0 %v897
        %2178 = vmatprep.subr.mxu0 %v892
        %2179 = vmatpush2.msra.mxu0 %v891
        %2180 = vmatprep.subr.mxu0 %v886
        %2181 = vmatpush2.msra.mxu0 %v885
        %2182 = vmatprep.subr.mxu0 %v880
        %2183 = vmatpush2.msra.mxu0 %v879
        %2184 = vmatprep.subr.mxu0 %v874
        %2185 = vmatpush2.msra.mxu0 %v873
        %2186 = vmatprep.subr.mxu0 %v868
        %2187 = vmatpush2.msra.mxu0 %v867
        %2188 = vmatprep.subr.mxu0 %v862
        %2189 = vmatpush2.msra.mxu0 %v861
        %2190 = vmatprep.subr.mxu0 %v856
        %2191 = vmatpush2.msra.mxu0 %v855
        %2192 = vmatprep.subr.mxu0 %v850
        %2193 = vmatpush2.msra.mxu0 %v849
        %2194 = vmatprep.subr.mxu0 %v844
        %2195 = vmatpush2.msra.mxu0 %v843
        %2196 = vmatprep.subr.mxu0 %v838
        %2197 = vmatpush2.msra.mxu0 %v837
        %2198 = vmatprep.subr.mxu0 %v832
        %2199 = vmatpush2.msra.mxu0 %v831
        %2200 = vmatprep.subr.mxu0 %v826
        %2201 = vmatpush2.msra.mxu0 %v825
        %2202 = vmatprep.mubr.f32.mxu0 %v1776
        %2203 = vmatmul.mubr.f32.gmra.mxu0 %v1775
        %v2204 = vpop.f32.mrf.mxu0
        %v2205 = vadd.f32 %v2128, %v2204
        %v2206 = vpop.f32.mrf.mxu0
        %v2207 = vadd.f32 %v2130, %v2206
        %2208 = vmatprep.mubr.f32.mxu0 %v1778
        %2209 = vmatmul.mubr.f32.gmra.mxu0 %v1777
        %v2210 = vpop.f32.mrf.mxu0
        %v2211 = vadd.f32 %v2134, %v2210
        %v2212 = vpop.f32.mrf.mxu0
        %v2213 = vadd.f32 %v2136, %v2212
        %2214 = vdwg.mxu0
        %2215 = vmatprep.subr.mxu0 %v630
        %2216 = vmatpush1.msra.mxu0 %v629
        %2217 = vmatprep.subr.mxu0 %v624
        %2218 = vmatpush1.msra.mxu0 %v623
        %2219 = vmatprep.subr.mxu0 %v618
        %2220 = vmatpush1.msra.mxu0 %v617
        %2221 = vmatprep.subr.mxu0 %v612
        %2222 = vmatpush1.msra.mxu0 %v611
        %2223 = vmatprep.subr.mxu0 %v606
        %2224 = vmatpush1.msra.mxu0 %v605
        %2225 = vmatprep.subr.mxu0 %v600
        %2226 = vmatpush1.msra.mxu0 %v599
        %2227 = vmatprep.subr.mxu0 %v594
        %2228 = vmatpush1.msra.mxu0 %v593
        %2229 = vmatprep.subr.mxu0 %v588
        %2230 = vmatpush1.msra.mxu0 %v587
        %2231 = vmatprep.subr.mxu0 %v582
        %2232 = vmatpush1.msra.mxu0 %v581
        %2233 = vmatprep.subr.mxu0 %v576
        %2234 = vmatpush1.msra.mxu0 %v575
        %2235 = vmatprep.subr.mxu0 %v570
        %2236 = vmatpush1.msra.mxu0 %v569
        %2237 = vmatprep.subr.mxu0 %v564
        %2238 = vmatpush1.msra.mxu0 %v563
        %2239 = vmatprep.subr.mxu0 %v558
        %2240 = vmatpush1.msra.mxu0 %v557
        %2241 = vmatprep.subr.mxu0 %v552
        %2242 = vmatpush1.msra.mxu0 %v551
        %2243 = vmatprep.subr.mxu0 %v546
        %2244 = vmatpush1.msra.mxu0 %v545
        %2245 = vmatprep.subr.mxu0 %v540
        %2246 = vmatpush1.msra.mxu0 %v539
        %2247 = vmatprep.subr.mxu0 %v726
        %2248 = vmatpush2.msra.mxu0 %v725
        %2249 = vmatprep.subr.mxu0 %v720
        %2250 = vmatpush2.msra.mxu0 %v719
        %2251 = vmatprep.subr.mxu0 %v714
        %2252 = vmatpush2.msra.mxu0 %v713
        %2253 = vmatprep.subr.mxu0 %v708
        %2254 = vmatpush2.msra.mxu0 %v707
        %2255 = vmatprep.subr.mxu0 %v702
        %2256 = vmatpush2.msra.mxu0 %v701
        %2257 = vmatprep.subr.mxu0 %v696
        %2258 = vmatpush2.msra.mxu0 %v695
        %2259 = vmatprep.subr.mxu0 %v690
        %2260 = vmatpush2.msra.mxu0 %v689
        %2261 = vmatprep.subr.mxu0 %v684
        %2262 = vmatpush2.msra.mxu0 %v683
        %2263 = vmatprep.subr.mxu0 %v678
        %2264 = vmatpush2.msra.mxu0 %v677
        %2265 = vmatprep.subr.mxu0 %v672
        %2266 = vmatpush2.msra.mxu0 %v671
        %2267 = vmatprep.subr.mxu0 %v666
        %2268 = vmatpush2.msra.mxu0 %v665
        %2269 = vmatprep.subr.mxu0 %v660
        %2270 = vmatpush2.msra.mxu0 %v659
        %2271 = vmatprep.subr.mxu0 %v654
        %2272 = vmatpush2.msra.mxu0 %v653
        %2273 = vmatprep.subr.mxu0 %v648
        %2274 = vmatpush2.msra.mxu0 %v647
        %2275 = vmatprep.subr.mxu0 %v642
        %2276 = vmatpush2.msra.mxu0 %v641
        %2277 = vmatprep.subr.mxu0 %v636
        %2278 = vmatpush2.msra.mxu0 %v635
        %2279 = vmatprep.mubr.f32.mxu0 %v1897
        %2280 = vmatmul.mubr.f32.gmra.mxu0 %v1905
        %v2281 = vpop.f32.mrf.mxu0
        %v2282 = vadd.f32 0.0, %v2281
        %v2283 = vpop.f32.mrf.mxu0
        %v2284 = vadd.f32 0.0, %v2283
        %2285 = vmatprep.mubr.f32.mxu0 %v1898
        %2286 = vmatmul.mubr.f32.gmra.mxu0 %v1906
        %v2287 = vpop.f32.mrf.mxu0
        %v2288 = vadd.f32 0.0, %v2287
        %v2289 = vpop.f32.mrf.mxu0
        %v2290 = vadd.f32 0.0, %v2289
        %2291 = vdwg.mxu0
        %2292 = vmatprep.subr.mxu0 %v822
        %2293 = vmatpush1.msra.mxu0 %v821
        %2294 = vmatprep.subr.mxu0 %v816
        %2295 = vmatpush1.msra.mxu0 %v815
        %2296 = vmatprep.subr.mxu0 %v810
        %2297 = vmatpush1.msra.mxu0 %v809
        %2298 = vmatprep.subr.mxu0 %v804
        %2299 = vmatpush1.msra.mxu0 %v803
        %2300 = vmatprep.subr.mxu0 %v798
        %2301 = vmatpush1.msra.mxu0 %v797
        %2302 = vmatprep.subr.mxu0 %v792
        %2303 = vmatpush1.msra.mxu0 %v791
        %2304 = vmatprep.subr.mxu0 %v786
        %2305 = vmatpush1.msra.mxu0 %v785
        %2306 = vmatprep.subr.mxu0 %v780
        %2307 = vmatpush1.msra.mxu0 %v779
        %2308 = vmatprep.subr.mxu0 %v774
        %2309 = vmatpush1.msra.mxu0 %v773
        %2310 = vmatprep.subr.mxu0 %v768
        %2311 = vmatpush1.msra.mxu0 %v767
        %2312 = vmatprep.subr.mxu0 %v762
        %2313 = vmatpush1.msra.mxu0 %v761
        %2314 = vmatprep.subr.mxu0 %v756
        %2315 = vmatpush1.msra.mxu0 %v755
        %2316 = vmatprep.subr.mxu0 %v750
        %2317 = vmatpush1.msra.mxu0 %v749
        %2318 = vmatprep.subr.mxu0 %v744
        %2319 = vmatpush1.msra.mxu0 %v743
        %2320 = vmatprep.subr.mxu0 %v738
        %2321 = vmatpush1.msra.mxu0 %v737
        %2322 = vmatprep.subr.mxu0 %v732
        %2323 = vmatpush1.msra.mxu0 %v731
        %2324 = vmatprep.subr.mxu0 %v918
        %2325 = vmatpush2.msra.mxu0 %v917
        %2326 = vmatprep.subr.mxu0 %v912
        %2327 = vmatpush2.msra.mxu0 %v911
        %2328 = vmatprep.subr.mxu0 %v906
        %2329 = vmatpush2.msra.mxu0 %v905
        %2330 = vmatprep.subr.mxu0 %v900
        %2331 = vmatpush2.msra.mxu0 %v899
        %2332 = vmatprep.subr.mxu0 %v894
        %2333 = vmatpush2.msra.mxu0 %v893
        %2334 = vmatprep.subr.mxu0 %v888
        %2335 = vmatpush2.msra.mxu0 %v887
        %2336 = vmatprep.subr.mxu0 %v882
        %2337 = vmatpush2.msra.mxu0 %v881
        %2338 = vmatprep.subr.mxu0 %v876
        %2339 = vmatpush2.msra.mxu0 %v875
        %2340 = vmatprep.subr.mxu0 %v870
        %2341 = vmatpush2.msra.mxu0 %v869
        %2342 = vmatprep.subr.mxu0 %v864
        %2343 = vmatpush2.msra.mxu0 %v863
        %2344 = vmatprep.subr.mxu0 %v858
        %2345 = vmatpush2.msra.mxu0 %v857
        %2346 = vmatprep.subr.mxu0 %v852
        %2347 = vmatpush2.msra.mxu0 %v851
        %2348 = vmatprep.subr.mxu0 %v846
        %2349 = vmatpush2.msra.mxu0 %v845
        %2350 = vmatprep.subr.mxu0 %v840
        %2351 = vmatpush2.msra.mxu0 %v839
        %2352 = vmatprep.subr.mxu0 %v834
        %2353 = vmatpush2.msra.mxu0 %v833
        %2354 = vmatprep.subr.mxu0 %v828
        %2355 = vmatpush2.msra.mxu0 %v827
        %2356 = vmatprep.mubr.f32.mxu0 %v1776
        %2357 = vmatmul.mubr.f32.gmra.mxu0 %v1775
        %v2358 = vpop.f32.mrf.mxu0
        %v2359 = vadd.f32 %v2282, %v2358
        %v2360 = vpop.f32.mrf.mxu0
        %v2361 = vadd.f32 %v2284, %v2360
        %2362 = vmatprep.mubr.f32.mxu0 %v1778
        %2363 = vmatmul.mubr.f32.gmra.mxu0 %v1777
        %v2364 = vpop.f32.mrf.mxu0
        %v2365 = vadd.f32 %v2288, %v2364
        %v2366 = vpop.f32.mrf.mxu0
        %v2367 = vadd.f32 %v2290, %v2366
        %2368 = vdwg.mxu0
        %v2369 = vadd.f32 %v2051, %v1586
        %v2370 = vadd.f32 %v2053, %v1590
        %v2371 = vadd.f32 %v2205, %v1594
        %v2372 = vadd.f32 %v2207, %v1598
        %v2373 = vadd.f32 %v2057, %v1586
        %v2374 = vadd.f32 %v2059, %v1590
        %v2375 = vadd.f32 %v2211, %v1594
        %v2376 = vadd.f32 %v2213, %v1598
        %v2377 = vxor.u32 %v2369, 2147483648
        %v2378 = vxor.u32 %v2370, 2147483648
        %v2379 = vxor.u32 %v2371, 2147483648
        %v2380 = vxor.u32 %v2372, 2147483648
        %v2381 = vxor.u32 %v2373, 2147483648
        %v2382 = vxor.u32 %v2374, 2147483648
        %v2383 = vxor.u32 %v2375, 2147483648
        %v2384 = vxor.u32 %v2376, 2147483648
        %v2385 = vmul.f32 %v2377, 1.442695
        %v2386 = vpow.pop %v2385
        %v2387 = vmul.f32 %v2378, 1.442695
        %v2388 = vpow.pop %v2387
        %v2389 = vmul.f32 %v2379, 1.442695
        %v2390 = vpow.pop %v2389
        %v2391 = vmul.f32 %v2380, 1.442695
        %v2392 = vpow.pop %v2391
        %v2393 = vmul.f32 %v2381, 1.442695
        %v2394 = vpow.pop %v2393
        %v2395 = vmul.f32 %v2382, 1.442695
        %v2396 = vpow.pop %v2395
        %v2397 = vmul.f32 %v2383, 1.442695
        %v2398 = vpow.pop %v2397
        %v2399 = vmul.f32 %v2384, 1.442695
        %v2400 = vpow.pop %v2399
        %v2401 = vadd.f32 %v2386, 1.0
        %v2402 = vadd.f32 %v2388, 1.0
        %v2403 = vadd.f32 %v2390, 1.0
        %v2404 = vadd.f32 %v2392, 1.0
        %v2405 = vadd.f32 %v2394, 1.0
        %v2406 = vadd.f32 %v2396, 1.0
        %v2407 = vadd.f32 %v2398, 1.0
        %v2408 = vadd.f32 %v2400, 1.0
        %v2409 = vrcp.pop %v2401
        %v2410 = vmul.f32 1.0, %v2409
        %v2411 = vrcp.pop %v2402
        %v2412 = vmul.f32 1.0, %v2411
        %v2413 = vrcp.pop %v2403
        %v2414 = vmul.f32 1.0, %v2413
        %v2415 = vrcp.pop %v2404
        %v2416 = vmul.f32 1.0, %v2415
        %v2417 = vrcp.pop %v2405
        %v2418 = vmul.f32 1.0, %v2417
        %v2419 = vrcp.pop %v2406
        %v2420 = vmul.f32 1.0, %v2419
        %v2421 = vrcp.pop %v2407
        %v2422 = vmul.f32 1.0, %v2421
        %v2423 = vrcp.pop %v2408
        %v2424 = vmul.f32 1.0, %v2423
        %v2425 = vadd.f32 %v2359, %v1663
        %v2426 = vadd.f32 %v2361, %v1667
        %v2427 = vadd.f32 %v2365, %v1663
        %v2428 = vadd.f32 %v2367, %v1667
        %v2429 = vmul.f32 %v2414, %v1775
        %v2430 = vmul.f32 %v2416, %v1776
        %v2431 = vmul.f32 %v2422, %v1777
        %v2432 = vmul.f32 %v2424, %v1778
        %2433 = vmatprep.subr.mxu0 %v950
        %2434 = vmatpush1.msra.mxu0 %v949
        %2435 = vmatprep.subr.mxu0 %v948
        %2436 = vmatpush1.msra.mxu0 %v947
        %2437 = vmatprep.subr.mxu0 %v946
        %2438 = vmatpush1.msra.mxu0 %v945
        %2439 = vmatprep.subr.mxu0 %v944
        %2440 = vmatpush1.msra.mxu0 %v943
        %2441 = vmatprep.subr.mxu0 %v942
        %2442 = vmatpush1.msra.mxu0 %v941
        %2443 = vmatprep.subr.mxu0 %v940
        %2444 = vmatpush1.msra.mxu0 %v939
        %2445 = vmatprep.subr.mxu0 %v938
        %2446 = vmatpush1.msra.mxu0 %v937
        %2447 = vmatprep.subr.mxu0 %v936
        %2448 = vmatpush1.msra.mxu0 %v935
        %2449 = vmatprep.subr.mxu0 %v934
        %2450 = vmatpush1.msra.mxu0 %v933
        %2451 = vmatprep.subr.mxu0 %v932
        %2452 = vmatpush1.msra.mxu0 %v931
        %2453 = vmatprep.subr.mxu0 %v930
        %2454 = vmatpush1.msra.mxu0 %v929
        %2455 = vmatprep.subr.mxu0 %v928
        %2456 = vmatpush1.msra.mxu0 %v927
        %2457 = vmatprep.subr.mxu0 %v926
        %2458 = vmatpush1.msra.mxu0 %v925
        %2459 = vmatprep.subr.mxu0 %v924
        %2460 = vmatpush1.msra.mxu0 %v923
        %2461 = vmatprep.subr.mxu0 %v922
        %2462 = vmatpush1.msra.mxu0 %v921
        %2463 = vmatprep.subr.mxu0 %v920
        %2464 = vmatpush1.msra.mxu0 %v919
        %2465 = vmatprep.subr.mxu0 %v982
        %2466 = vmatpush2.msra.mxu0 %v981
        %2467 = vmatprep.subr.mxu0 %v980
        %2468 = vmatpush2.msra.mxu0 %v979
        %2469 = vmatprep.subr.mxu0 %v978
        %2470 = vmatpush2.msra.mxu0 %v977
        %2471 = vmatprep.subr.mxu0 %v976
        %2472 = vmatpush2.msra.mxu0 %v975
        %2473 = vmatprep.subr.mxu0 %v974
        %2474 = vmatpush2.msra.mxu0 %v973
        %2475 = vmatprep.subr.mxu0 %v972
        %2476 = vmatpush2.msra.mxu0 %v971
        %2477 = vmatprep.subr.mxu0 %v970
        %2478 = vmatpush2.msra.mxu0 %v969
        %2479 = vmatprep.subr.mxu0 %v968
        %2480 = vmatpush2.msra.mxu0 %v967
        %2481 = vmatprep.subr.mxu0 %v966
        %2482 = vmatpush2.msra.mxu0 %v965
        %2483 = vmatprep.subr.mxu0 %v964
        %2484 = vmatpush2.msra.mxu0 %v963
        %2485 = vmatprep.subr.mxu0 %v962
        %2486 = vmatpush2.msra.mxu0 %v961
        %2487 = vmatprep.subr.mxu0 %v960
        %2488 = vmatpush2.msra.mxu0 %v959
        %2489 = vmatprep.subr.mxu0 %v958
        %2490 = vmatpush2.msra.mxu0 %v957
        %2491 = vmatprep.subr.mxu0 %v956
        %2492 = vmatpush2.msra.mxu0 %v955
        %2493 = vmatprep.subr.mxu0 %v954
        %2494 = vmatpush2.msra.mxu0 %v953
        %2495 = vmatprep.subr.mxu0 %v952
        %2496 = vmatpush2.msra.mxu0 %v951
        %2497 = vmatprep.mubr.f32.mxu0 %v2430
        %2498 = vmatmul.mubr.f32.gmra.mxu0 %v2429
        %v2499 = vpop.f32.mrf.mxu0
        %v2500 = vadd.f32 0.0, %v2499
        %v2501 = vpop.f32.mrf.mxu0
        %v2502 = vadd.f32 0.0, %v2501
        %2503 = vmatprep.mubr.f32.mxu0 %v2432
        %2504 = vmatmul.mubr.f32.gmra.mxu0 %v2431
        %v2505 = vpop.f32.mrf.mxu0
        %v2506 = vadd.f32 0.0, %v2505
        %v2507 = vpop.f32.mrf.mxu0
        %v2508 = vadd.f32 0.0, %v2507
        %2509 = vdwg.mxu0
        %v2510 = vadd.f32 %v2425, %v2500
        %v2511 = vadd.f32 %v2426, %v2502
        %v2512 = vadd.f32 %v2427, %v2506
        %v2513 = vadd.f32 %v2428, %v2508
        %v2514 = vtanh.pop %v2510
        %v2515 = vtanh.pop %v2511
        %v2516 = vtanh.pop %v2512
        %v2517 = vtanh.pop %v2513
        %v2518 = vsub.f32 1.0, %v2410
        %v2519 = vsub.f32 1.0, %v2412
        %v2520 = vsub.f32 1.0, %v2418
        %v2521 = vsub.f32 1.0, %v2420
        %v2522 = vmul.f32 %v2518, %v1775
        %v2523 = vmul.f32 %v2519, %v1776
        %v2524 = vmul.f32 %v2520, %v1777
        %v2525 = vmul.f32 %v2521, %v1778
        %v2526 = vmul.f32 %v2410, %v2514
        %v2527 = vmul.f32 %v2412, %v2515
        %v2528 = vmul.f32 %v2418, %v2516
        %v2529 = vmul.f32 %v2420, %v2517
        %v2530 = vadd.f32 %v2522, %v2526
        %v2531 = vadd.f32 %v2523, %v2527
        %v2532 = vadd.f32 %v2524, %v2528
        %v2533 = vadd.f32 %v2525, %v2529
        %2536 = vrot.lane.b32.xlu0 %v2530, 96
        %v2537 = vpop.permute.xlu0 %2536
        %2538 = vrot.lane.b32.xlu0 %v2532, 96
        %v2539 = vpop.permute.xlu0 %2538
        %v2542 = vadd.f32 %v2530, %v2537
        %v2543 = vadd.f32 %v2532, %v2539
        %2546 = vrot.lane.b32.xlu0 %v2530, 64
        %v2547 = vpop.permute.xlu0 %2546
        %2548 = vrot.lane.b32.xlu0 %v2531, 64
        %v2549 = vpop.permute.xlu0 %2548
        %2550 = vrot.lane.b32.xlu0 %v2532, 64
        %v2551 = vpop.permute.xlu0 %2550
        %2552 = vrot.lane.b32.xlu0 %v2533, 64
        %v2553 = vpop.permute.xlu0 %2552
        %v2554 = vsel %vm1009, %v2547, %v2549
        %v2555 = vsel %vm1009, %v2551, %v2553
        %v2560 = vmul.f32 %v531, %v2554
        %v2561 = vmul.f32 %v532, %v2549
        %v2562 = vmul.f32 %v533, %v2555
        %v2563 = vmul.f32 %v534, %v2553
        %2566 = vrot.lane.b32.xlu0 %v2560, 96
        %v2567 = vpop.permute.xlu0 %2566
        %2568 = vrot.lane.b32.xlu0 %v2562, 96
        %v2569 = vpop.permute.xlu0 %2568
        %v2572 = vadd.f32 %v2560, %v2567
        %v2573 = vadd.f32 %v2562, %v2569
        %2574 = vrot.lane.b32.xlu0 %v2560, 64
        %v2575 = vpop.permute.xlu0 %2574
        %2576 = vrot.lane.b32.xlu0 %v2562, 64
        %v2577 = vpop.permute.xlu0 %2576
        %v2580 = vadd.f32 %v2572, %v2575
        %v2581 = vadd.f32 %v2573, %v2577
        %2582 = vrot.lane.b32.xlu0 %v2560, 32
        %v2583 = vpop.permute.xlu0 %2582
        %2584 = vrot.lane.b32.xlu0 %v2562, 32
        %v2585 = vpop.permute.xlu0 %2584
        %v2588 = vadd.f32 %v2580, %v2583
        %v2589 = vadd.f32 %v2581, %v2585
        %v2590 = vadd.f32 %v2588, %v2561
        %v2591 = vadd.f32 %v2589, %v2563
        %2594 = vrot.lane.b32.xlu0 %v2561, 96
        %v2595 = vpop.permute.xlu0 %2594
        %2596 = vrot.lane.b32.xlu0 %v2563, 96
        %v2597 = vpop.permute.xlu0 %2596
        %v2600 = vadd.f32 %v2590, %v2595
        %v2601 = vadd.f32 %v2591, %v2597
        %2604 = vrot.lane.b32.xlu0 %v2542, 32
        %v2605 = vpop.permute.xlu0 %2604
        %2606 = vrot.lane.b32.xlu0 %v2543, 32
        %v2607 = vpop.permute.xlu0 %2606
        %2610 = vrot.lane.b32.xlu0 %v2542, 64
        %v2611 = vpop.permute.xlu0 %2610
        %2612 = vrot.lane.b32.xlu0 %v2543, 64
        %v2613 = vpop.permute.xlu0 %2612
        %2616 = vrot.lane.b32.xlu0 %v2542, 96
        %v2617 = vpop.permute.xlu0 %2616
        %2618 = vrot.lane.b32.xlu0 %v2543, 96
        %v2619 = vpop.permute.xlu0 %2618
        %v2622 = vsel %vm1078, %v2542, %v2605
        %v2623 = vsel %vm1078, %v2543, %v2607
        %v2624 = vsel %vm1009, %v2622, %v2611
        %v2625 = vsel %vm1009, %v2623, %v2613
        %v2626 = vsel %vm1083, %v2624, %v2617
        %v2627 = vsel %vm1083, %v2625, %v2619
        %v2628 = vmul.f32 %v531, %v2626
        %v2629 = vmul.f32 %v532, %v2622
        %v2630 = vmul.f32 %v533, %v2627
        %v2631 = vmul.f32 %v534, %v2623
        %2634 = vrot.lane.b32.xlu0 %v2600, 32
        %v2635 = vpop.permute.xlu0 %2634
        %2636 = vrot.lane.b32.xlu0 %v2601, 32
        %v2637 = vpop.permute.xlu0 %2636
        %2644 = vrot.lane.b32.xlu0 %v2628, 64
        %v2645 = vpop.permute.xlu0 %2644
        %2646 = vrot.lane.b32.xlu0 %v2629, 64
        %v2647 = vpop.permute.xlu0 %2646
        %2648 = vrot.lane.b32.xlu0 %v2630, 64
        %v2649 = vpop.permute.xlu0 %2648
        %2650 = vrot.lane.b32.xlu0 %v2631, 64
        %v2651 = vpop.permute.xlu0 %2650
        %v2652 = vsel %vm1009, %v2645, %v2647
        %v2653 = vsel %vm1009, %v2649, %v2651
        %v2658 = vsel %vm1078, %v2600, %v2635
        %v2659 = vsel %vm1078, %v2601, %v2637
        %v2660 = vsel %vm1009, %v2658, %v2645
        %v2661 = vsel %vm1009, %v2659, %v2649
        %2662 = vmatprep.subr.mxu0 %v626
        %2663 = vmatpush1.msra.mxu0 %v625
        %2664 = vmatprep.subr.mxu0 %v620
        %2665 = vmatpush1.msra.mxu0 %v619
        %2666 = vmatprep.subr.mxu0 %v614
        %2667 = vmatpush1.msra.mxu0 %v613
        %2668 = vmatprep.subr.mxu0 %v608
        %2669 = vmatpush1.msra.mxu0 %v607
        %2670 = vmatprep.subr.mxu0 %v602
        %2671 = vmatpush1.msra.mxu0 %v601
        %2672 = vmatprep.subr.mxu0 %v596
        %2673 = vmatpush1.msra.mxu0 %v595
        %2674 = vmatprep.subr.mxu0 %v590
        %2675 = vmatpush1.msra.mxu0 %v589
        %2676 = vmatprep.subr.mxu0 %v584
        %2677 = vmatpush1.msra.mxu0 %v583
        %2678 = vmatprep.subr.mxu0 %v578
        %2679 = vmatpush1.msra.mxu0 %v577
        %2680 = vmatprep.subr.mxu0 %v572
        %2681 = vmatpush1.msra.mxu0 %v571
        %2682 = vmatprep.subr.mxu0 %v566
        %2683 = vmatpush1.msra.mxu0 %v565
        %2684 = vmatprep.subr.mxu0 %v560
        %2685 = vmatpush1.msra.mxu0 %v559
        %2686 = vmatprep.subr.mxu0 %v554
        %2687 = vmatpush1.msra.mxu0 %v553
        %2688 = vmatprep.subr.mxu0 %v548
        %2689 = vmatpush1.msra.mxu0 %v547
        %2690 = vmatprep.subr.mxu0 %v542
        %2691 = vmatpush1.msra.mxu0 %v541
        %2692 = vmatprep.subr.mxu0 %v536
        %2693 = vmatpush1.msra.mxu0 %v535
        %2694 = vmatprep.subr.mxu0 %v722
        %2695 = vmatpush2.msra.mxu0 %v721
        %2696 = vmatprep.subr.mxu0 %v716
        %2697 = vmatpush2.msra.mxu0 %v715
        %2698 = vmatprep.subr.mxu0 %v710
        %2699 = vmatpush2.msra.mxu0 %v709
        %2700 = vmatprep.subr.mxu0 %v704
        %2701 = vmatpush2.msra.mxu0 %v703
        %2702 = vmatprep.subr.mxu0 %v698
        %2703 = vmatpush2.msra.mxu0 %v697
        %2704 = vmatprep.subr.mxu0 %v692
        %2705 = vmatpush2.msra.mxu0 %v691
        %2706 = vmatprep.subr.mxu0 %v686
        %2707 = vmatpush2.msra.mxu0 %v685
        %2708 = vmatprep.subr.mxu0 %v680
        %2709 = vmatpush2.msra.mxu0 %v679
        %2710 = vmatprep.subr.mxu0 %v674
        %2711 = vmatpush2.msra.mxu0 %v673
        %2712 = vmatprep.subr.mxu0 %v668
        %2713 = vmatpush2.msra.mxu0 %v667
        %2714 = vmatprep.subr.mxu0 %v662
        %2715 = vmatpush2.msra.mxu0 %v661
        %2716 = vmatprep.subr.mxu0 %v656
        %2717 = vmatpush2.msra.mxu0 %v655
        %2718 = vmatprep.subr.mxu0 %v650
        %2719 = vmatpush2.msra.mxu0 %v649
        %2720 = vmatprep.subr.mxu0 %v644
        %2721 = vmatpush2.msra.mxu0 %v643
        %2722 = vmatprep.subr.mxu0 %v638
        %2723 = vmatpush2.msra.mxu0 %v637
        %2724 = vmatprep.subr.mxu0 %v632
        %2725 = vmatpush2.msra.mxu0 %v631
        %2726 = vmatprep.mubr.f32.mxu0 %v2652
        %2727 = vmatmul.mubr.f32.gmra.mxu0 %v2660
        %v2728 = vpop.f32.mrf.mxu0
        %v2729 = vadd.f32 0.0, %v2728
        %v2730 = vpop.f32.mrf.mxu0
        %v2731 = vadd.f32 0.0, %v2730
        %2732 = vmatprep.mubr.f32.mxu0 %v2653
        %2733 = vmatmul.mubr.f32.gmra.mxu0 %v2661
        %v2734 = vpop.f32.mrf.mxu0
        %v2735 = vadd.f32 0.0, %v2734
        %v2736 = vpop.f32.mrf.mxu0
        %v2737 = vadd.f32 0.0, %v2736
        %2738 = vdwg.mxu0
        %2739 = vmatprep.subr.mxu0 %v818
        %2740 = vmatpush1.msra.mxu0 %v817
        %2741 = vmatprep.subr.mxu0 %v812
        %2742 = vmatpush1.msra.mxu0 %v811
        %2743 = vmatprep.subr.mxu0 %v806
        %2744 = vmatpush1.msra.mxu0 %v805
        %2745 = vmatprep.subr.mxu0 %v800
        %2746 = vmatpush1.msra.mxu0 %v799
        %2747 = vmatprep.subr.mxu0 %v794
        %2748 = vmatpush1.msra.mxu0 %v793
        %2749 = vmatprep.subr.mxu0 %v788
        %2750 = vmatpush1.msra.mxu0 %v787
        %2751 = vmatprep.subr.mxu0 %v782
        %2752 = vmatpush1.msra.mxu0 %v781
        %2753 = vmatprep.subr.mxu0 %v776
        %2754 = vmatpush1.msra.mxu0 %v775
        %2755 = vmatprep.subr.mxu0 %v770
        %2756 = vmatpush1.msra.mxu0 %v769
        %2757 = vmatprep.subr.mxu0 %v764
        %2758 = vmatpush1.msra.mxu0 %v763
        %2759 = vmatprep.subr.mxu0 %v758
        %2760 = vmatpush1.msra.mxu0 %v757
        %2761 = vmatprep.subr.mxu0 %v752
        %2762 = vmatpush1.msra.mxu0 %v751
        %2763 = vmatprep.subr.mxu0 %v746
        %2764 = vmatpush1.msra.mxu0 %v745
        %2765 = vmatprep.subr.mxu0 %v740
        %2766 = vmatpush1.msra.mxu0 %v739
        %2767 = vmatprep.subr.mxu0 %v734
        %2768 = vmatpush1.msra.mxu0 %v733
        %2769 = vmatprep.subr.mxu0 %v728
        %2770 = vmatpush1.msra.mxu0 %v727
        %2771 = vmatprep.subr.mxu0 %v914
        %2772 = vmatpush2.msra.mxu0 %v913
        %2773 = vmatprep.subr.mxu0 %v908
        %2774 = vmatpush2.msra.mxu0 %v907
        %2775 = vmatprep.subr.mxu0 %v902
        %2776 = vmatpush2.msra.mxu0 %v901
        %2777 = vmatprep.subr.mxu0 %v896
        %2778 = vmatpush2.msra.mxu0 %v895
        %2779 = vmatprep.subr.mxu0 %v890
        %2780 = vmatpush2.msra.mxu0 %v889
        %2781 = vmatprep.subr.mxu0 %v884
        %2782 = vmatpush2.msra.mxu0 %v883
        %2783 = vmatprep.subr.mxu0 %v878
        %2784 = vmatpush2.msra.mxu0 %v877
        %2785 = vmatprep.subr.mxu0 %v872
        %2786 = vmatpush2.msra.mxu0 %v871
        %2787 = vmatprep.subr.mxu0 %v866
        %2788 = vmatpush2.msra.mxu0 %v865
        %2789 = vmatprep.subr.mxu0 %v860
        %2790 = vmatpush2.msra.mxu0 %v859
        %2791 = vmatprep.subr.mxu0 %v854
        %2792 = vmatpush2.msra.mxu0 %v853
        %2793 = vmatprep.subr.mxu0 %v848
        %2794 = vmatpush2.msra.mxu0 %v847
        %2795 = vmatprep.subr.mxu0 %v842
        %2796 = vmatpush2.msra.mxu0 %v841
        %2797 = vmatprep.subr.mxu0 %v836
        %2798 = vmatpush2.msra.mxu0 %v835
        %2799 = vmatprep.subr.mxu0 %v830
        %2800 = vmatpush2.msra.mxu0 %v829
        %2801 = vmatprep.subr.mxu0 %v824
        %2802 = vmatpush2.msra.mxu0 %v823
        %2803 = vmatprep.mubr.f32.mxu0 %v2531
        %2804 = vmatmul.mubr.f32.gmra.mxu0 %v2530
        %v2805 = vpop.f32.mrf.mxu0
        %v2806 = vadd.f32 %v2729, %v2805
        %v2807 = vpop.f32.mrf.mxu0
        %v2808 = vadd.f32 %v2731, %v2807
        %2809 = vmatprep.mubr.f32.mxu0 %v2533
        %2810 = vmatmul.mubr.f32.gmra.mxu0 %v2532
        %v2811 = vpop.f32.mrf.mxu0
        %v2812 = vadd.f32 %v2735, %v2811
        %v2813 = vpop.f32.mrf.mxu0
        %v2814 = vadd.f32 %v2737, %v2813
        %2815 = vdwg.mxu0
        %2816 = vmatprep.subr.mxu0 %v628
        %2817 = vmatpush1.msra.mxu0 %v627
        %2818 = vmatprep.subr.mxu0 %v622
        %2819 = vmatpush1.msra.mxu0 %v621
        %2820 = vmatprep.subr.mxu0 %v616
        %2821 = vmatpush1.msra.mxu0 %v615
        %2822 = vmatprep.subr.mxu0 %v610
        %2823 = vmatpush1.msra.mxu0 %v609
        %2824 = vmatprep.subr.mxu0 %v604
        %2825 = vmatpush1.msra.mxu0 %v603
        %2826 = vmatprep.subr.mxu0 %v598
        %2827 = vmatpush1.msra.mxu0 %v597
        %2828 = vmatprep.subr.mxu0 %v592
        %2829 = vmatpush1.msra.mxu0 %v591
        %2830 = vmatprep.subr.mxu0 %v586
        %2831 = vmatpush1.msra.mxu0 %v585
        %2832 = vmatprep.subr.mxu0 %v580
        %2833 = vmatpush1.msra.mxu0 %v579
        %2834 = vmatprep.subr.mxu0 %v574
        %2835 = vmatpush1.msra.mxu0 %v573
        %2836 = vmatprep.subr.mxu0 %v568
        %2837 = vmatpush1.msra.mxu0 %v567
        %2838 = vmatprep.subr.mxu0 %v562
        %2839 = vmatpush1.msra.mxu0 %v561
        %2840 = vmatprep.subr.mxu0 %v556
        %2841 = vmatpush1.msra.mxu0 %v555
        %2842 = vmatprep.subr.mxu0 %v550
        %2843 = vmatpush1.msra.mxu0 %v549
        %2844 = vmatprep.subr.mxu0 %v544
        %2845 = vmatpush1.msra.mxu0 %v543
        %2846 = vmatprep.subr.mxu0 %v538
        %2847 = vmatpush1.msra.mxu0 %v537
        %2848 = vmatprep.subr.mxu0 %v724
        %2849 = vmatpush2.msra.mxu0 %v723
        %2850 = vmatprep.subr.mxu0 %v718
        %2851 = vmatpush2.msra.mxu0 %v717
        %2852 = vmatprep.subr.mxu0 %v712
        %2853 = vmatpush2.msra.mxu0 %v711
        %2854 = vmatprep.subr.mxu0 %v706
        %2855 = vmatpush2.msra.mxu0 %v705
        %2856 = vmatprep.subr.mxu0 %v700
        %2857 = vmatpush2.msra.mxu0 %v699
        %2858 = vmatprep.subr.mxu0 %v694
        %2859 = vmatpush2.msra.mxu0 %v693
        %2860 = vmatprep.subr.mxu0 %v688
        %2861 = vmatpush2.msra.mxu0 %v687
        %2862 = vmatprep.subr.mxu0 %v682
        %2863 = vmatpush2.msra.mxu0 %v681
        %2864 = vmatprep.subr.mxu0 %v676
        %2865 = vmatpush2.msra.mxu0 %v675
        %2866 = vmatprep.subr.mxu0 %v670
        %2867 = vmatpush2.msra.mxu0 %v669
        %2868 = vmatprep.subr.mxu0 %v664
        %2869 = vmatpush2.msra.mxu0 %v663
        %2870 = vmatprep.subr.mxu0 %v658
        %2871 = vmatpush2.msra.mxu0 %v657
        %2872 = vmatprep.subr.mxu0 %v652
        %2873 = vmatpush2.msra.mxu0 %v651
        %2874 = vmatprep.subr.mxu0 %v646
        %2875 = vmatpush2.msra.mxu0 %v645
        %2876 = vmatprep.subr.mxu0 %v640
        %2877 = vmatpush2.msra.mxu0 %v639
        %2878 = vmatprep.subr.mxu0 %v634
        %2879 = vmatpush2.msra.mxu0 %v633
        %2880 = vmatprep.mubr.f32.mxu0 %v2652
        %2881 = vmatmul.mubr.f32.gmra.mxu0 %v2660
        %v2882 = vpop.f32.mrf.mxu0
        %v2883 = vadd.f32 0.0, %v2882
        %v2884 = vpop.f32.mrf.mxu0
        %v2885 = vadd.f32 0.0, %v2884
        %2886 = vmatprep.mubr.f32.mxu0 %v2653
        %2887 = vmatmul.mubr.f32.gmra.mxu0 %v2661
        %v2888 = vpop.f32.mrf.mxu0
        %v2889 = vadd.f32 0.0, %v2888
        %v2890 = vpop.f32.mrf.mxu0
        %v2891 = vadd.f32 0.0, %v2890
        %2892 = vdwg.mxu0
        %2893 = vmatprep.subr.mxu0 %v820
        %2894 = vmatpush1.msra.mxu0 %v819
        %2895 = vmatprep.subr.mxu0 %v814
        %2896 = vmatpush1.msra.mxu0 %v813
        %2897 = vmatprep.subr.mxu0 %v808
        %2898 = vmatpush1.msra.mxu0 %v807
        %2899 = vmatprep.subr.mxu0 %v802
        %2900 = vmatpush1.msra.mxu0 %v801
        %2901 = vmatprep.subr.mxu0 %v796
        %2902 = vmatpush1.msra.mxu0 %v795
        %2903 = vmatprep.subr.mxu0 %v790
        %2904 = vmatpush1.msra.mxu0 %v789
        %2905 = vmatprep.subr.mxu0 %v784
        %2906 = vmatpush1.msra.mxu0 %v783
        %2907 = vmatprep.subr.mxu0 %v778
        %2908 = vmatpush1.msra.mxu0 %v777
        %2909 = vmatprep.subr.mxu0 %v772
        %2910 = vmatpush1.msra.mxu0 %v771
        %2911 = vmatprep.subr.mxu0 %v766
        %2912 = vmatpush1.msra.mxu0 %v765
        %2913 = vmatprep.subr.mxu0 %v760
        %2914 = vmatpush1.msra.mxu0 %v759
        %2915 = vmatprep.subr.mxu0 %v754
        %2916 = vmatpush1.msra.mxu0 %v753
        %2917 = vmatprep.subr.mxu0 %v748
        %2918 = vmatpush1.msra.mxu0 %v747
        %2919 = vmatprep.subr.mxu0 %v742
        %2920 = vmatpush1.msra.mxu0 %v741
        %2921 = vmatprep.subr.mxu0 %v736
        %2922 = vmatpush1.msra.mxu0 %v735
        %2923 = vmatprep.subr.mxu0 %v730
        %2924 = vmatpush1.msra.mxu0 %v729
        %2925 = vmatprep.subr.mxu0 %v916
        %2926 = vmatpush2.msra.mxu0 %v915
        %2927 = vmatprep.subr.mxu0 %v910
        %2928 = vmatpush2.msra.mxu0 %v909
        %2929 = vmatprep.subr.mxu0 %v904
        %2930 = vmatpush2.msra.mxu0 %v903
        %2931 = vmatprep.subr.mxu0 %v898
        %2932 = vmatpush2.msra.mxu0 %v897
        %2933 = vmatprep.subr.mxu0 %v892
        %2934 = vmatpush2.msra.mxu0 %v891
        %2935 = vmatprep.subr.mxu0 %v886
        %2936 = vmatpush2.msra.mxu0 %v885
        %2937 = vmatprep.subr.mxu0 %v880
        %2938 = vmatpush2.msra.mxu0 %v879
        %2939 = vmatprep.subr.mxu0 %v874
        %2940 = vmatpush2.msra.mxu0 %v873
        %2941 = vmatprep.subr.mxu0 %v868
        %2942 = vmatpush2.msra.mxu0 %v867
        %2943 = vmatprep.subr.mxu0 %v862
        %2944 = vmatpush2.msra.mxu0 %v861
        %2945 = vmatprep.subr.mxu0 %v856
        %2946 = vmatpush2.msra.mxu0 %v855
        %2947 = vmatprep.subr.mxu0 %v850
        %2948 = vmatpush2.msra.mxu0 %v849
        %2949 = vmatprep.subr.mxu0 %v844
        %2950 = vmatpush2.msra.mxu0 %v843
        %2951 = vmatprep.subr.mxu0 %v838
        %2952 = vmatpush2.msra.mxu0 %v837
        %2953 = vmatprep.subr.mxu0 %v832
        %2954 = vmatpush2.msra.mxu0 %v831
        %2955 = vmatprep.subr.mxu0 %v826
        %2956 = vmatpush2.msra.mxu0 %v825
        %2957 = vmatprep.mubr.f32.mxu0 %v2531
        %2958 = vmatmul.mubr.f32.gmra.mxu0 %v2530
        %v2959 = vpop.f32.mrf.mxu0
        %v2960 = vadd.f32 %v2883, %v2959
        %v2961 = vpop.f32.mrf.mxu0
        %v2962 = vadd.f32 %v2885, %v2961
        %2963 = vmatprep.mubr.f32.mxu0 %v2533
        %2964 = vmatmul.mubr.f32.gmra.mxu0 %v2532
        %v2965 = vpop.f32.mrf.mxu0
        %v2966 = vadd.f32 %v2889, %v2965
        %v2967 = vpop.f32.mrf.mxu0
        %v2968 = vadd.f32 %v2891, %v2967
        %2969 = vdwg.mxu0
        %2970 = vmatprep.subr.mxu0 %v630
        %2971 = vmatpush1.msra.mxu0 %v629
        %2972 = vmatprep.subr.mxu0 %v624
        %2973 = vmatpush1.msra.mxu0 %v623
        %2974 = vmatprep.subr.mxu0 %v618
        %2975 = vmatpush1.msra.mxu0 %v617
        %2976 = vmatprep.subr.mxu0 %v612
        %2977 = vmatpush1.msra.mxu0 %v611
        %2978 = vmatprep.subr.mxu0 %v606
        %2979 = vmatpush1.msra.mxu0 %v605
        %2980 = vmatprep.subr.mxu0 %v600
        %2981 = vmatpush1.msra.mxu0 %v599
        %2982 = vmatprep.subr.mxu0 %v594
        %2983 = vmatpush1.msra.mxu0 %v593
        %2984 = vmatprep.subr.mxu0 %v588
        %2985 = vmatpush1.msra.mxu0 %v587
        %2986 = vmatprep.subr.mxu0 %v582
        %2987 = vmatpush1.msra.mxu0 %v581
        %2988 = vmatprep.subr.mxu0 %v576
        %2989 = vmatpush1.msra.mxu0 %v575
        %2990 = vmatprep.subr.mxu0 %v570
        %2991 = vmatpush1.msra.mxu0 %v569
        %2992 = vmatprep.subr.mxu0 %v564
        %2993 = vmatpush1.msra.mxu0 %v563
        %2994 = vmatprep.subr.mxu0 %v558
        %2995 = vmatpush1.msra.mxu0 %v557
        %2996 = vmatprep.subr.mxu0 %v552
        %2997 = vmatpush1.msra.mxu0 %v551
        %2998 = vmatprep.subr.mxu0 %v546
        %2999 = vmatpush1.msra.mxu0 %v545
        %3000 = vmatprep.subr.mxu0 %v540
        %3001 = vmatpush1.msra.mxu0 %v539
        %3002 = vmatprep.subr.mxu0 %v726
        %3003 = vmatpush2.msra.mxu0 %v725
        %3004 = vmatprep.subr.mxu0 %v720
        %3005 = vmatpush2.msra.mxu0 %v719
        %3006 = vmatprep.subr.mxu0 %v714
        %3007 = vmatpush2.msra.mxu0 %v713
        %3008 = vmatprep.subr.mxu0 %v708
        %3009 = vmatpush2.msra.mxu0 %v707
        %3010 = vmatprep.subr.mxu0 %v702
        %3011 = vmatpush2.msra.mxu0 %v701
        %3012 = vmatprep.subr.mxu0 %v696
        %3013 = vmatpush2.msra.mxu0 %v695
        %3014 = vmatprep.subr.mxu0 %v690
        %3015 = vmatpush2.msra.mxu0 %v689
        %3016 = vmatprep.subr.mxu0 %v684
        %3017 = vmatpush2.msra.mxu0 %v683
        %3018 = vmatprep.subr.mxu0 %v678
        %3019 = vmatpush2.msra.mxu0 %v677
        %3020 = vmatprep.subr.mxu0 %v672
        %3021 = vmatpush2.msra.mxu0 %v671
        %3022 = vmatprep.subr.mxu0 %v666
        %3023 = vmatpush2.msra.mxu0 %v665
        %3024 = vmatprep.subr.mxu0 %v660
        %3025 = vmatpush2.msra.mxu0 %v659
        %3026 = vmatprep.subr.mxu0 %v654
        %3027 = vmatpush2.msra.mxu0 %v653
        %3028 = vmatprep.subr.mxu0 %v648
        %3029 = vmatpush2.msra.mxu0 %v647
        %3030 = vmatprep.subr.mxu0 %v642
        %3031 = vmatpush2.msra.mxu0 %v641
        %3032 = vmatprep.subr.mxu0 %v636
        %3033 = vmatpush2.msra.mxu0 %v635
        %3034 = vmatprep.mubr.f32.mxu0 %v2652
        %3035 = vmatmul.mubr.f32.gmra.mxu0 %v2660
        %v3036 = vpop.f32.mrf.mxu0
        %v3037 = vadd.f32 0.0, %v3036
        %v3038 = vpop.f32.mrf.mxu0
        %v3039 = vadd.f32 0.0, %v3038
        %3040 = vmatprep.mubr.f32.mxu0 %v2653
        %3041 = vmatmul.mubr.f32.gmra.mxu0 %v2661
        %v3042 = vpop.f32.mrf.mxu0
        %v3043 = vadd.f32 0.0, %v3042
        %v3044 = vpop.f32.mrf.mxu0
        %v3045 = vadd.f32 0.0, %v3044
        %3046 = vdwg.mxu0
        %3047 = vmatprep.subr.mxu0 %v822
        %3048 = vmatpush1.msra.mxu0 %v821
        %3049 = vmatprep.subr.mxu0 %v816
        %3050 = vmatpush1.msra.mxu0 %v815
        %3051 = vmatprep.subr.mxu0 %v810
        %3052 = vmatpush1.msra.mxu0 %v809
        %3053 = vmatprep.subr.mxu0 %v804
        %3054 = vmatpush1.msra.mxu0 %v803
        %3055 = vmatprep.subr.mxu0 %v798
        %3056 = vmatpush1.msra.mxu0 %v797
        %3057 = vmatprep.subr.mxu0 %v792
        %3058 = vmatpush1.msra.mxu0 %v791
        %3059 = vmatprep.subr.mxu0 %v786
        %3060 = vmatpush1.msra.mxu0 %v785
        %3061 = vmatprep.subr.mxu0 %v780
        %3062 = vmatpush1.msra.mxu0 %v779
        %3063 = vmatprep.subr.mxu0 %v774
        %3064 = vmatpush1.msra.mxu0 %v773
        %3065 = vmatprep.subr.mxu0 %v768
        %3066 = vmatpush1.msra.mxu0 %v767
        %3067 = vmatprep.subr.mxu0 %v762
        %3068 = vmatpush1.msra.mxu0 %v761
        %3069 = vmatprep.subr.mxu0 %v756
        %3070 = vmatpush1.msra.mxu0 %v755
        %3071 = vmatprep.subr.mxu0 %v750
        %3072 = vmatpush1.msra.mxu0 %v749
        %3073 = vmatprep.subr.mxu0 %v744
        %3074 = vmatpush1.msra.mxu0 %v743
        %3075 = vmatprep.subr.mxu0 %v738
        %3076 = vmatpush1.msra.mxu0 %v737
        %3077 = vmatprep.subr.mxu0 %v732
        %3078 = vmatpush1.msra.mxu0 %v731
        %3079 = vmatprep.subr.mxu0 %v918
        %3080 = vmatpush2.msra.mxu0 %v917
        %3081 = vmatprep.subr.mxu0 %v912
        %3082 = vmatpush2.msra.mxu0 %v911
        %3083 = vmatprep.subr.mxu0 %v906
        %3084 = vmatpush2.msra.mxu0 %v905
        %3085 = vmatprep.subr.mxu0 %v900
        %3086 = vmatpush2.msra.mxu0 %v899
        %3087 = vmatprep.subr.mxu0 %v894
        %3088 = vmatpush2.msra.mxu0 %v893
        %3089 = vmatprep.subr.mxu0 %v888
        %3090 = vmatpush2.msra.mxu0 %v887
        %3091 = vmatprep.subr.mxu0 %v882
        %3092 = vmatpush2.msra.mxu0 %v881
        %3093 = vmatprep.subr.mxu0 %v876
        %3094 = vmatpush2.msra.mxu0 %v875
        %3095 = vmatprep.subr.mxu0 %v870
        %3096 = vmatpush2.msra.mxu0 %v869
        %3097 = vmatprep.subr.mxu0 %v864
        %3098 = vmatpush2.msra.mxu0 %v863
        %3099 = vmatprep.subr.mxu0 %v858
        %3100 = vmatpush2.msra.mxu0 %v857
        %3101 = vmatprep.subr.mxu0 %v852
        %3102 = vmatpush2.msra.mxu0 %v851
        %3103 = vmatprep.subr.mxu0 %v846
        %3104 = vmatpush2.msra.mxu0 %v845
        %3105 = vmatprep.subr.mxu0 %v840
        %3106 = vmatpush2.msra.mxu0 %v839
        %3107 = vmatprep.subr.mxu0 %v834
        %3108 = vmatpush2.msra.mxu0 %v833
        %3109 = vmatprep.subr.mxu0 %v828
        %3110 = vmatpush2.msra.mxu0 %v827
        %3111 = vmatprep.mubr.f32.mxu0 %v2531
        %3112 = vmatmul.mubr.f32.gmra.mxu0 %v2530
        %v3113 = vpop.f32.mrf.mxu0
        %v3114 = vadd.f32 %v3037, %v3113
        %v3115 = vpop.f32.mrf.mxu0
        %v3116 = vadd.f32 %v3039, %v3115
        %3117 = vmatprep.mubr.f32.mxu0 %v2533
        %3118 = vmatmul.mubr.f32.gmra.mxu0 %v2532
        %v3119 = vpop.f32.mrf.mxu0
        %v3120 = vadd.f32 %v3043, %v3119
        %v3121 = vpop.f32.mrf.mxu0
        %v3122 = vadd.f32 %v3045, %v3121
        %3123 = vdwg.mxu0
        %v3124 = vadd.f32 %v2806, %v1586
        %v3125 = vadd.f32 %v2808, %v1590
        %v3126 = vadd.f32 %v2960, %v1594
        %v3127 = vadd.f32 %v2962, %v1598
        %v3128 = vadd.f32 %v2812, %v1586
        %v3129 = vadd.f32 %v2814, %v1590
        %v3130 = vadd.f32 %v2966, %v1594
        %v3131 = vadd.f32 %v2968, %v1598
        %v3132 = vxor.u32 %v3124, 2147483648
        %v3133 = vxor.u32 %v3125, 2147483648
        %v3134 = vxor.u32 %v3126, 2147483648
        %v3135 = vxor.u32 %v3127, 2147483648
        %v3136 = vxor.u32 %v3128, 2147483648
        %v3137 = vxor.u32 %v3129, 2147483648
        %v3138 = vxor.u32 %v3130, 2147483648
        %v3139 = vxor.u32 %v3131, 2147483648
        %v3140 = vmul.f32 %v3132, 1.442695
        %v3141 = vpow.pop %v3140
        %v3142 = vmul.f32 %v3133, 1.442695
        %v3143 = vpow.pop %v3142
        %v3144 = vmul.f32 %v3134, 1.442695
        %v3145 = vpow.pop %v3144
        %v3146 = vmul.f32 %v3135, 1.442695
        %v3147 = vpow.pop %v3146
        %v3148 = vmul.f32 %v3136, 1.442695
        %v3149 = vpow.pop %v3148
        %v3150 = vmul.f32 %v3137, 1.442695
        %v3151 = vpow.pop %v3150
        %v3152 = vmul.f32 %v3138, 1.442695
        %v3153 = vpow.pop %v3152
        %v3154 = vmul.f32 %v3139, 1.442695
        %v3155 = vpow.pop %v3154
        %v3156 = vadd.f32 %v3141, 1.0
        %v3157 = vadd.f32 %v3143, 1.0
        %v3158 = vadd.f32 %v3145, 1.0
        %v3159 = vadd.f32 %v3147, 1.0
        %v3160 = vadd.f32 %v3149, 1.0
        %v3161 = vadd.f32 %v3151, 1.0
        %v3162 = vadd.f32 %v3153, 1.0
        %v3163 = vadd.f32 %v3155, 1.0
        %v3164 = vrcp.pop %v3156
        %v3165 = vmul.f32 1.0, %v3164
        %v3166 = vrcp.pop %v3157
        %v3167 = vmul.f32 1.0, %v3166
        %v3168 = vrcp.pop %v3158
        %v3169 = vmul.f32 1.0, %v3168
        %v3170 = vrcp.pop %v3159
        %v3171 = vmul.f32 1.0, %v3170
        %v3172 = vrcp.pop %v3160
        %v3173 = vmul.f32 1.0, %v3172
        %v3174 = vrcp.pop %v3161
        %v3175 = vmul.f32 1.0, %v3174
        %v3176 = vrcp.pop %v3162
        %v3177 = vmul.f32 1.0, %v3176
        %v3178 = vrcp.pop %v3163
        %v3179 = vmul.f32 1.0, %v3178
        %v3180 = vadd.f32 %v3114, %v1663
        %v3181 = vadd.f32 %v3116, %v1667
        %v3182 = vadd.f32 %v3120, %v1663
        %v3183 = vadd.f32 %v3122, %v1667
        %v3184 = vmul.f32 %v3169, %v2530
        %v3185 = vmul.f32 %v3171, %v2531
        %v3186 = vmul.f32 %v3177, %v2532
        %v3187 = vmul.f32 %v3179, %v2533
        %3188 = vmatprep.subr.mxu0 %v950
        %3189 = vmatpush1.msra.mxu0 %v949
        %3190 = vmatprep.subr.mxu0 %v948
        %3191 = vmatpush1.msra.mxu0 %v947
        %3192 = vmatprep.subr.mxu0 %v946
        %3193 = vmatpush1.msra.mxu0 %v945
        %3194 = vmatprep.subr.mxu0 %v944
        %3195 = vmatpush1.msra.mxu0 %v943
        %3196 = vmatprep.subr.mxu0 %v942
        %3197 = vmatpush1.msra.mxu0 %v941
        %3198 = vmatprep.subr.mxu0 %v940
        %3199 = vmatpush1.msra.mxu0 %v939
        %3200 = vmatprep.subr.mxu0 %v938
        %3201 = vmatpush1.msra.mxu0 %v937
        %3202 = vmatprep.subr.mxu0 %v936
        %3203 = vmatpush1.msra.mxu0 %v935
        %3204 = vmatprep.subr.mxu0 %v934
        %3205 = vmatpush1.msra.mxu0 %v933
        %3206 = vmatprep.subr.mxu0 %v932
        %3207 = vmatpush1.msra.mxu0 %v931
        %3208 = vmatprep.subr.mxu0 %v930
        %3209 = vmatpush1.msra.mxu0 %v929
        %3210 = vmatprep.subr.mxu0 %v928
        %3211 = vmatpush1.msra.mxu0 %v927
        %3212 = vmatprep.subr.mxu0 %v926
        %3213 = vmatpush1.msra.mxu0 %v925
        %3214 = vmatprep.subr.mxu0 %v924
        %3215 = vmatpush1.msra.mxu0 %v923
        %3216 = vmatprep.subr.mxu0 %v922
        %3217 = vmatpush1.msra.mxu0 %v921
        %3218 = vmatprep.subr.mxu0 %v920
        %3219 = vmatpush1.msra.mxu0 %v919
        %3220 = vmatprep.subr.mxu0 %v982
        %3221 = vmatpush2.msra.mxu0 %v981
        %3222 = vmatprep.subr.mxu0 %v980
        %3223 = vmatpush2.msra.mxu0 %v979
        %3224 = vmatprep.subr.mxu0 %v978
        %3225 = vmatpush2.msra.mxu0 %v977
        %3226 = vmatprep.subr.mxu0 %v976
        %3227 = vmatpush2.msra.mxu0 %v975
        %3228 = vmatprep.subr.mxu0 %v974
        %3229 = vmatpush2.msra.mxu0 %v973
        %3230 = vmatprep.subr.mxu0 %v972
        %3231 = vmatpush2.msra.mxu0 %v971
        %3232 = vmatprep.subr.mxu0 %v970
        %3233 = vmatpush2.msra.mxu0 %v969
        %3234 = vmatprep.subr.mxu0 %v968
        %3235 = vmatpush2.msra.mxu0 %v967
        %3236 = vmatprep.subr.mxu0 %v966
        %3237 = vmatpush2.msra.mxu0 %v965
        %3238 = vmatprep.subr.mxu0 %v964
        %3239 = vmatpush2.msra.mxu0 %v963
        %3240 = vmatprep.subr.mxu0 %v962
        %3241 = vmatpush2.msra.mxu0 %v961
        %3242 = vmatprep.subr.mxu0 %v960
        %3243 = vmatpush2.msra.mxu0 %v959
        %3244 = vmatprep.subr.mxu0 %v958
        %3245 = vmatpush2.msra.mxu0 %v957
        %3246 = vmatprep.subr.mxu0 %v956
        %3247 = vmatpush2.msra.mxu0 %v955
        %3248 = vmatprep.subr.mxu0 %v954
        %3249 = vmatpush2.msra.mxu0 %v953
        %3250 = vmatprep.subr.mxu0 %v952
        %3251 = vmatpush2.msra.mxu0 %v951
        %3252 = vmatprep.mubr.f32.mxu0 %v3185
        %3253 = vmatmul.mubr.f32.gmra.mxu0 %v3184
        %v3254 = vpop.f32.mrf.mxu0
        %v3255 = vadd.f32 0.0, %v3254
        %v3256 = vpop.f32.mrf.mxu0
        %v3257 = vadd.f32 0.0, %v3256
        %3258 = vmatprep.mubr.f32.mxu0 %v3187
        %3259 = vmatmul.mubr.f32.gmra.mxu0 %v3186
        %v3260 = vpop.f32.mrf.mxu0
        %v3261 = vadd.f32 0.0, %v3260
        %v3262 = vpop.f32.mrf.mxu0
        %v3263 = vadd.f32 0.0, %v3262
        %3264 = vdwg.mxu0
        %v3265 = vadd.f32 %v3180, %v3255
        %v3266 = vadd.f32 %v3181, %v3257
        %v3267 = vadd.f32 %v3182, %v3261
        %v3268 = vadd.f32 %v3183, %v3263
        %v3269 = vtanh.pop %v3265
        %v3270 = vtanh.pop %v3266
        %v3271 = vtanh.pop %v3267
        %v3272 = vtanh.pop %v3268
        %v3273 = vsub.f32 1.0, %v3165
        %v3274 = vsub.f32 1.0, %v3167
        %v3275 = vsub.f32 1.0, %v3173
        %v3276 = vsub.f32 1.0, %v3175
        %v3277 = vmul.f32 %v3273, %v2530
        %v3278 = vmul.f32 %v3274, %v2531
        %v3279 = vmul.f32 %v3275, %v2532
        %v3280 = vmul.f32 %v3276, %v2533
        %v3281 = vmul.f32 %v3165, %v3269
        %v3282 = vmul.f32 %v3167, %v3270
        %v3283 = vmul.f32 %v3173, %v3271
        %v3284 = vmul.f32 %v3175, %v3272
        %v3285 = vadd.f32 %v3277, %v3281
        %v3286 = vadd.f32 %v3278, %v3282
        %v3287 = vadd.f32 %v3279, %v3283
        %v3288 = vadd.f32 %v3280, %v3284
        %v3289 = vld [vmem:[#allocation13] sm:$0xff]
        %v3290 = vld [vmem:[#allocation13 + $0x8] sm:$0xff]
        %v3291 = vld [vmem:[#allocation13 + $0x10] sm:$0xff]
        %v3292 = vld [vmem:[#allocation13 + $0x18] sm:$0xff]
        %v3293 = vld [vmem:[#allocation13 + $0x20] sm:$0xff]
        %v3294 = vld [vmem:[#allocation13 + $0x28] sm:$0xff]
        %v3295 = vld [vmem:[#allocation13 + $0x30] sm:$0xff]
        %v3296 = vld [vmem:[#allocation13 + $0x38] sm:$0xff]
        %v3297 = vld [vmem:[#allocation13 + $0x40] sm:$0xff]
        %v3298 = vld [vmem:[#allocation13 + $0x48] sm:$0xff]
        %v3299 = vld [vmem:[#allocation13 + $0x50] sm:$0xff]
        %v3300 = vld [vmem:[#allocation13 + $0x58] sm:$0xff]
        %v3301 = vld [vmem:[#allocation13 + $0x60] sm:$0xff]
        %v3302 = vld [vmem:[#allocation13 + $0x68] sm:$0xff]
        %v3303 = vld [vmem:[#allocation13 + $0x70] sm:$0xff]
        %v3304 = vld [vmem:[#allocation13 + $0x78] sm:$0xff]
        %v3305 = vld [vmem:[#allocation13 + $0x80] sm:$0xff]
        %v3306 = vld [vmem:[#allocation13 + $0x88] sm:$0xff]
        %v3307 = vld [vmem:[#allocation13 + $0x90] sm:$0xff]
        %v3308 = vld [vmem:[#allocation13 + $0x98] sm:$0xff]
        %v3309 = vld [vmem:[#allocation13 + $0xa0] sm:$0xff]
        %v3310 = vld [vmem:[#allocation13 + $0xa8] sm:$0xff]
        %v3311 = vld [vmem:[#allocation13 + $0xb0] sm:$0xff]
        %v3312 = vld [vmem:[#allocation13 + $0xb8] sm:$0xff]
        %v3313 = vld [vmem:[#allocation13 + $0xc0] sm:$0xff]
        %v3314 = vld [vmem:[#allocation13 + $0xc8] sm:$0xff]
        %v3315 = vld [vmem:[#allocation13 + $0xd0] sm:$0xff]
        %v3316 = vld [vmem:[#allocation13 + $0xd8] sm:$0xff]
        %v3317 = vld [vmem:[#allocation13 + $0xe0] sm:$0xff]
        %v3318 = vld [vmem:[#allocation13 + $0xe8] sm:$0xff]
        %v3319 = vld [vmem:[#allocation13 + $0xf0] sm:$0xff]
        %v3320 = vld [vmem:[#allocation13 + $0xf8] sm:$0xff]
        %v3321 = vld [vmem:[#allocation13 + $0x100] sm:$0xff]
        %v3322 = vld [vmem:[#allocation13 + $0x108] sm:$0xff]
        %v3323 = vld [vmem:[#allocation13 + $0x110] sm:$0xff]
        %v3324 = vld [vmem:[#allocation13 + $0x118] sm:$0xff]
        %v3325 = vld [vmem:[#allocation13 + $0x120] sm:$0xff]
        %v3326 = vld [vmem:[#allocation13 + $0x128] sm:$0xff]
        %v3327 = vld [vmem:[#allocation13 + $0x130] sm:$0xff]
        %v3328 = vld [vmem:[#allocation13 + $0x138] sm:$0xff]
        %v3329 = vld [vmem:[#allocation13 + $0x140] sm:$0xff]
        %v3330 = vld [vmem:[#allocation13 + $0x148] sm:$0xff]
        %v3331 = vld [vmem:[#allocation13 + $0x150] sm:$0xff]
        %v3332 = vld [vmem:[#allocation13 + $0x158] sm:$0xff]
        %v3333 = vld [vmem:[#allocation13 + $0x160] sm:$0xff]
        %v3334 = vld [vmem:[#allocation13 + $0x168] sm:$0xff]
        %v3335 = vld [vmem:[#allocation13 + $0x170] sm:$0xff]
        %v3336 = vld [vmem:[#allocation13 + $0x178] sm:$0xff]
        %v3337 = vld [vmem:[#allocation13 + $0x180] sm:$0xff]
        %v3338 = vld [vmem:[#allocation13 + $0x188] sm:$0xff]
        %v3339 = vld [vmem:[#allocation13 + $0x190] sm:$0xff]
        %v3340 = vld [vmem:[#allocation13 + $0x198] sm:$0xff]
        %v3341 = vld [vmem:[#allocation13 + $0x1a0] sm:$0xff]
        %v3342 = vld [vmem:[#allocation13 + $0x1a8] sm:$0xff]
        %v3343 = vld [vmem:[#allocation13 + $0x1b0] sm:$0xff]
        %v3344 = vld [vmem:[#allocation13 + $0x1b8] sm:$0xff]
        %v3345 = vld [vmem:[#allocation13 + $0x1c0] sm:$0xff]
        %v3346 = vld [vmem:[#allocation13 + $0x1c8] sm:$0xff]
        %v3347 = vld [vmem:[#allocation13 + $0x1d0] sm:$0xff]
        %v3348 = vld [vmem:[#allocation13 + $0x1d8] sm:$0xff]
        %v3349 = vld [vmem:[#allocation13 + $0x1e0] sm:$0xff]
        %v3350 = vld [vmem:[#allocation13 + $0x1e8] sm:$0xff]
        %v3351 = vld [vmem:[#allocation13 + $0x1f0] sm:$0xff]
        %v3352 = vld [vmem:[#allocation13 + $0x1f8] sm:$0xff]
        %v3353 = vld [vmem:[#allocation13 + $0x200] sm:$0xff]
        %v3354 = vld [vmem:[#allocation13 + $0x208] sm:$0xff]
        %v3355 = vld [vmem:[#allocation13 + $0x210] sm:$0xff]
        %v3356 = vld [vmem:[#allocation13 + $0x218] sm:$0xff]
        %v3357 = vld [vmem:[#allocation13 + $0x220] sm:$0xff]
        %v3358 = vld [vmem:[#allocation13 + $0x228] sm:$0xff]
        %v3359 = vld [vmem:[#allocation13 + $0x230] sm:$0xff]
        %v3360 = vld [vmem:[#allocation13 + $0x238] sm:$0xff]
        %v3361 = vld [vmem:[#allocation13 + $0x240] sm:$0xff]
        %v3362 = vld [vmem:[#allocation13 + $0x248] sm:$0xff]
        %v3363 = vld [vmem:[#allocation13 + $0x250] sm:$0xff]
        %v3364 = vld [vmem:[#allocation13 + $0x258] sm:$0xff]
        %v3365 = vld [vmem:[#allocation13 + $0x260] sm:$0xff]
        %v3366 = vld [vmem:[#allocation13 + $0x268] sm:$0xff]
        %v3367 = vld [vmem:[#allocation13 + $0x270] sm:$0xff]
        %v3368 = vld [vmem:[#allocation13 + $0x278] sm:$0xff]
        %v3369 = vld [vmem:[#allocation13 + $0x280] sm:$0xff]
        %v3370 = vld [vmem:[#allocation13 + $0x288] sm:$0xff]
        %v3371 = vld [vmem:[#allocation13 + $0x290] sm:$0xff]
        %v3372 = vld [vmem:[#allocation13 + $0x298] sm:$0xff]
        %v3373 = vld [vmem:[#allocation13 + $0x2a0] sm:$0xff]
        %v3374 = vld [vmem:[#allocation13 + $0x2a8] sm:$0xff]
        %v3375 = vld [vmem:[#allocation13 + $0x2b0] sm:$0xff]
        %v3376 = vld [vmem:[#allocation13 + $0x2b8] sm:$0xff]
        %v3377 = vld [vmem:[#allocation13 + $0x2c0] sm:$0xff]
        %v3378 = vld [vmem:[#allocation13 + $0x2c8] sm:$0xff]
        %v3379 = vld [vmem:[#allocation13 + $0x2d0] sm:$0xff]
        %v3380 = vld [vmem:[#allocation13 + $0x2d8] sm:$0xff]
        %v3381 = vld [vmem:[#allocation13 + $0x2e0] sm:$0xff]
        %v3382 = vld [vmem:[#allocation13 + $0x2e8] sm:$0xff]
        %v3383 = vld [vmem:[#allocation13 + $0x2f0] sm:$0xff]
        %v3384 = vld [vmem:[#allocation13 + $0x2f8] sm:$0xff]
        %v3385 = vld [vmem:[#allocation13 + $0x300] sm:$0xff]
        %v3386 = vld [vmem:[#allocation13 + $0x308] sm:$0xff]
        %v3387 = vld [vmem:[#allocation13 + $0x310] sm:$0xff]
        %v3388 = vld [vmem:[#allocation13 + $0x318] sm:$0xff]
        %v3389 = vld [vmem:[#allocation13 + $0x320] sm:$0xff]
        %v3390 = vld [vmem:[#allocation13 + $0x328] sm:$0xff]
        %v3391 = vld [vmem:[#allocation13 + $0x330] sm:$0xff]
        %v3392 = vld [vmem:[#allocation13 + $0x338] sm:$0xff]
        %v3393 = vld [vmem:[#allocation13 + $0x340] sm:$0xff]
        %v3394 = vld [vmem:[#allocation13 + $0x348] sm:$0xff]
        %v3395 = vld [vmem:[#allocation13 + $0x350] sm:$0xff]
        %v3396 = vld [vmem:[#allocation13 + $0x358] sm:$0xff]
        %v3397 = vld [vmem:[#allocation13 + $0x360] sm:$0xff]
        %v3398 = vld [vmem:[#allocation13 + $0x368] sm:$0xff]
        %v3399 = vld [vmem:[#allocation13 + $0x370] sm:$0xff]
        %v3400 = vld [vmem:[#allocation13 + $0x378] sm:$0xff]
        %v3401 = vld [vmem:[#allocation13 + $0x380] sm:$0xff]
        %v3402 = vld [vmem:[#allocation13 + $0x388] sm:$0xff]
        %v3403 = vld [vmem:[#allocation13 + $0x390] sm:$0xff]
        %v3404 = vld [vmem:[#allocation13 + $0x398] sm:$0xff]
        %v3405 = vld [vmem:[#allocation13 + $0x3a0] sm:$0xff]
        %v3406 = vld [vmem:[#allocation13 + $0x3a8] sm:$0xff]
        %v3407 = vld [vmem:[#allocation13 + $0x3b0] sm:$0xff]
        %v3408 = vld [vmem:[#allocation13 + $0x3b8] sm:$0xff]
        %v3409 = vld [vmem:[#allocation13 + $0x3c0] sm:$0xff]
        %v3410 = vld [vmem:[#allocation13 + $0x3c8] sm:$0xff]
        %v3411 = vld [vmem:[#allocation13 + $0x3d0] sm:$0xff]
        %v3412 = vld [vmem:[#allocation13 + $0x3d8] sm:$0xff]
        %v3413 = vld [vmem:[#allocation13 + $0x3e0] sm:$0xff]
        %v3414 = vld [vmem:[#allocation13 + $0x3e8] sm:$0xff]
        %v3415 = vld [vmem:[#allocation13 + $0x3f0] sm:$0xff]
        %v3416 = vld [vmem:[#allocation13 + $0x3f8] sm:$0xff]
        %v3417 = vld [vmem:[#allocation14] sm:$0x3]
        %v3419 = vlaneseq
        %v3420 = vshrl.u32 %v3419, 7
        %v3421 = vsub.s32 0, %v3420
        %v3422 = vrot.slane %v3417, %v3421
        %v3423 = vlaneseq
        %v3424 = vshrl.u32 %v3423, 7
        %v3425 = vsub.s32 1, %v3424
        %v3426 = vrot.slane %v3417, %v3425
        %3429 = vmatprep.subr.mxu0 %v3320
        %3430 = vmatpush1.msra.mxu0 %v3319
        %3431 = vmatprep.subr.mxu0 %v3318
        %3432 = vmatpush1.msra.mxu0 %v3317
        %3433 = vmatprep.subr.mxu0 %v3316
        %3434 = vmatpush1.msra.mxu0 %v3315
        %3435 = vmatprep.subr.mxu0 %v3314
        %3436 = vmatpush1.msra.mxu0 %v3313
        %3437 = vmatprep.subr.mxu0 %v3312
        %3438 = vmatpush1.msra.mxu0 %v3311
        %3439 = vmatprep.subr.mxu0 %v3310
        %3440 = vmatpush1.msra.mxu0 %v3309
        %3441 = vmatprep.subr.mxu0 %v3308
        %3442 = vmatpush1.msra.mxu0 %v3307
        %3443 = vmatprep.subr.mxu0 %v3306
        %3444 = vmatpush1.msra.mxu0 %v3305
        %3445 = vmatprep.subr.mxu0 %v3304
        %3446 = vmatpush1.msra.mxu0 %v3303
        %3447 = vmatprep.subr.mxu0 %v3302
        %3448 = vmatpush1.msra.mxu0 %v3301
        %3449 = vmatprep.subr.mxu0 %v3300
        %3450 = vmatpush1.msra.mxu0 %v3299
        %3451 = vmatprep.subr.mxu0 %v3298
        %3452 = vmatpush1.msra.mxu0 %v3297
        %3453 = vmatprep.subr.mxu0 %v3296
        %3454 = vmatpush1.msra.mxu0 %v3295
        %3455 = vmatprep.subr.mxu0 %v3294
        %3456 = vmatpush1.msra.mxu0 %v3293
        %3457 = vmatprep.subr.mxu0 %v3292
        %3458 = vmatpush1.msra.mxu0 %v3291
        %3459 = vmatprep.subr.mxu0 %v3290
        %3460 = vmatpush1.msra.mxu0 %v3289
        %3461 = vmatprep.subr.mxu0 %v3352
        %3462 = vmatpush2.msra.mxu0 %v3351
        %3463 = vmatprep.subr.mxu0 %v3350
        %3464 = vmatpush2.msra.mxu0 %v3349
        %3465 = vmatprep.subr.mxu0 %v3348
        %3466 = vmatpush2.msra.mxu0 %v3347
        %3467 = vmatprep.subr.mxu0 %v3346
        %3468 = vmatpush2.msra.mxu0 %v3345
        %3469 = vmatprep.subr.mxu0 %v3344
        %3470 = vmatpush2.msra.mxu0 %v3343
        %3471 = vmatprep.subr.mxu0 %v3342
        %3472 = vmatpush2.msra.mxu0 %v3341
        %3473 = vmatprep.subr.mxu0 %v3340
        %3474 = vmatpush2.msra.mxu0 %v3339
        %3475 = vmatprep.subr.mxu0 %v3338
        %3476 = vmatpush2.msra.mxu0 %v3337
        %3477 = vmatprep.subr.mxu0 %v3336
        %3478 = vmatpush2.msra.mxu0 %v3335
        %3479 = vmatprep.subr.mxu0 %v3334
        %3480 = vmatpush2.msra.mxu0 %v3333
        %3481 = vmatprep.subr.mxu0 %v3332
        %3482 = vmatpush2.msra.mxu0 %v3331
        %3483 = vmatprep.subr.mxu0 %v3330
        %3484 = vmatpush2.msra.mxu0 %v3329
        %3485 = vmatprep.subr.mxu0 %v3328
        %3486 = vmatpush2.msra.mxu0 %v3327
        %3487 = vmatprep.subr.mxu0 %v3326
        %3488 = vmatpush2.msra.mxu0 %v3325
        %3489 = vmatprep.subr.mxu0 %v3324
        %3490 = vmatpush2.msra.mxu0 %v3323
        %3491 = vmatprep.subr.mxu0 %v3322
        %3492 = vmatpush2.msra.mxu0 %v3321
        %3493 = vmatprep.mubr.f32.mxu0 %v3286
        %3494 = vmatmul.mubr.f32.gmra.mxu0 %v3285
        %v3495 = vpop.f32.mrf.mxu0
        %v3496 = vadd.f32 %v3422, %v3495
        %v3497 = vpop.f32.mrf.mxu0
        %v3498 = vadd.f32 %v3426, %v3497
        %3499 = vmatprep.mubr.f32.mxu0 %v3288
        %3500 = vmatmul.mubr.f32.gmra.mxu0 %v3287
        %v3501 = vpop.f32.mrf.mxu0
        %v3502 = vadd.f32 %v3422, %v3501
        %v3503 = vpop.f32.mrf.mxu0
        %v3504 = vadd.f32 %v3426, %v3503
        %3505 = vdwg.mxu0
        %3506 = vmatprep.subr.mxu0 %v3384
        %3507 = vmatpush1.msra.mxu0 %v3383
        %3508 = vmatprep.subr.mxu0 %v3382
        %3509 = vmatpush1.msra.mxu0 %v3381
        %3510 = vmatprep.subr.mxu0 %v3380
        %3511 = vmatpush1.msra.mxu0 %v3379
        %3512 = vmatprep.subr.mxu0 %v3378
        %3513 = vmatpush1.msra.mxu0 %v3377
        %3514 = vmatprep.subr.mxu0 %v3376
        %3515 = vmatpush1.msra.mxu0 %v3375
        %3516 = vmatprep.subr.mxu0 %v3374
        %3517 = vmatpush1.msra.mxu0 %v3373
        %3518 = vmatprep.subr.mxu0 %v3372
        %3519 = vmatpush1.msra.mxu0 %v3371
        %3520 = vmatprep.subr.mxu0 %v3370
        %3521 = vmatpush1.msra.mxu0 %v3369
        %3522 = vmatprep.subr.mxu0 %v3368
        %3523 = vmatpush1.msra.mxu0 %v3367
        %3524 = vmatprep.subr.mxu0 %v3366
        %3525 = vmatpush1.msra.mxu0 %v3365
        %3526 = vmatprep.subr.mxu0 %v3364
        %3527 = vmatpush1.msra.mxu0 %v3363
        %3528 = vmatprep.subr.mxu0 %v3362
        %3529 = vmatpush1.msra.mxu0 %v3361
        %3530 = vmatprep.subr.mxu0 %v3360
        %3531 = vmatpush1.msra.mxu0 %v3359
        %3532 = vmatprep.subr.mxu0 %v3358
        %3533 = vmatpush1.msra.mxu0 %v3357
        %3534 = vmatprep.subr.mxu0 %v3356
        %3535 = vmatpush1.msra.mxu0 %v3355
        %3536 = vmatprep.subr.mxu0 %v3354
        %3537 = vmatpush1.msra.mxu0 %v3353
        %3538 = vmatprep.subr.mxu0 %v3416
        %3539 = vmatpush2.msra.mxu0 %v3415
        %3540 = vmatprep.subr.mxu0 %v3414
        %3541 = vmatpush2.msra.mxu0 %v3413
        %3542 = vmatprep.subr.mxu0 %v3412
        %3543 = vmatpush2.msra.mxu0 %v3411
        %3544 = vmatprep.subr.mxu0 %v3410
        %3545 = vmatpush2.msra.mxu0 %v3409
        %3546 = vmatprep.subr.mxu0 %v3408
        %3547 = vmatpush2.msra.mxu0 %v3407
        %3548 = vmatprep.subr.mxu0 %v3406
        %3549 = vmatpush2.msra.mxu0 %v3405
        %3550 = vmatprep.subr.mxu0 %v3404
        %3551 = vmatpush2.msra.mxu0 %v3403
        %3552 = vmatprep.subr.mxu0 %v3402
        %3553 = vmatpush2.msra.mxu0 %v3401
        %3554 = vmatprep.subr.mxu0 %v3400
        %3555 = vmatpush2.msra.mxu0 %v3399
        %3556 = vmatprep.subr.mxu0 %v3398
        %3557 = vmatpush2.msra.mxu0 %v3397
        %3558 = vmatprep.subr.mxu0 %v3396
        %3559 = vmatpush2.msra.mxu0 %v3395
        %3560 = vmatprep.subr.mxu0 %v3394
        %3561 = vmatpush2.msra.mxu0 %v3393
        %3562 = vmatprep.subr.mxu0 %v3392
        %3563 = vmatpush2.msra.mxu0 %v3391
        %3564 = vmatprep.subr.mxu0 %v3390
        %3565 = vmatpush2.msra.mxu0 %v3389
        %3566 = vmatprep.subr.mxu0 %v3388
        %3567 = vmatpush2.msra.mxu0 %v3387
        %3568 = vmatprep.subr.mxu0 %v3386
        %3569 = vmatpush2.msra.mxu0 %v3385
        %3570 = vmatprep.mubr.f32.mxu0 %v986
        %3571 = vmatmul.mubr.f32.gmra.mxu0 %v985
        %v3572 = vpop.f32.mrf.mxu0
        %v3573 = vadd.f32 %v3496, %v3572
        %v3574 = vpop.f32.mrf.mxu0
        %v3575 = vadd.f32 %v3498, %v3574
        %3576 = vmatprep.mubr.f32.mxu0 %v988
        %3577 = vmatmul.mubr.f32.gmra.mxu0 %v987
        %v3578 = vpop.f32.mrf.mxu0
        %v3579 = vadd.f32 %v3502, %v3578
        %v3580 = vpop.f32.mrf.mxu0
        %v3581 = vadd.f32 %v3504, %v3580
        %3582 = vdwg.mxu0
        %v3583 = vmax.f32 %v3573, 0.0
        %v3584 = vmax.f32 %v3575, 0.0
        %v3585 = vmax.f32 %v3579, 0.0
        %v3586 = vmax.f32 %v3581, 0.0
        %v3587 = vld [vmem:[#allocation16] sm:$0xff]
        %v3588 = vld [vmem:[#allocation16 + $0x8] sm:$0xff]
        %v3589 = vld [vmem:[#allocation16 + $0x10] sm:$0xff]
        %v3590 = vld [vmem:[#allocation16 + $0x18] sm:$0xff]
        %v3591 = vld [vmem:[#allocation16 + $0x20] sm:$0xff]
        %v3592 = vld [vmem:[#allocation16 + $0x28] sm:$0xff]
        %v3593 = vld [vmem:[#allocation16 + $0x30] sm:$0xff]
        %v3594 = vld [vmem:[#allocation16 + $0x38] sm:$0xff]
        %v3595 = vld [vmem:[#allocation16 + $0x40] sm:$0xff]
        %v3596 = vld [vmem:[#allocation16 + $0x48] sm:$0xff]
        %v3597 = vld [vmem:[#allocation16 + $0x50] sm:$0xff]
        %v3598 = vld [vmem:[#allocation16 + $0x58] sm:$0xff]
        %v3599 = vld [vmem:[#allocation16 + $0x60] sm:$0xff]
        %v3600 = vld [vmem:[#allocation16 + $0x68] sm:$0xff]
        %v3601 = vld [vmem:[#allocation16 + $0x70] sm:$0xff]
        %v3602 = vld [vmem:[#allocation16 + $0x78] sm:$0xff]
        %v3603 = vld [vmem:[#allocation16 + $0x80] sm:$0xff]
        %v3604 = vld [vmem:[#allocation16 + $0x88] sm:$0xff]
        %v3605 = vld [vmem:[#allocation16 + $0x90] sm:$0xff]
        %v3606 = vld [vmem:[#allocation16 + $0x98] sm:$0xff]
        %v3607 = vld [vmem:[#allocation16 + $0xa0] sm:$0xff]
        %v3608 = vld [vmem:[#allocation16 + $0xa8] sm:$0xff]
        %v3609 = vld [vmem:[#allocation16 + $0xb0] sm:$0xff]
        %v3610 = vld [vmem:[#allocation16 + $0xb8] sm:$0xff]
        %v3611 = vld [vmem:[#allocation16 + $0xc0] sm:$0xff]
        %v3612 = vld [vmem:[#allocation16 + $0xc8] sm:$0xff]
        %v3613 = vld [vmem:[#allocation16 + $0xd0] sm:$0xff]
        %v3614 = vld [vmem:[#allocation16 + $0xd8] sm:$0xff]
        %v3615 = vld [vmem:[#allocation16 + $0xe0] sm:$0xff]
        %v3616 = vld [vmem:[#allocation16 + $0xe8] sm:$0xff]
        %v3617 = vld [vmem:[#allocation16 + $0xf0] sm:$0xff]
        %v3618 = vld [vmem:[#allocation16 + $0xf8] sm:$0xff]
        %v3619 = vld [vmem:[#allocation17] sm:$0x1]
        %v3621 = vlaneseq
        %v3622 = vshrl.u32 %v3621, 7
        %v3623 = vsub.s32 0, %v3622
        %v3624 = vrot.slane %v3619, %v3623
        %3626 = vmatprep.subr.mxu0 0.0
        %3627 = vmatpush1.msra.mxu0 %v3602
        %3628 = vmatprep.subr.mxu0 0.0
        %3629 = vmatpush1.msra.mxu0 %v3601
        %3630 = vmatprep.subr.mxu0 0.0
        %3631 = vmatpush1.msra.mxu0 %v3600
        %3632 = vmatprep.subr.mxu0 0.0
        %3633 = vmatpush1.msra.mxu0 %v3599
        %3634 = vmatprep.subr.mxu0 0.0
        %3635 = vmatpush1.msra.mxu0 %v3598
        %3636 = vmatprep.subr.mxu0 0.0
        %3637 = vmatpush1.msra.mxu0 %v3597
        %3638 = vmatprep.subr.mxu0 0.0
        %3639 = vmatpush1.msra.mxu0 %v3596
        %3640 = vmatprep.subr.mxu0 0.0
        %3641 = vmatpush1.msra.mxu0 %v3595
        %3642 = vmatprep.subr.mxu0 0.0
        %3643 = vmatpush1.msra.mxu0 %v3594
        %3644 = vmatprep.subr.mxu0 0.0
        %3645 = vmatpush1.msra.mxu0 %v3593
        %3646 = vmatprep.subr.mxu0 0.0
        %3647 = vmatpush1.msra.mxu0 %v3592
        %3648 = vmatprep.subr.mxu0 0.0
        %3649 = vmatpush1.msra.mxu0 %v3591
        %3650 = vmatprep.subr.mxu0 0.0
        %3651 = vmatpush1.msra.mxu0 %v3590
        %3652 = vmatprep.subr.mxu0 0.0
        %3653 = vmatpush1.msra.mxu0 %v3589
        %3654 = vmatprep.subr.mxu0 0.0
        %3655 = vmatpush1.msra.mxu0 %v3588
        %3656 = vmatprep.subr.mxu0 0.0
        %3657 = vmatpush1.msra.mxu0 %v3587
        %3658 = vmatprep.subr.mxu0 0.0
        %3659 = vmatpush2.msra.mxu0 %v3618
        %3660 = vmatprep.subr.mxu0 0.0
        %3661 = vmatpush2.msra.mxu0 %v3617
        %3662 = vmatprep.subr.mxu0 0.0
        %3663 = vmatpush2.msra.mxu0 %v3616
        %3664 = vmatprep.subr.mxu0 0.0
        %3665 = vmatpush2.msra.mxu0 %v3615
        %3666 = vmatprep.subr.mxu0 0.0
        %3667 = vmatpush2.msra.mxu0 %v3614
        %3668 = vmatprep.subr.mxu0 0.0
        %3669 = vmatpush2.msra.mxu0 %v3613
        %3670 = vmatprep.subr.mxu0 0.0
        %3671 = vmatpush2.msra.mxu0 %v3612
        %3672 = vmatprep.subr.mxu0 0.0
        %3673 = vmatpush2.msra.mxu0 %v3611
        %3674 = vmatprep.subr.mxu0 0.0
        %3675 = vmatpush2.msra.mxu0 %v3610
        %3676 = vmatprep.subr.mxu0 0.0
        %3677 = vmatpush2.msra.mxu0 %v3609
        %3678 = vmatprep.subr.mxu0 0.0
        %3679 = vmatpush2.msra.mxu0 %v3608
        %3680 = vmatprep.subr.mxu0 0.0
        %3681 = vmatpush2.msra.mxu0 %v3607
        %3682 = vmatprep.subr.mxu0 0.0
        %3683 = vmatpush2.msra.mxu0 %v3606
        %3684 = vmatprep.subr.mxu0 0.0
        %3685 = vmatpush2.msra.mxu0 %v3605
        %3686 = vmatprep.subr.mxu0 0.0
        %3687 = vmatpush2.msra.mxu0 %v3604
        %3688 = vmatprep.subr.mxu0 0.0
        %3689 = vmatpush2.msra.mxu0 %v3603
        %3690 = vmatprep.mubr.f32.mxu0 %v3584
        %3691 = vmatmul.mubr.f32.gmra.mxu0 %v3583
        %v3692 = vpop.f32.mrf.mxu0
        %v3693 = vadd.f32 %v3624, %v3692
        %v3694 = vpop.f32.mrf.mxu0
        %3695 = vmatprep.mubr.f32.mxu0 %v3586
        %3696 = vmatmul.mubr.f32.gmra.mxu0 %v3585
        %v3697 = vpop.f32.mrf.mxu0
        %v3698 = vadd.f32 %v3624, %v3697
        %v3699 = vpop.f32.mrf.mxu0
        %3700 = vdwg.mxu0
        %3701 = vst [vmem:[%s527] sm:$0xff] %v3693
        %3702 = vst [vmem:[%s527 + $0x8] sm:$0xff] %v3698
        %s3703 = sand.u32 %s262, 1
        %s3704 = scalar_lea.sflag [#allocation4], %s3703
        %s3705 = sand.u32 %s262, 1
        %s3706 = smul.addr %s3705, 16
        %s3707 = scalar_lea.vmem [#allocation19], %s3706
        // Predicated region
        $region101: #{tpu_custom_call.1} parent=59 // pred_check
          %p3708 = pneg %p272
        $region102: #{tpu_custom_call.1} parent=59 // pred_check_branch
          %3710 = sbr.rel (%p3708) target = $region104
        $region103: #{tpu_custom_call.1} parent=59 // pred_region
          %s3711 = smul.u32 2, %s34
          %s3713 = ssub.s32 256, 256
          %3714 = vsyncadd %s3704, %s3713
          %s3715 = smul.addr %s3711, 128
          %s3716 = scalar_lea.hbm %s10, %s3715
          %s3717 = sshll.u32 %s3707, 4
          %s3718 = int_to_ptr.vmem [resolvable:$true] %s3717
          %3723 = dma.vmem_to_hbm [thread:$0]  %s3718, 256, %s3716, %s3704, 128, 128, 8
        $region104: #{tpu_custom_call.1} parent=59 // pred_fallthru
          _
      $region60: #{tpu_custom_call.1} parent=5 // pred_fallthru
        _
      %p3724 = scmp.le.s32.totalorder 2, %s29
      // Predicated region
      $region105: #{tpu_custom_call.1} parent=5 // pred_check
        %p3725 = pneg %p3724
      $region106: #{tpu_custom_call.1} parent=5 // pred_check_branch
        %3727 = sbr.rel (%p3725) target = $region108
      $region107: #{tpu_custom_call.1} parent=5 // pred_region
        %s3728 = ssub.s32 %s29, 2
        // Predicated region
        $region109: #{tpu_custom_call.1} parent=107 // pred_check
          %p3729 = pneg %p278
        $region110: #{tpu_custom_call.1} parent=107 // pred_check_branch
          %3731 = sbr.rel (%p3729) target = $region112
        $region111: #{tpu_custom_call.1} parent=107 // pred_region
          %s3732 = sand.u32 %s263, 1
          %s3733 = scalar_lea.sflag [#allocation4], %s3732
          %s3734 = sand.u32 %s263, 1
          %s3735 = smul.addr %s3734, 16
          %s3736 = scalar_lea.vmem [#allocation19], %s3735
          %3737 = dma.done %s3733, 256
        $region112: #{tpu_custom_call.1} parent=107 // pred_fallthru
          _
      $region108: #{tpu_custom_call.1} parent=5 // pred_fallthru
        _
    $region6: #{tpu_custom_call.1} parent=1 // loop_footer
      %s33 = sadd.s32 1, %s29
    $region7: #{tpu_custom_call.1} parent=1 // loop_footer_branch
      %28 = sbr.rel target = $region3
    $region8: #{tpu_custom_call.1} parent=1 // loop_exit
      _
    %3738 = vsyncpa [#allocation3], 1
    %s3739 = scalar_lea.sflag [#allocation3], 1
    %3740 = vsyncpa %s3739, 1
    %3741 = vsyncpa [#allocation6], 1
    %s3742 = scalar_lea.sflag [#allocation6], 1
    %3743 = vsyncpa %s3742, 1
    %3744 = vsyncpa [#allocation9], 1
    %3745 = vsyncpa [#allocation12], 1
    %3746 = vsyncpa [#allocation15], 1
    %3747 = vsyncpa [#allocation18], 1
    %3748 = vsyncpa [#allocation4], 1
    %s3749 = scalar_lea.sflag [#allocation4], 1
    %3750 = vsyncpa %s3749, 1

</llo_original>
